<compile_context>
chip_gen: v7x
topology: tpu7x:2x2x1
jax: 0.10.0
libtpu: 0.0.40
codegen_flags: <defaults>
</compile_context>

<pallas_src>
from functools import partial

import jax
import jax.numpy as jnp
from jax.experimental import pallas as pl
from jax.experimental.pallas import tpu as pltpu


# ----------------------------------------------------------------------------
# The single fused Pallas kernel (whole FCN forward for Bt batch elements,
# packed along the lane axis: lane index = b_local * L + position)
# ----------------------------------------------------------------------------
def _fcn_kernel(x_ref,
                w1_ref, b1_ref, w2_ref, b2_ref, w3_ref, b3_ref,
                wb3_ref, wb2_ref, wb1_ref,
                s3_ref, t3_ref, s2_ref, t2_ref, s1_ref, t1_ref,
                sel1_ref, sel2_ref, sel3_ref,
                u3_ref, u2_ref, u1_ref,
                o_ref,
                pad_ref,
                *, motiflen, seq_len, batch_block):
    f32 = jnp.float32
    bf16 = jnp.bfloat16
    Bt = batch_block
    L = seq_len

    def mxu(lhs, rhs):
        # default-precision MXU matmul (bf16 inputs, f32 accumulate)
        return jnp.dot(lhs.astype(bf16), rhs.astype(bf16),
                       preferred_element_type=f32)

    def conv_valid(xp, w_col, K):
        # 'valid' cross-correlation on the lane-packed activation.  Windows
        # that straddle a batch boundary produce garbage columns that are
        # dropped by the following pool-selection matmul, so no per-batch
        # slicing is needed.  w_col is pre-packed (Cout, K*Cin) bf16.
        Cin, Lpk = xp.shape
        Lfull = Lpk - K + 1
        cols = jnp.concatenate([xp[:, k:k + Lfull] for k in range(K)], axis=0)
        return mxu(w_col, cols)

    def pool_select(xc, kp, sel):
        # sliding max (VPU) then one small default-precision matmul with a
        # host-precomputed constant 0/1 matrix that applies the pooling
        # stride AND keeps only windows fully inside each batch segment.
        C, Lf = xc.shape
        Ls = Lf - kp + 1
        m = xc[:, 0:Ls]
        for i in range(1, kp):
            m = jnp.maximum(m, xc[:, i:i + Ls])
        return mxu(m, sel)

    def blend(xin, w_col, s, t, Lb):
        # eval-mode BatchNorm -> ReLU -> Conv1d(k=3, pad=1, bias=False).
        # Padding/shifting is done through the VMEM scratch `pad_ref`
        # (lane-offset store + two shifted loads); per-batch edge columns are
        # zeroed with a select, so no structural matmul is involved.
        a = jnp.maximum(xin * s + t, 0.0)
        C, Lpk = a.shape
        pad_ref[0:C, 1:Lpk + 1] = a
        lane = jax.lax.broadcasted_iota(jnp.int32, (1, Lpk), 1)
        is_left = jnp.zeros((1, Lpk), jnp.bool_)
        is_right = jnp.zeros((1, Lpk), jnp.bool_)
        for b in range(Bt):
            is_left = jnp.logical_or(is_left, lane == b * Lb)
            is_right = jnp.logical_or(is_right, lane == (b + 1) * Lb - 1)
        a_m1 = jnp.where(is_left, 0.0, pad_ref[0:C, 0:Lpk])        # a[:, p-1]
        a_p1 = jnp.where(is_right, 0.0, pad_ref[0:C, 2:Lpk + 2])   # a[:, p+1]
        cols = jnp.concatenate([a_m1, a, a_p1], axis=0)
        return mxu(w_col, cols)

    # static per-batch lengths
    Lc1 = L - motiflen + 1
    Lp1 = Lc1 // 4
    Lc2 = Lp1 - 4
    Lp2 = Lc2 // 4

    x = x_ref[0]                                           # (CP, Bt*L) f32

    # ---- encoder ----
    h = jnp.maximum(conv_valid(x, w1_ref[...], motiflen) + b1_ref[...], 0.0)
    h = pool_select(h, 4, sel1_ref[...])                   # (64, Bt*Lp1)
    # TODO(synk): nn.Dropout(p=0.2) is identity in eval mode; no RNG applied.
    skip2 = h
    h = jnp.maximum(conv_valid(h, w2_ref[...], 5) + b2_ref[...], 0.0)
    h = pool_select(h, 4, sel2_ref[...])                   # (64, Bt*Lp2)
    skip3 = h
    h = jnp.maximum(conv_valid(h, w3_ref[...], 3) + b3_ref[...], 0.0)
    h = pool_select(h, 2, sel3_ref[...])                   # (64, Bt*Lp3)
    skip4 = h

    # ---- decoder: block-diagonal upsample matmuls fused with skip add +
    #      BN/ReLU/conv blend stages
    up3 = mxu(skip4, u3_ref[...]) + skip3
    up3 = blend(up3, wb3_ref[...], s3_ref[...], t3_ref[...], Lp2)   # (64, Bt*Lp2)
    up2 = mxu(up3, u2_ref[...]) + skip2
    up2 = blend(up2, wb2_ref[...], s2_ref[...], t2_ref[...], Lp1)   # (CP, Bt*Lp1)
    up1 = mxu(up2, u1_ref[...]) + x
    up1 = blend(up1, wb1_ref[...], s1_ref[...], t1_ref[...], L)     # (CP, Bt*L)

    o_ref[0] = jax.nn.sigmoid(up1[0:1, :])                 # (1, Bt*L)


# ----------------------------------------------------------------------------
# Host-side packing helpers
# ----------------------------------------------------------------------------
def _pack_conv(w_oik, cin_pad=None, cout_pad=None):
    """(Cout, Cin, K) PyTorch conv weight -> (Cout_p, K*Cin_p) im2col matrix."""
    Cout, Cin, K = w_oik.shape
    if cout_pad is not None and cout_pad > Cout:
        w_oik = jnp.pad(w_oik, ((0, cout_pad - Cout), (0, 0), (0, 0)))
    if cin_pad is not None and cin_pad > Cin:
        w_oik = jnp.pad(w_oik, ((0, 0), (0, cin_pad - Cin), (0, 0)))
    Co, Ci, K = w_oik.shape
    return jnp.transpose(w_oik, (0, 2, 1)).reshape(Co, K * Ci)


def _upsample_matrix(lin, lout):
    """(lin, lout) matrix s.t. x @ U == F.interpolate(mode='linear', align_corners=False)."""
    j = jnp.arange(lout, dtype=jnp.float32)
    src = jnp.clip((j + 0.5) * (lin / lout) - 0.5, 0.0, lin - 1)
    i0 = jnp.floor(src).astype(jnp.int32)
    i1 = jnp.minimum(i0 + 1, lin - 1)
    w = src - i0.astype(jnp.float32)
    rows = jnp.arange(lin)[:, None]
    return ((rows == i0[None, :]).astype(jnp.float32) * (1.0 - w)[None, :]
            + (rows == i1[None, :]).astype(jnp.float32) * w[None, :])


def _pool_select_matrix(lb_in, ksize, kp, bt):
    """0/1 matrix: sliding_max(packed 'valid' conv output) @ sel == per-batch
    max-pooled output; it also drops windows that straddle batch boundaries."""
    lc = lb_in - ksize + 1
    lo = lc // kp
    ls = bt * lb_in - ksize + 1 - kp + 1
    cols = jnp.arange(bt * lo)
    rows = (cols // lo) * lb_in + (cols % lo) * kp
    sel = jnp.zeros((ls, bt * lo), jnp.float32)
    return sel.at[rows, cols].set(1.0)


# ----------------------------------------------------------------------------
# Full forward pass: one fused pallas_call over batch chunks of size Bt
# ----------------------------------------------------------------------------
@partial(jax.jit, static_argnames=("motiflen", "batch_block"))
def fcn_forward(params, data, *, motiflen=13, batch_block=None):
    B, C, L = data.shape
    CP = max(8, ((C + 7) // 8) * 8)              # pad channels to a sublane tile
    bf16 = jnp.bfloat16

    # Bt batch elements packed into lanes per grid step (cap keeps per-step
    # temporaries well inside v7x's 32 MiB default scoped VMEM).
    Bt = batch_block if batch_block is not None else min(B, 16)
    G = -(-B // Bt)
    Bp = G * Bt

    x = jnp.pad(data, ((0, Bp - B), (0, CP - C), (0, 0)))
    # pack: (G, CP, Bt*L), lane index = b_local*L + position
    xp = jnp.transpose(x.reshape(G, Bt, CP, L), (0, 2, 1, 3)).reshape(G, CP, Bt * L)

    # static encoder lengths (per batch element)
    Lc1 = L - motiflen + 1; Lp1 = Lc1 // 4
    Lc2 = Lp1 - 4;          Lp2 = Lc2 // 4
    Lc3 = Lp2 - 2;          Lp3 = Lc3 // 2

    # conv / blend weights, pre-packed for im2col and pre-cast to bf16
    w1c  = _pack_conv(params["w1"], cin_pad=CP).astype(bf16)            # (64, mot*CP)
    w2c  = _pack_conv(params["w2"]).astype(bf16)                        # (64, 320)
    w3c  = _pack_conv(params["w3"]).astype(bf16)                        # (64, 192)
    wb3c = _pack_conv(params["wb3"]).astype(bf16)                       # (64, 192)
    wb2c = _pack_conv(params["wb2"], cout_pad=CP).astype(bf16)          # (CP, 192)
    wb1c = _pack_conv(params["wb1"], cin_pad=CP, cout_pad=CP).astype(bf16)  # (CP, 3*CP)

    b1 = params["b1"][:, None]
    b2 = params["b2"][:, None]
    b3 = params["b3"][:, None]
    s3 = params["bn3_scale"][:, None]; t3 = params["bn3_shift"][:, None]
    s2 = params["bn2_scale"][:, None]; t2 = params["bn2_shift"][:, None]
    s1 = jnp.pad(params["bn1_scale"], (0, CP - C))[:, None]
    t1 = jnp.pad(params["bn1_shift"], (0, CP - C))[:, None]

    # constant pool-selection matrices (resident bf16 inputs)
    sel1 = _pool_select_matrix(L,   motiflen, 4, Bt).astype(bf16)
    sel2 = _pool_select_matrix(Lp1, 5,        4, Bt).astype(bf16)
    sel3 = _pool_select_matrix(Lp2, 3,        2, Bt).astype(bf16)

    # block-diagonal linear-upsample matrices (resident bf16 inputs)
    eye = jnp.eye(Bt, dtype=jnp.float32)
    u3 = jnp.kron(eye, _upsample_matrix(Lp3, Lp2)).astype(bf16)
    u2 = jnp.kron(eye, _upsample_matrix(Lp2, Lp1)).astype(bf16)
    u1 = jnp.kron(eye, _upsample_matrix(Lp1, L)).astype(bf16)

    res_args = (w1c, b1, w2c, b2, w3c, b3, wb3c, wb2c, wb1c,
                s3, t3, s2, t2, s1, t1, sel1, sel2, sel3, u3, u2, u1)
    full = lambda a: pl.BlockSpec(a.shape, lambda g: (0, 0))   # DMA'd once, resident

    # rough cost estimate so XLA can schedule around the fused call
    def mm(m, k, n):
        return 2 * m * k * n
    flops_step = (
        mm(64, w1c.shape[1], Bt * L - motiflen + 1)
        + mm(64, sel1.shape[0], sel1.shape[1])
        + mm(64, w2c.shape[1], Bt * Lp1 - 4)
        + mm(64, sel2.shape[0], sel2.shape[1])
        + mm(64, w3c.shape[1], Bt * Lp2 - 2)
        + mm(64, sel3.shape[0], sel3.shape[1])
        + mm(64, u3.shape[0], u3.shape[1]) + mm(64, wb3c.shape[1], Bt * Lp2)
        + mm(64, u2.shape[0], u2.shape[1]) + mm(CP, wb2c.shape[1], Bt * Lp1)
        + mm(CP, u1.shape[0], u1.shape[1]) + mm(CP, wb1c.shape[1], Bt * L))
    param_bytes = sum(int(a.size) * a.dtype.itemsize for a in res_args)
    cost = pl.CostEstimate(
        flops=int(G * flops_step),
        transcendentals=int(Bp * L),
        bytes_accessed=int(xp.size * xp.dtype.itemsize + Bp * L * 4 + param_bytes))

    out = pl.pallas_call(
        partial(_fcn_kernel, motiflen=motiflen, seq_len=L, batch_block=Bt),
        out_shape=jax.ShapeDtypeStruct((G, 1, Bt * L), jnp.float32),
        grid=(G,),
        in_specs=[pl.BlockSpec((1, CP, Bt * L), lambda g: (g, 0, 0))]
                 + [full(a) for a in res_args],
        out_specs=pl.BlockSpec((1, 1, Bt * L), lambda g: (g, 0, 0)),
        scratch_shapes=[pltpu.VMEM((max(64, CP), Bt * L + 2), jnp.float32)],
        compiler_params=pltpu.CompilerParams(
            dimension_semantics=("parallel",)),   # v7x: batch chunks across both TCs
        cost_estimate=cost,
    )(xp, *res_args)

    return out.reshape(Bp, L)[:B]


# ----------------------------------------------------------------------------
# Parameter init (matches the PyTorch module's _init_weights, eval-mode BN)
# ----------------------------------------------------------------------------
def xavier_uniform(key, out_c, in_c, k):
    fan_in, fan_out = in_c * k, out_c * k
    bound = (6.0 / (fan_in + fan_out)) ** 0.5
    return jax.random.uniform(key, (out_c, in_c, k), jnp.float32, -bound, bound)


def init_params(key, channels=4, motiflen=13):
    keys = jax.random.split(key, 6)
    p = {}
    p["w1"] = xavier_uniform(keys[0], 64, channels, motiflen)
    p["b1"] = jnp.zeros((64,), jnp.float32)
    p["w2"] = xavier_uniform(keys[1], 64, 64, 5)
    p["b2"] = jnp.zeros((64,), jnp.float32)
    p["w3"] = xavier_uniform(keys[2], 64, 64, 3)
    p["b3"] = jnp.zeros((64,), jnp.float32)
    p["wb3"] = xavier_uniform(keys[3], 64, 64, 3)        # blend3 conv (no bias)
    p["wb2"] = xavier_uniform(keys[4], channels, 64, 3)  # blend2
    p["wb1"] = xavier_uniform(keys[5], 1, channels, 3)   # blend1
    # eval-mode BatchNorm1d: gamma=1, beta=0, running_mean=0, running_var=1
    eps = 1e-5
    for name, c in (("bn3", 64), ("bn2", 64), ("bn1", channels)):
        p[name + "_scale"] = jnp.full((c,), 1.0 / jnp.sqrt(1.0 + eps), jnp.float32)
        p[name + "_shift"] = jnp.zeros((c,), jnp.float32)
    return p


# ----------------------------------------------------------------------------
# Pure-JAX reference (lax.conv, HIGHEST precision) for numerical verification
# ----------------------------------------------------------------------------
def maxpool1d(x, k):
    B, C, L = x.shape
    Lout = L // k
    return jnp.max(x[:, :, :Lout * k].reshape(B, C, Lout, k), axis=-1)


def upsample_linear(x, out_size):
    B, C, Lin = x.shape
    scale = Lin / out_size
    i = jnp.arange(out_size, dtype=jnp.float32)
    src = jnp.clip((i + 0.5) * scale - 0.5, 0.0, Lin - 1)
    i0 = jnp.floor(src).astype(jnp.int32)
    i1 = jnp.minimum(i0 + 1, Lin - 1)
    w = (src - i0.astype(jnp.float32))[None, None, :]
    return x[:, :, i0] * (1.0 - w) + x[:, :, i1] * w


def _ref_conv(x, w_oik, bias, padding=0):
    out = jax.lax.conv_general_dilated(
        x, w_oik, window_strides=(1,), padding=[(padding, padding)],
        dimension_numbers=("NCH", "OIH", "NCH"),
        precision=jax.lax.Precision.HIGHEST)
    return out + bias[None, :, None]


def fcn_forward_ref(p, data):
    B = data.shape[0]
    skip1 = data
    out1 = jnp.maximum(_ref_conv(data, p["w1"], p["b1"]), 0.0)
    out1 = maxpool1d(out1, 4)
    skip2 = out1
    out1 = jnp.maximum(_ref_conv(out1, p["w2"], p["b2"]), 0.0)
    out1 = maxpool1d(out1, 4)
    skip3 = out1
    out1 = jnp.maximum(_ref_conv(out1, p["w3"], p["b3"]), 0.0)
    out1 = maxpool1d(out1, 2)
    skip4 = out1

    def blend_ref(x, w, sc, sh):
        x = x * sc[None, :, None] + sh[None, :, None]
        x = jnp.maximum(x, 0.0)
        return _ref_conv(x, w, jnp.zeros((w.shape[0],), jnp.float32), padding=1)

    up3 = upsample_linear(skip4, skip3.shape[-1]) + skip3
    up3 = blend_ref(up3, p["wb3"], p["bn3_scale"], p["bn3_shift"])
    up2 = upsample_linear(up3, skip2.shape[-1]) + skip2
    up2 = blend_ref(up2, p["wb2"], p["bn2_scale"], p["bn2_shift"])
    up1 = upsample_linear(up2, skip1.shape[-1]) + skip1
    up1 = blend_ref(up1, p["wb1"], p["bn1_scale"], p["bn1_shift"])
    return jax.nn.sigmoid(up1).reshape(B, -1)


if __name__ == "__main__":
    B, C, L = 2, 4, 140   # 140 -> conv1(128) -> pool(32) -> conv2(28) -> pool(7)
                          #     -> conv3(5) -> pool(2); upsample back 2->7->32->140
    key = jax.random.PRNGKey(0)
    k_param, k_data = jax.random.split(key)
    params = init_params(k_param, channels=C, motiflen=13)
    x = jax.random.normal(k_data, (B, C, L), jnp.float32)

    out = jax.block_until_ready(fcn_forward(params, x, motiflen=13))
    ref = jax.block_until_ready(fcn_forward_ref(params, x))

    assert out.shape == (B, L), out.shape
    err = float(jnp.max(jnp.abs(out - ref)))
    # all kernel matmuls (convs, pool-select, upsample) run at default
    # bf16-input / f32-accumulate MXU precision
    assert err < 3e-2, err
    print("KERNEL_OK")
</pallas_src>

<mosaic_0001>
module attributes {stable_mosaic.version = 11 : i64} {
  func.func @_fcn_kernel(%arg0: i32, %arg1: memref<1x8x280xf32, #tpu.memory_space<vmem>>, %arg2: memref<64x104xbf16, #tpu.memory_space<vmem>>, %arg3: memref<64x1xf32, #tpu.memory_space<vmem>>, %arg4: memref<64x320xbf16, #tpu.memory_space<vmem>>, %arg5: memref<64x1xf32, #tpu.memory_space<vmem>>, %arg6: memref<64x192xbf16, #tpu.memory_space<vmem>>, %arg7: memref<64x1xf32, #tpu.memory_space<vmem>>, %arg8: memref<64x192xbf16, #tpu.memory_space<vmem>>, %arg9: memref<8x192xbf16, #tpu.memory_space<vmem>>, %arg10: memref<8x24xbf16, #tpu.memory_space<vmem>>, %arg11: memref<64x1xf32, #tpu.memory_space<vmem>>, %arg12: memref<64x1xf32, #tpu.memory_space<vmem>>, %arg13: memref<64x1xf32, #tpu.memory_space<vmem>>, %arg14: memref<64x1xf32, #tpu.memory_space<vmem>>, %arg15: memref<8x1xf32, #tpu.memory_space<vmem>>, %arg16: memref<8x1xf32, #tpu.memory_space<vmem>>, %arg17: memref<265x64xbf16, #tpu.memory_space<vmem>>, %arg18: memref<57x14xbf16, #tpu.memory_space<vmem>>, %arg19: memref<11x4xbf16, #tpu.memory_space<vmem>>, %arg20: memref<4x14xbf16, #tpu.memory_space<vmem>>, %arg21: memref<14x64xbf16, #tpu.memory_space<vmem>>, %arg22: memref<64x280xbf16, #tpu.memory_space<vmem>>, %arg23: memref<1x1x280xf32, #tpu.memory_space<vmem>>, %arg24: memref<64x282xf32, #tpu.memory_space<vmem>>) attributes {dimension_semantics = [#tpu.dimension_semantics<parallel>], iteration_bounds = array<i64: 1>, scalar_prefetch = 0 : i64, scratch_operands = 1 : i64, tpu.core_type = #tpu.core_type<tc>, window_params = [{transform_indices = @transform_0, window_bounds = array<i64: 1, 8, 280>}, {pipeline_mode = #tpu.pipeline_mode<synchronous>, transform_indices = @transform_1, window_bounds = array<i64: 64, 104>}, {pipeline_mode = #tpu.pipeline_mode<synchronous>, transform_indices = @transform_2, window_bounds = array<i64: 64, 1>}, {pipeline_mode = #tpu.pipeline_mode<synchronous>, transform_indices = @transform_3, window_bounds = array<i64: 64, 320>}, {pipeline_mode = #tpu.pipeline_mode<synchronous>, transform_indices = @transform_4, window_bounds = array<i64: 64, 1>}, {pipeline_mode = #tpu.pipeline_mode<synchronous>, transform_indices = @transform_5, window_bounds = array<i64: 64, 192>}, {pipeline_mode = #tpu.pipeline_mode<synchronous>, transform_indices = @transform_6, window_bounds = array<i64: 64, 1>}, {pipeline_mode = #tpu.pipeline_mode<synchronous>, transform_indices = @transform_7, window_bounds = array<i64: 64, 192>}, {pipeline_mode = #tpu.pipeline_mode<synchronous>, transform_indices = @transform_8, window_bounds = array<i64: 8, 192>}, {pipeline_mode = #tpu.pipeline_mode<synchronous>, transform_indices = @transform_9, window_bounds = array<i64: 8, 24>}, {pipeline_mode = #tpu.pipeline_mode<synchronous>, transform_indices = @transform_10, window_bounds = array<i64: 64, 1>}, {pipeline_mode = #tpu.pipeline_mode<synchronous>, transform_indices = @transform_11, window_bounds = array<i64: 64, 1>}, {pipeline_mode = #tpu.pipeline_mode<synchronous>, transform_indices = @transform_12, window_bounds = array<i64: 64, 1>}, {pipeline_mode = #tpu.pipeline_mode<synchronous>, transform_indices = @transform_13, window_bounds = array<i64: 64, 1>}, {pipeline_mode = #tpu.pipeline_mode<synchronous>, transform_indices = @transform_14, window_bounds = array<i64: 8, 1>}, {pipeline_mode = #tpu.pipeline_mode<synchronous>, transform_indices = @transform_15, window_bounds = array<i64: 8, 1>}, {pipeline_mode = #tpu.pipeline_mode<synchronous>, transform_indices = @transform_16, window_bounds = array<i64: 265, 64>}, {pipeline_mode = #tpu.pipeline_mode<synchronous>, transform_indices = @transform_17, window_bounds = array<i64: 57, 14>}, {pipeline_mode = #tpu.pipeline_mode<synchronous>, transform_indices = @transform_18, window_bounds = array<i64: 11, 4>}, {pipeline_mode = #tpu.pipeline_mode<synchronous>, transform_indices = @transform_19, window_bounds = array<i64: 4, 14>}, {pipeline_mode = #tpu.pipeline_mode<synchronous>, transform_indices = @transform_20, window_bounds = array<i64: 14, 64>}, {pipeline_mode = #tpu.pipeline_mode<synchronous>, transform_indices = @transform_21, window_bounds = array<i64: 64, 280>}, {transform_indices = @transform_22, window_bounds = array<i64: 1, 1, 280>}]} {
    %c0 = arith.constant 0 : index
    %c0_0 = arith.constant 0 : index
    %c0_1 = arith.constant 0 : index
    %0 = vector.load %arg1[%c0, %c0_0, %c0_1] : memref<1x8x280xf32, #tpu.memory_space<vmem>>, vector<1x8x280xf32>
    %1 = vector.shape_cast %0 : vector<1x8x280xf32> to vector<8x280xf32>
    %c0_2 = arith.constant 0 : index
    %c0_3 = arith.constant 0 : index
    %2 = vector.load %arg2[%c0_2, %c0_3] : memref<64x104xbf16, #tpu.memory_space<vmem>>, vector<64x104xbf16>
    %3 = vector.extract_strided_slice %1 {offsets = [0, 0], sizes = [8, 268], strides = [1, 1]} : vector<8x280xf32> to vector<8x268xf32>
    %4 = vector.extract_strided_slice %1 {offsets = [0, 1], sizes = [8, 268], strides = [1, 1]} : vector<8x280xf32> to vector<8x268xf32>
    %5 = vector.extract_strided_slice %1 {offsets = [0, 2], sizes = [8, 268], strides = [1, 1]} : vector<8x280xf32> to vector<8x268xf32>
    %6 = vector.extract_strided_slice %1 {offsets = [0, 3], sizes = [8, 268], strides = [1, 1]} : vector<8x280xf32> to vector<8x268xf32>
    %7 = vector.extract_strided_slice %1 {offsets = [0, 4], sizes = [8, 268], strides = [1, 1]} : vector<8x280xf32> to vector<8x268xf32>
    %8 = vector.extract_strided_slice %1 {offsets = [0, 5], sizes = [8, 268], strides = [1, 1]} : vector<8x280xf32> to vector<8x268xf32>
    %9 = vector.extract_strided_slice %1 {offsets = [0, 6], sizes = [8, 268], strides = [1, 1]} : vector<8x280xf32> to vector<8x268xf32>
    %10 = vector.extract_strided_slice %1 {offsets = [0, 7], sizes = [8, 268], strides = [1, 1]} : vector<8x280xf32> to vector<8x268xf32>
    %11 = vector.extract_strided_slice %1 {offsets = [0, 8], sizes = [8, 268], strides = [1, 1]} : vector<8x280xf32> to vector<8x268xf32>
    %12 = vector.extract_strided_slice %1 {offsets = [0, 9], sizes = [8, 268], strides = [1, 1]} : vector<8x280xf32> to vector<8x268xf32>
    %13 = vector.extract_strided_slice %1 {offsets = [0, 10], sizes = [8, 268], strides = [1, 1]} : vector<8x280xf32> to vector<8x268xf32>
    %14 = vector.extract_strided_slice %1 {offsets = [0, 11], sizes = [8, 268], strides = [1, 1]} : vector<8x280xf32> to vector<8x268xf32>
    %15 = vector.extract_strided_slice %1 {offsets = [0, 12], sizes = [8, 268], strides = [1, 1]} : vector<8x280xf32> to vector<8x268xf32>
    %16 = tpu.concatenate %3, %4, %5, %6, %7, %8, %9, %10, %11, %12, %13, %14, %15 in 0 : vector<8x268xf32>, vector<8x268xf32>, vector<8x268xf32>, vector<8x268xf32>, vector<8x268xf32>, vector<8x268xf32>, vector<8x268xf32>, vector<8x268xf32>, vector<8x268xf32>, vector<8x268xf32>, vector<8x268xf32>, vector<8x268xf32>, vector<8x268xf32> -> vector<104x268xf32>
    %17 = arith.truncf %16 : vector<104x268xf32> to vector<104x268xbf16>
    %cst = arith.constant dense<0.000000e+00> : vector<64x268xf32>
    %18 = tpu.matmul %2, %17, %cst {dimension_numbers = #tpu.dot_dimension_numbers<[1], [0], [0], [1], [0, 0, 1, 1], [], []>} : vector<64x104xbf16>, vector<104x268xbf16>, vector<64x268xf32> -> vector<64x268xf32>
    %c0_4 = arith.constant 0 : index
    %c0_5 = arith.constant 0 : index
    %19 = vector.load %arg3[%c0_4, %c0_5] : memref<64x1xf32, #tpu.memory_space<vmem>>, vector<64x1xf32>
    %20 = vector.broadcast %19 : vector<64x1xf32> to vector<64x268xf32>
    %21 = arith.addf %18, %20 : vector<64x268xf32>
    %cst_6 = arith.constant 0.000000e+00 : f32
    %22 = vector.broadcast %cst_6 : f32 to vector<64x268xf32>
    %23 = arith.maximumf %21, %22 : vector<64x268xf32>
    %c0_7 = arith.constant 0 : index
    %c0_8 = arith.constant 0 : index
    %24 = vector.load %arg17[%c0_7, %c0_8] : memref<265x64xbf16, #tpu.memory_space<vmem>>, vector<265x64xbf16>
    %25 = vector.extract_strided_slice %23 {offsets = [0, 0], sizes = [64, 265], strides = [1, 1]} : vector<64x268xf32> to vector<64x265xf32>
    %26 = vector.extract_strided_slice %23 {offsets = [0, 1], sizes = [64, 265], strides = [1, 1]} : vector<64x268xf32> to vector<64x265xf32>
    %27 = arith.maximumf %25, %26 : vector<64x265xf32>
    %28 = vector.extract_strided_slice %23 {offsets = [0, 2], sizes = [64, 265], strides = [1, 1]} : vector<64x268xf32> to vector<64x265xf32>
    %29 = arith.maximumf %27, %28 : vector<64x265xf32>
    %30 = vector.extract_strided_slice %23 {offsets = [0, 3], sizes = [64, 265], strides = [1, 1]} : vector<64x268xf32> to vector<64x265xf32>
    %31 = arith.maximumf %29, %30 : vector<64x265xf32>
    %32 = arith.truncf %31 : vector<64x265xf32> to vector<64x265xbf16>
    %cst_9 = arith.constant dense<0.000000e+00> : vector<64x64xf32>
    %33 = tpu.matmul %32, %24, %cst_9 {dimension_numbers = #tpu.dot_dimension_numbers<[1], [0], [0], [1], [0, 0, 1, 1], [], []>} : vector<64x265xbf16>, vector<265x64xbf16>, vector<64x64xf32> -> vector<64x64xf32>
    %c0_10 = arith.constant 0 : index
    %c0_11 = arith.constant 0 : index
    %34 = vector.load %arg4[%c0_10, %c0_11] : memref<64x320xbf16, #tpu.memory_space<vmem>>, vector<64x320xbf16>
    %35 = vector.extract_strided_slice %33 {offsets = [0, 0], sizes = [64, 60], strides = [1, 1]} : vector<64x64xf32> to vector<64x60xf32>
    %36 = vector.extract_strided_slice %33 {offsets = [0, 1], sizes = [64, 60], strides = [1, 1]} : vector<64x64xf32> to vector<64x60xf32>
    %37 = vector.extract_strided_slice %33 {offsets = [0, 2], sizes = [64, 60], strides = [1, 1]} : vector<64x64xf32> to vector<64x60xf32>
    %38 = vector.extract_strided_slice %33 {offsets = [0, 3], sizes = [64, 60], strides = [1, 1]} : vector<64x64xf32> to vector<64x60xf32>
    %39 = vector.extract_strided_slice %33 {offsets = [0, 4], sizes = [64, 60], strides = [1, 1]} : vector<64x64xf32> to vector<64x60xf32>
    %40 = tpu.concatenate %35, %36, %37, %38, %39 in 0 : vector<64x60xf32>, vector<64x60xf32>, vector<64x60xf32>, vector<64x60xf32>, vector<64x60xf32> -> vector<320x60xf32>
    %41 = arith.truncf %40 : vector<320x60xf32> to vector<320x60xbf16>
    %cst_12 = arith.constant dense<0.000000e+00> : vector<64x60xf32>
    %42 = tpu.matmul %34, %41, %cst_12 {dimension_numbers = #tpu.dot_dimension_numbers<[1], [0], [0], [1], [0, 0, 1, 1], [], []>} : vector<64x320xbf16>, vector<320x60xbf16>, vector<64x60xf32> -> vector<64x60xf32>
    %c0_13 = arith.constant 0 : index
    %c0_14 = arith.constant 0 : index
    %43 = vector.load %arg5[%c0_13, %c0_14] : memref<64x1xf32, #tpu.memory_space<vmem>>, vector<64x1xf32>
    %44 = vector.broadcast %43 : vector<64x1xf32> to vector<64x60xf32>
    %45 = arith.addf %42, %44 : vector<64x60xf32>
    %cst_15 = arith.constant 0.000000e+00 : f32
    %46 = vector.broadcast %cst_15 : f32 to vector<64x60xf32>
    %47 = arith.maximumf %45, %46 : vector<64x60xf32>
    %c0_16 = arith.constant 0 : index
    %c0_17 = arith.constant 0 : index
    %48 = vector.load %arg18[%c0_16, %c0_17] : memref<57x14xbf16, #tpu.memory_space<vmem>>, vector<57x14xbf16>
    %49 = vector.extract_strided_slice %47 {offsets = [0, 0], sizes = [64, 57], strides = [1, 1]} : vector<64x60xf32> to vector<64x57xf32>
    %50 = vector.extract_strided_slice %47 {offsets = [0, 1], sizes = [64, 57], strides = [1, 1]} : vector<64x60xf32> to vector<64x57xf32>
    %51 = arith.maximumf %49, %50 : vector<64x57xf32>
    %52 = vector.extract_strided_slice %47 {offsets = [0, 2], sizes = [64, 57], strides = [1, 1]} : vector<64x60xf32> to vector<64x57xf32>
    %53 = arith.maximumf %51, %52 : vector<64x57xf32>
    %54 = vector.extract_strided_slice %47 {offsets = [0, 3], sizes = [64, 57], strides = [1, 1]} : vector<64x60xf32> to vector<64x57xf32>
    %55 = arith.maximumf %53, %54 : vector<64x57xf32>
    %56 = arith.truncf %55 : vector<64x57xf32> to vector<64x57xbf16>
    %cst_18 = arith.constant dense<0.000000e+00> : vector<64x14xf32>
    %57 = tpu.matmul %56, %48, %cst_18 {dimension_numbers = #tpu.dot_dimension_numbers<[1], [0], [0], [1], [0, 0, 1, 1], [], []>} : vector<64x57xbf16>, vector<57x14xbf16>, vector<64x14xf32> -> vector<64x14xf32>
    %c0_19 = arith.constant 0 : index
    %c0_20 = arith.constant 0 : index
    %58 = vector.load %arg6[%c0_19, %c0_20] : memref<64x192xbf16, #tpu.memory_space<vmem>>, vector<64x192xbf16>
    %59 = vector.extract_strided_slice %57 {offsets = [0, 0], sizes = [64, 12], strides = [1, 1]} : vector<64x14xf32> to vector<64x12xf32>
    %60 = vector.extract_strided_slice %57 {offsets = [0, 1], sizes = [64, 12], strides = [1, 1]} : vector<64x14xf32> to vector<64x12xf32>
    %61 = vector.extract_strided_slice %57 {offsets = [0, 2], sizes = [64, 12], strides = [1, 1]} : vector<64x14xf32> to vector<64x12xf32>
    %62 = tpu.concatenate %59, %60, %61 in 0 : vector<64x12xf32>, vector<64x12xf32>, vector<64x12xf32> -> vector<192x12xf32>
    %63 = arith.truncf %62 : vector<192x12xf32> to vector<192x12xbf16>
    %cst_21 = arith.constant dense<0.000000e+00> : vector<64x12xf32>
    %64 = tpu.matmul %58, %63, %cst_21 {dimension_numbers = #tpu.dot_dimension_numbers<[1], [0], [0], [1], [0, 0, 1, 1], [], []>} : vector<64x192xbf16>, vector<192x12xbf16>, vector<64x12xf32> -> vector<64x12xf32>
    %c0_22 = arith.constant 0 : index
    %c0_23 = arith.constant 0 : index
    %65 = vector.load %arg7[%c0_22, %c0_23] : memref<64x1xf32, #tpu.memory_space<vmem>>, vector<64x1xf32>
    %66 = vector.broadcast %65 : vector<64x1xf32> to vector<64x12xf32>
    %67 = arith.addf %64, %66 : vector<64x12xf32>
    %cst_24 = arith.constant 0.000000e+00 : f32
    %68 = vector.broadcast %cst_24 : f32 to vector<64x12xf32>
    %69 = arith.maximumf %67, %68 : vector<64x12xf32>
    %c0_25 = arith.constant 0 : index
    %c0_26 = arith.constant 0 : index
    %70 = vector.load %arg19[%c0_25, %c0_26] : memref<11x4xbf16, #tpu.memory_space<vmem>>, vector<11x4xbf16>
    %71 = vector.extract_strided_slice %69 {offsets = [0, 0], sizes = [64, 11], strides = [1, 1]} : vector<64x12xf32> to vector<64x11xf32>
    %72 = vector.extract_strided_slice %69 {offsets = [0, 1], sizes = [64, 11], strides = [1, 1]} : vector<64x12xf32> to vector<64x11xf32>
    %73 = arith.maximumf %71, %72 : vector<64x11xf32>
    %74 = arith.truncf %73 : vector<64x11xf32> to vector<64x11xbf16>
    %cst_27 = arith.constant dense<0.000000e+00> : vector<64x4xf32>
    %75 = tpu.matmul %74, %70, %cst_27 {dimension_numbers = #tpu.dot_dimension_numbers<[1], [0], [0], [1], [0, 0, 1, 1], [], []>} : vector<64x11xbf16>, vector<11x4xbf16>, vector<64x4xf32> -> vector<64x4xf32>
    %c0_28 = arith.constant 0 : index
    %c0_29 = arith.constant 0 : index
    %76 = vector.load %arg20[%c0_28, %c0_29] : memref<4x14xbf16, #tpu.memory_space<vmem>>, vector<4x14xbf16>
    %77 = arith.truncf %75 : vector<64x4xf32> to vector<64x4xbf16>
    %cst_30 = arith.constant dense<0.000000e+00> : vector<64x14xf32>
    %78 = tpu.matmul %77, %76, %cst_30 {dimension_numbers = #tpu.dot_dimension_numbers<[1], [0], [0], [1], [0, 0, 1, 1], [], []>} : vector<64x4xbf16>, vector<4x14xbf16>, vector<64x14xf32> -> vector<64x14xf32>
    %79 = arith.addf %78, %57 : vector<64x14xf32>
    %c0_31 = arith.constant 0 : index
    %c0_32 = arith.constant 0 : index
    %80 = vector.load %arg8[%c0_31, %c0_32] : memref<64x192xbf16, #tpu.memory_space<vmem>>, vector<64x192xbf16>
    %c0_33 = arith.constant 0 : index
    %c0_34 = arith.constant 0 : index
    %81 = vector.load %arg11[%c0_33, %c0_34] : memref<64x1xf32, #tpu.memory_space<vmem>>, vector<64x1xf32>
    %c0_35 = arith.constant 0 : index
    %c0_36 = arith.constant 0 : index
    %82 = vector.load %arg12[%c0_35, %c0_36] : memref<64x1xf32, #tpu.memory_space<vmem>>, vector<64x1xf32>
    %83 = vector.broadcast %81 : vector<64x1xf32> to vector<64x14xf32>
    %84 = arith.mulf %79, %83 : vector<64x14xf32>
    %85 = vector.broadcast %82 : vector<64x1xf32> to vector<64x14xf32>
    %86 = arith.addf %84, %85 : vector<64x14xf32>
    %cst_37 = arith.constant 0.000000e+00 : f32
    %87 = vector.broadcast %cst_37 : f32 to vector<64x14xf32>
    %88 = arith.maximumf %86, %87 : vector<64x14xf32>
    %c0_38 = arith.constant 0 : index
    %c1 = arith.constant 1 : index
    %89 = vector.load %arg24[%c0_38, %c1] : memref<64x282xf32, #tpu.memory_space<vmem>>, vector<64x14xf32>
    tpu.vector_store %arg24[%c0_38, %c1], %88 {strides = array<i32>} : memref<64x282xf32, #tpu.memory_space<vmem>>, vector<64x14xf32>,
    %90 = tpu.iota {dimensions = array<i32: 1>} : vector<1x14xi32>
    %false = arith.constant false
    %91 = vector.broadcast %false : i1 to vector<1x14xi1>
    %false_39 = arith.constant false
    %92 = vector.broadcast %false_39 : i1 to vector<1x14xi1>
    %c0_i32 = arith.constant 0 : i32
    %93 = vector.broadcast %c0_i32 : i32 to vector<1x14xi32>
    %94 = arith.cmpi eq, %90, %93 : vector<1x14xi32>
    %95 = arith.ori %91, %94 : vector<1x14xi1>
    %c6_i32 = arith.constant 6 : i32
    %96 = vector.broadcast %c6_i32 : i32 to vector<1x14xi32>
    %97 = arith.cmpi eq, %90, %96 : vector<1x14xi32>
    %98 = arith.ori %92, %97 : vector<1x14xi1>
    %c7_i32 = arith.constant 7 : i32
    %99 = vector.broadcast %c7_i32 : i32 to vector<1x14xi32>
    %100 = arith.cmpi eq, %90, %99 : vector<1x14xi32>
    %101 = arith.ori %95, %100 : vector<1x14xi1>
    %c13_i32 = arith.constant 13 : i32
    %102 = vector.broadcast %c13_i32 : i32 to vector<1x14xi32>
    %103 = arith.cmpi eq, %90, %102 : vector<1x14xi32>
    %104 = arith.ori %98, %103 : vector<1x14xi1>
    %c0_40 = arith.constant 0 : index
    %c0_41 = arith.constant 0 : index
    %105 = vector.load %arg24[%c0_40, %c0_41] : memref<64x282xf32, #tpu.memory_space<vmem>>, vector<64x14xf32>
    %cst_42 = arith.constant 0.000000e+00 : f32
    %106 = vector.shape_cast %101 : vector<1x14xi1> to vector<1x14xi1>
    %107 = vector.broadcast %106 : vector<1x14xi1> to vector<64x14xi1>
    %108 = vector.broadcast %cst_42 : f32 to vector<64x14xf32>
    %109 = arith.select %107, %108, %105 : vector<64x14xi1>, vector<64x14xf32>
    %c0_43 = arith.constant 0 : index
    %c2 = arith.constant 2 : index
    %110 = vector.load %arg24[%c0_43, %c2] : memref<64x282xf32, #tpu.memory_space<vmem>>, vector<64x14xf32>
    %cst_44 = arith.constant 0.000000e+00 : f32
    %111 = vector.shape_cast %104 : vector<1x14xi1> to vector<1x14xi1>
    %112 = vector.broadcast %111 : vector<1x14xi1> to vector<64x14xi1>
    %113 = vector.broadcast %cst_44 : f32 to vector<64x14xf32>
    %114 = arith.select %112, %113, %110 : vector<64x14xi1>, vector<64x14xf32>
    %115 = tpu.concatenate %109, %88, %114 in 0 : vector<64x14xf32>, vector<64x14xf32>, vector<64x14xf32> -> vector<192x14xf32>
    %116 = arith.truncf %115 : vector<192x14xf32> to vector<192x14xbf16>
    %cst_45 = arith.constant dense<0.000000e+00> : vector<64x14xf32>
    %117 = tpu.matmul %80, %116, %cst_45 {dimension_numbers = #tpu.dot_dimension_numbers<[1], [0], [0], [1], [0, 0, 1, 1], [], []>} : vector<64x192xbf16>, vector<192x14xbf16>, vector<64x14xf32> -> vector<64x14xf32>
    %c0_46 = arith.constant 0 : index
    %c0_47 = arith.constant 0 : index
    %118 = vector.load %arg21[%c0_46, %c0_47] : memref<14x64xbf16, #tpu.memory_space<vmem>>, vector<14x64xbf16>
    %119 = arith.truncf %117 : vector<64x14xf32> to vector<64x14xbf16>
    %cst_48 = arith.constant dense<0.000000e+00> : vector<64x64xf32>
    %120 = tpu.matmul %119, %118, %cst_48 {dimension_numbers = #tpu.dot_dimension_numbers<[1], [0], [0], [1], [0, 0, 1, 1], [], []>} : vector<64x14xbf16>, vector<14x64xbf16>, vector<64x64xf32> -> vector<64x64xf32>
    %121 = arith.addf %120, %33 : vector<64x64xf32>
    %c0_49 = arith.constant 0 : index
    %c0_50 = arith.constant 0 : index
    %122 = vector.load %arg9[%c0_49, %c0_50] : memref<8x192xbf16, #tpu.memory_space<vmem>>, vector<8x192xbf16>
    %c0_51 = arith.constant 0 : index
    %c0_52 = arith.constant 0 : index
    %123 = vector.load %arg13[%c0_51, %c0_52] : memref<64x1xf32, #tpu.memory_space<vmem>>, vector<64x1xf32>
    %c0_53 = arith.constant 0 : index
    %c0_54 = arith.constant 0 : index
    %124 = vector.load %arg14[%c0_53, %c0_54] : memref<64x1xf32, #tpu.memory_space<vmem>>, vector<64x1xf32>
    %125 = vector.broadcast %123 : vector<64x1xf32> to vector<64x64xf32>
    %126 = arith.mulf %121, %125 : vector<64x64xf32>
    %127 = vector.broadcast %124 : vector<64x1xf32> to vector<64x64xf32>
    %128 = arith.addf %126, %127 : vector<64x64xf32>
    %cst_55 = arith.constant 0.000000e+00 : f32
    %129 = vector.broadcast %cst_55 : f32 to vector<64x64xf32>
    %130 = arith.maximumf %128, %129 : vector<64x64xf32>
    %c0_56 = arith.constant 0 : index
    %c1_57 = arith.constant 1 : index
    %131 = vector.load %arg24[%c0_56, %c1_57] : memref<64x282xf32, #tpu.memory_space<vmem>>, vector<64x64xf32>
    tpu.vector_store %arg24[%c0_56, %c1_57], %130 {strides = array<i32>} : memref<64x282xf32, #tpu.memory_space<vmem>>, vector<64x64xf32>,
    %132 = tpu.iota {dimensions = array<i32: 1>} : vector<1x64xi32>
    %false_58 = arith.constant false
    %133 = vector.broadcast %false_58 : i1 to vector<1x64xi1>
    %false_59 = arith.constant false
    %134 = vector.broadcast %false_59 : i1 to vector<1x64xi1>
    %c0_i32_60 = arith.constant 0 : i32
    %135 = vector.broadcast %c0_i32_60 : i32 to vector<1x64xi32>
    %136 = arith.cmpi eq, %132, %135 : vector<1x64xi32>
    %137 = arith.ori %133, %136 : vector<1x64xi1>
    %c31_i32 = arith.constant 31 : i32
    %138 = vector.broadcast %c31_i32 : i32 to vector<1x64xi32>
    %139 = arith.cmpi eq, %132, %138 : vector<1x64xi32>
    %140 = arith.ori %134, %139 : vector<1x64xi1>
    %c32_i32 = arith.constant 32 : i32
    %141 = vector.broadcast %c32_i32 : i32 to vector<1x64xi32>
    %142 = arith.cmpi eq, %132, %141 : vector<1x64xi32>
    %143 = arith.ori %137, %142 : vector<1x64xi1>
    %c63_i32 = arith.constant 63 : i32
    %144 = vector.broadcast %c63_i32 : i32 to vector<1x64xi32>
    %145 = arith.cmpi eq, %132, %144 : vector<1x64xi32>
    %146 = arith.ori %140, %145 : vector<1x64xi1>
    %c0_61 = arith.constant 0 : index
    %c0_62 = arith.constant 0 : index
    %147 = vector.load %arg24[%c0_61, %c0_62] : memref<64x282xf32, #tpu.memory_space<vmem>>, vector<64x64xf32>
    %cst_63 = arith.constant 0.000000e+00 : f32
    %148 = vector.shape_cast %143 : vector<1x64xi1> to vector<1x64xi1>
    %149 = vector.broadcast %148 : vector<1x64xi1> to vector<64x64xi1>
    %150 = vector.broadcast %cst_63 : f32 to vector<64x64xf32>
    %151 = arith.select %149, %150, %147 : vector<64x64xi1>, vector<64x64xf32>
    %c0_64 = arith.constant 0 : index
    %c2_65 = arith.constant 2 : index
    %152 = vector.load %arg24[%c0_64, %c2_65] : memref<64x282xf32, #tpu.memory_space<vmem>>, vector<64x64xf32>
    %cst_66 = arith.constant 0.000000e+00 : f32
    %153 = vector.shape_cast %146 : vector<1x64xi1> to vector<1x64xi1>
    %154 = vector.broadcast %153 : vector<1x64xi1> to vector<64x64xi1>
    %155 = vector.broadcast %cst_66 : f32 to vector<64x64xf32>
    %156 = arith.select %154, %155, %152 : vector<64x64xi1>, vector<64x64xf32>
    %157 = tpu.concatenate %151, %130, %156 in 0 : vector<64x64xf32>, vector<64x64xf32>, vector<64x64xf32> -> vector<192x64xf32>
    %158 = arith.truncf %157 : vector<192x64xf32> to vector<192x64xbf16>
    %cst_67 = arith.constant dense<0.000000e+00> : vector<8x64xf32>
    %159 = tpu.matmul %122, %158, %cst_67 {dimension_numbers = #tpu.dot_dimension_numbers<[1], [0], [0], [1], [0, 0, 1, 1], [], []>} : vector<8x192xbf16>, vector<192x64xbf16>, vector<8x64xf32> -> vector<8x64xf32>
    %c0_68 = arith.constant 0 : index
    %c0_69 = arith.constant 0 : index
    %160 = vector.load %arg22[%c0_68, %c0_69] : memref<64x280xbf16, #tpu.memory_space<vmem>>, vector<64x280xbf16>
    %161 = arith.truncf %159 : vector<8x64xf32> to vector<8x64xbf16>
    %cst_70 = arith.constant dense<0.000000e+00> : vector<8x280xf32>
    %162 = tpu.matmul %161, %160, %cst_70 {dimension_numbers = #tpu.dot_dimension_numbers<[1], [0], [0], [1], [0, 0, 1, 1], [], []>} : vector<8x64xbf16>, vector<64x280xbf16>, vector<8x280xf32> -> vector<8x280xf32>
    %163 = arith.addf %162, %1 : vector<8x280xf32>
    %c0_71 = arith.constant 0 : index
    %c0_72 = arith.constant 0 : index
    %164 = vector.load %arg10[%c0_71, %c0_72] : memref<8x24xbf16, #tpu.memory_space<vmem>>, vector<8x24xbf16>
    %c0_73 = arith.constant 0 : index
    %c0_74 = arith.constant 0 : index
    %165 = vector.load %arg15[%c0_73, %c0_74] : memref<8x1xf32, #tpu.memory_space<vmem>>, vector<8x1xf32>
    %c0_75 = arith.constant 0 : index
    %c0_76 = arith.constant 0 : index
    %166 = vector.load %arg16[%c0_75, %c0_76] : memref<8x1xf32, #tpu.memory_space<vmem>>, vector<8x1xf32>
    %167 = vector.broadcast %165 : vector<8x1xf32> to vector<8x280xf32>
    %168 = arith.mulf %163, %167 : vector<8x280xf32>
    %169 = vector.broadcast %166 : vector<8x1xf32> to vector<8x280xf32>
    %170 = arith.addf %168, %169 : vector<8x280xf32>
    %cst_77 = arith.constant 0.000000e+00 : f32
    %171 = vector.broadcast %cst_77 : f32 to vector<8x280xf32>
    %172 = arith.maximumf %170, %171 : vector<8x280xf32>
    %c0_78 = arith.constant 0 : index
    %c1_79 = arith.constant 1 : index
    %173 = vector.load %arg24[%c0_78, %c1_79] : memref<64x282xf32, #tpu.memory_space<vmem>>, vector<8x280xf32>
    tpu.vector_store %arg24[%c0_78, %c1_79], %172 {strides = array<i32>} : memref<64x282xf32, #tpu.memory_space<vmem>>, vector<8x280xf32>,
    %174 = tpu.iota {dimensions = array<i32: 1>} : vector<1x280xi32>
    %false_80 = arith.constant false
    %175 = vector.broadcast %false_80 : i1 to vector<1x280xi1>
    %false_81 = arith.constant false
    %176 = vector.broadcast %false_81 : i1 to vector<1x280xi1>
    %c0_i32_82 = arith.constant 0 : i32
    %177 = vector.broadcast %c0_i32_82 : i32 to vector<1x280xi32>
    %178 = arith.cmpi eq, %174, %177 : vector<1x280xi32>
    %179 = arith.ori %175, %178 : vector<1x280xi1>
    %c139_i32 = arith.constant 139 : i32
    %180 = vector.broadcast %c139_i32 : i32 to vector<1x280xi32>
    %181 = arith.cmpi eq, %174, %180 : vector<1x280xi32>
    %182 = arith.ori %176, %181 : vector<1x280xi1>
    %c140_i32 = arith.constant 140 : i32
    %183 = vector.broadcast %c140_i32 : i32 to vector<1x280xi32>
    %184 = arith.cmpi eq, %174, %183 : vector<1x280xi32>
    %185 = arith.ori %179, %184 : vector<1x280xi1>
    %c279_i32 = arith.constant 279 : i32
    %186 = vector.broadcast %c279_i32 : i32 to vector<1x280xi32>
    %187 = arith.cmpi eq, %174, %186 : vector<1x280xi32>
    %188 = arith.ori %182, %187 : vector<1x280xi1>
    %c0_83 = arith.constant 0 : index
    %c0_84 = arith.constant 0 : index
    %189 = vector.load %arg24[%c0_83, %c0_84] : memref<64x282xf32, #tpu.memory_space<vmem>>, vector<8x280xf32>
    %cst_85 = arith.constant 0.000000e+00 : f32
    %190 = vector.shape_cast %185 : vector<1x280xi1> to vector<1x280xi1>
    %191 = vector.broadcast %190 : vector<1x280xi1> to vector<8x280xi1>
    %192 = vector.broadcast %cst_85 : f32 to vector<8x280xf32>
    %193 = arith.select %191, %192, %189 : vector<8x280xi1>, vector<8x280xf32>
    %c0_86 = arith.constant 0 : index
    %c2_87 = arith.constant 2 : index
    %194 = vector.load %arg24[%c0_86, %c2_87] : memref<64x282xf32, #tpu.memory_space<vmem>>, vector<8x280xf32>
    %cst_88 = arith.constant 0.000000e+00 : f32
    %195 = vector.shape_cast %188 : vector<1x280xi1> to vector<1x280xi1>
    %196 = vector.broadcast %195 : vector<1x280xi1> to vector<8x280xi1>
    %197 = vector.broadcast %cst_88 : f32 to vector<8x280xf32>
    %198 = arith.select %196, %197, %194 : vector<8x280xi1>, vector<8x280xf32>
    %199 = tpu.concatenate %193, %172, %198 in 0 : vector<8x280xf32>, vector<8x280xf32>, vector<8x280xf32> -> vector<24x280xf32>
    %200 = arith.truncf %199 : vector<24x280xf32> to vector<24x280xbf16>
    %cst_89 = arith.constant dense<0.000000e+00> : vector<8x280xf32>
    %201 = tpu.matmul %164, %200, %cst_89 {dimension_numbers = #tpu.dot_dimension_numbers<[1], [0], [0], [1], [0, 0, 1, 1], [], []>} : vector<8x24xbf16>, vector<24x280xbf16>, vector<8x280xf32> -> vector<8x280xf32>
    %202 = vector.extract_strided_slice %201 {offsets = [0, 0], sizes = [1, 280], strides = [1, 1]} : vector<8x280xf32> to vector<1x280xf32>
    %203 = arith.negf %202 : vector<1x280xf32>
    %204 = math.exp %203 : vector<1x280xf32>
    %cst_90 = arith.constant 1.000000e+00 : f32
    %205 = vector.broadcast %cst_90 : f32 to vector<1x280xf32>
    %206 = arith.addf %205, %204 : vector<1x280xf32>
    %207 = arith.divf %205, %206 : vector<1x280xf32>
    %c0_91 = arith.constant 0 : index
    %c0_92 = arith.constant 0 : index
    %c0_93 = arith.constant 0 : index
    %208 = vector.load %arg23[%c0_91, %c0_92, %c0_93] : memref<1x1x280xf32, #tpu.memory_space<vmem>>, vector<1x1x280xf32>
    %209 = vector.shape_cast %208 : vector<1x1x280xf32> to vector<1x280xf32>
    %210 = vector.shape_cast %207 : vector<1x280xf32> to vector<1x1x280xf32>
    tpu.vector_store %arg23[%c0_91, %c0_92, %c0_93], %210 {strides = array<i32>} : memref<1x1x280xf32, #tpu.memory_space<vmem>>, vector<1x1x280xf32>,
    return
  }
  func.func @transform_0(%arg0: i32) -> (i32, i32, i32) {
    %c0_i32 = arith.constant 0 : i32
    %c0_i32_0 = arith.constant 0 : i32
    %c0_i32_1 = arith.constant 0 : i32
    return %arg0, %c0_i32, %c0_i32_0 : i32, i32, i32
  }
  func.func @transform_1(%arg0: i32) -> (i32, i32) {
    %c0_i32 = arith.constant 0 : i32
    %c0_i32_0 = arith.constant 0 : i32
    %c0_i32_1 = arith.constant 0 : i32
    return %c0_i32, %c0_i32_0 : i32, i32
  }
  func.func @transform_2(%arg0: i32) -> (i32, i32) {
    %c0_i32 = arith.constant 0 : i32
    %c0_i32_0 = arith.constant 0 : i32
    %c0_i32_1 = arith.constant 0 : i32
    return %c0_i32, %c0_i32_0 : i32, i32
  }
  func.func @transform_3(%arg0: i32) -> (i32, i32) {
    %c0_i32 = arith.constant 0 : i32
    %c0_i32_0 = arith.constant 0 : i32
    %c0_i32_1 = arith.constant 0 : i32
    return %c0_i32, %c0_i32_0 : i32, i32
  }
  func.func @transform_4(%arg0: i32) -> (i32, i32) {
    %c0_i32 = arith.constant 0 : i32
    %c0_i32_0 = arith.constant 0 : i32
    %c0_i32_1 = arith.constant 0 : i32
    return %c0_i32, %c0_i32_0 : i32, i32
  }
  func.func @transform_5(%arg0: i32) -> (i32, i32) {
    %c0_i32 = arith.constant 0 : i32
    %c0_i32_0 = arith.constant 0 : i32
    %c0_i32_1 = arith.constant 0 : i32
    return %c0_i32, %c0_i32_0 : i32, i32
  }
  func.func @transform_6(%arg0: i32) -> (i32, i32) {
    %c0_i32 = arith.constant 0 : i32
    %c0_i32_0 = arith.constant 0 : i32
    %c0_i32_1 = arith.constant 0 : i32
    return %c0_i32, %c0_i32_0 : i32, i32
  }
  func.func @transform_7(%arg0: i32) -> (i32, i32) {
    %c0_i32 = arith.constant 0 : i32
    %c0_i32_0 = arith.constant 0 : i32
    %c0_i32_1 = arith.constant 0 : i32
    return %c0_i32, %c0_i32_0 : i32, i32
  }
  func.func @transform_8(%arg0: i32) -> (i32, i32) {
    %c0_i32 = arith.constant 0 : i32
    %c0_i32_0 = arith.constant 0 : i32
    %c0_i32_1 = arith.constant 0 : i32
    return %c0_i32, %c0_i32_0 : i32, i32
  }
  func.func @transform_9(%arg0: i32) -> (i32, i32) {
    %c0_i32 = arith.constant 0 : i32
    %c0_i32_0 = arith.constant 0 : i32
    %c0_i32_1 = arith.constant 0 : i32
    return %c0_i32, %c0_i32_0 : i32, i32
  }
  func.func @transform_10(%arg0: i32) -> (i32, i32) {
    %c0_i32 = arith.constant 0 : i32
    %c0_i32_0 = arith.constant 0 : i32
    %c0_i32_1 = arith.constant 0 : i32
    return %c0_i32, %c0_i32_0 : i32, i32
  }
  func.func @transform_11(%arg0: i32) -> (i32, i32) {
    %c0_i32 = arith.constant 0 : i32
    %c0_i32_0 = arith.constant 0 : i32
    %c0_i32_1 = arith.constant 0 : i32
    return %c0_i32, %c0_i32_0 : i32, i32
  }
  func.func @transform_12(%arg0: i32) -> (i32, i32) {
    %c0_i32 = arith.constant 0 : i32
    %c0_i32_0 = arith.constant 0 : i32
    %c0_i32_1 = arith.constant 0 : i32
    return %c0_i32, %c0_i32_0 : i32, i32
  }
  func.func @transform_13(%arg0: i32) -> (i32, i32) {
    %c0_i32 = arith.constant 0 : i32
    %c0_i32_0 = arith.constant 0 : i32
    %c0_i32_1 = arith.constant 0 : i32
    return %c0_i32, %c0_i32_0 : i32, i32
  }
  func.func @transform_14(%arg0: i32) -> (i32, i32) {
    %c0_i32 = arith.constant 0 : i32
    %c0_i32_0 = arith.constant 0 : i32
    %c0_i32_1 = arith.constant 0 : i32
    return %c0_i32, %c0_i32_0 : i32, i32
  }
  func.func @transform_15(%arg0: i32) -> (i32, i32) {
    %c0_i32 = arith.constant 0 : i32
    %c0_i32_0 = arith.constant 0 : i32
    %c0_i32_1 = arith.constant 0 : i32
    return %c0_i32, %c0_i32_0 : i32, i32
  }
  func.func @transform_16(%arg0: i32) -> (i32, i32) {
    %c0_i32 = arith.constant 0 : i32
    %c0_i32_0 = arith.constant 0 : i32
    %c0_i32_1 = arith.constant 0 : i32
    return %c0_i32, %c0_i32_0 : i32, i32
  }
  func.func @transform_17(%arg0: i32) -> (i32, i32) {
    %c0_i32 = arith.constant 0 : i32
    %c0_i32_0 = arith.constant 0 : i32
    %c0_i32_1 = arith.constant 0 : i32
    return %c0_i32, %c0_i32_0 : i32, i32
  }
  func.func @transform_18(%arg0: i32) -> (i32, i32) {
    %c0_i32 = arith.constant 0 : i32
    %c0_i32_0 = arith.constant 0 : i32
    %c0_i32_1 = arith.constant 0 : i32
    return %c0_i32, %c0_i32_0 : i32, i32
  }
  func.func @transform_19(%arg0: i32) -> (i32, i32) {
    %c0_i32 = arith.constant 0 : i32
    %c0_i32_0 = arith.constant 0 : i32
    %c0_i32_1 = arith.constant 0 : i32
    return %c0_i32, %c0_i32_0 : i32, i32
  }
  func.func @transform_20(%arg0: i32) -> (i32, i32) {
    %c0_i32 = arith.constant 0 : i32
    %c0_i32_0 = arith.constant 0 : i32
    %c0_i32_1 = arith.constant 0 : i32
    return %c0_i32, %c0_i32_0 : i32, i32
  }
  func.func @transform_21(%arg0: i32) -> (i32, i32) {
    %c0_i32 = arith.constant 0 : i32
    %c0_i32_0 = arith.constant 0 : i32
    %c0_i32_1 = arith.constant 0 : i32
    return %c0_i32, %c0_i32_0 : i32, i32
  }
  func.func @transform_22(%arg0: i32) -> (i32, i32, i32) {
    %c0_i32 = arith.constant 0 : i32
    %c0_i32_0 = arith.constant 0 : i32
    %c0_i32_1 = arith.constant 0 : i32
    return %arg0, %c0_i32, %c0_i32_0 : i32, i32, i32
  }
}

</mosaic_0001>

<llo_original>
// kernel: fcn_forward.1
$region0: #{fcn_forward.1}
  #allocation0 [shape = 'u32[]', space=smem, size = 0x4, offset = 0x4, fixed_abs, tag = 'smem constant byte address 0x4 - core index']
  #allocation1 [shape = 'u32[144,128]{1,0:T(1,128)}', space=vmem, size = 0x12000, scoped, tag = 'internal scratch']
  #allocation2 [shape = 'f32[64,282]{1,0:T(8,128)}', space=vmem, size = 0x18000, scoped, tag = 'scratch operand']
  %s0 = inlined_call_operand.vmem [shape: f32[1,8,280], index: 0, kind: input, shape index: {}]
  %s1 = inlined_call_operand.vmem [shape: bf16[64,104], index: 1, kind: input, shape index: {}]
  %s2 = inlined_call_operand.vmem [shape: f32[64,1], index: 2, kind: input, shape index: {}]
  %s3 = inlined_call_operand.vmem [shape: bf16[64,320], index: 3, kind: input, shape index: {}]
  %s4 = inlined_call_operand.vmem [shape: f32[64,1], index: 4, kind: input, shape index: {}]
  %s5 = inlined_call_operand.vmem [shape: bf16[64,192], index: 5, kind: input, shape index: {}]
  %s6 = inlined_call_operand.vmem [shape: f32[64,1], index: 6, kind: input, shape index: {}]
  %s7 = inlined_call_operand.vmem [shape: bf16[64,192], index: 7, kind: input, shape index: {}]
  %s8 = inlined_call_operand.vmem [shape: bf16[8,192], index: 8, kind: input, shape index: {}]
  %s9 = inlined_call_operand.vmem [shape: bf16[8,24], index: 9, kind: input, shape index: {}]
  %s10 = inlined_call_operand.vmem [shape: f32[64,1], index: 10, kind: input, shape index: {}]
  %s11 = inlined_call_operand.vmem [shape: f32[64,1], index: 11, kind: input, shape index: {}]
  %s12 = inlined_call_operand.vmem [shape: f32[64,1], index: 12, kind: input, shape index: {}]
  %s13 = inlined_call_operand.vmem [shape: f32[64,1], index: 13, kind: input, shape index: {}]
  %s14 = inlined_call_operand.vmem [shape: f32[8,1], index: 14, kind: input, shape index: {}]
  %s15 = inlined_call_operand.vmem [shape: f32[8,1], index: 15, kind: input, shape index: {}]
  %s16 = inlined_call_operand.vmem [shape: bf16[265,64], index: 16, kind: input, shape index: {}]
  %s17 = inlined_call_operand.vmem [shape: bf16[57,14], index: 17, kind: input, shape index: {}]
  %s18 = inlined_call_operand.vmem [shape: bf16[11,4], index: 18, kind: input, shape index: {}]
  %s19 = inlined_call_operand.vmem [shape: bf16[4,14], index: 19, kind: input, shape index: {}]
  %s20 = inlined_call_operand.vmem [shape: bf16[14,64], index: 20, kind: input, shape index: {}]
  %s21 = inlined_call_operand.vmem [shape: bf16[64,280], index: 21, kind: input, shape index: {}]
  %s22 = inlined_call_operand.vmem [shape: f32[1,1,280], index: 22, kind: output, shape index: {}]
  %s23 = sld [smem:[#allocation0]]
  $region98: #{fcn_forward.1} parent=0
    _
  %s25 = ssub.s32 1, %s23
  %s26 = scalar_select 0, %s25, %s23
  // Predicated region
  $region2: #{fcn_forward.1} parent=0 // pred_check
    _
  $region3: #{fcn_forward.1} parent=0 // pred_check_branch
    %28 = sbr.rel (0) target = $region5
  $region4: #{fcn_forward.1} parent=0 // pred_region
    _
  $region5: #{fcn_forward.1} parent=0 // pred_fallthru
    _
  // Predicated region
  $region6: #{fcn_forward.1} parent=0 // pred_check
    _
  $region7: #{fcn_forward.1} parent=0 // pred_check_branch
    %30 = sbr.rel (0) target = $region9
  $region8: #{fcn_forward.1} parent=0 // pred_region
    _
  $region9: #{fcn_forward.1} parent=0 // pred_fallthru
    _
  // Predicated region
  $region10: #{fcn_forward.1} parent=0 // pred_check
    _
  $region11: #{fcn_forward.1} parent=0 // pred_check_branch
    %32 = sbr.rel (0) target = $region13
  $region12: #{fcn_forward.1} parent=0 // pred_region
    _
  $region13: #{fcn_forward.1} parent=0 // pred_fallthru
    _
  // Predicated region
  $region14: #{fcn_forward.1} parent=0 // pred_check
    _
  $region15: #{fcn_forward.1} parent=0 // pred_check_branch
    %34 = sbr.rel (0) target = $region17
  $region16: #{fcn_forward.1} parent=0 // pred_region
    _
  $region17: #{fcn_forward.1} parent=0 // pred_fallthru
    _
  // Predicated region
  $region18: #{fcn_forward.1} parent=0 // pred_check
    _
  $region19: #{fcn_forward.1} parent=0 // pred_check_branch
    %36 = sbr.rel (0) target = $region21
  $region20: #{fcn_forward.1} parent=0 // pred_region
    _
  $region21: #{fcn_forward.1} parent=0 // pred_fallthru
    _
  // Predicated region
  $region22: #{fcn_forward.1} parent=0 // pred_check
    _
  $region23: #{fcn_forward.1} parent=0 // pred_check_branch
    %38 = sbr.rel (0) target = $region25
  $region24: #{fcn_forward.1} parent=0 // pred_region
    _
  $region25: #{fcn_forward.1} parent=0 // pred_fallthru
    _
  // Predicated region
  $region26: #{fcn_forward.1} parent=0 // pred_check
    _
  $region27: #{fcn_forward.1} parent=0 // pred_check_branch
    %40 = sbr.rel (0) target = $region29
  $region28: #{fcn_forward.1} parent=0 // pred_region
    _
  $region29: #{fcn_forward.1} parent=0 // pred_fallthru
    _
  // Predicated region
  $region30: #{fcn_forward.1} parent=0 // pred_check
    _
  $region31: #{fcn_forward.1} parent=0 // pred_check_branch
    %42 = sbr.rel (0) target = $region33
  $region32: #{fcn_forward.1} parent=0 // pred_region
    _
  $region33: #{fcn_forward.1} parent=0 // pred_fallthru
    _
  // Predicated region
  $region34: #{fcn_forward.1} parent=0 // pred_check
    _
  $region35: #{fcn_forward.1} parent=0 // pred_check_branch
    %44 = sbr.rel (0) target = $region37
  $region36: #{fcn_forward.1} parent=0 // pred_region
    _
  $region37: #{fcn_forward.1} parent=0 // pred_fallthru
    _
  // Predicated region
  $region38: #{fcn_forward.1} parent=0 // pred_check
    _
  $region39: #{fcn_forward.1} parent=0 // pred_check_branch
    %46 = sbr.rel (0) target = $region41
  $region40: #{fcn_forward.1} parent=0 // pred_region
    _
  $region41: #{fcn_forward.1} parent=0 // pred_fallthru
    _
  // Predicated region
  $region42: #{fcn_forward.1} parent=0 // pred_check
    _
  $region43: #{fcn_forward.1} parent=0 // pred_check_branch
    %48 = sbr.rel (0) target = $region45
  $region44: #{fcn_forward.1} parent=0 // pred_region
    _
  $region45: #{fcn_forward.1} parent=0 // pred_fallthru
    _
  // Predicated region
  $region46: #{fcn_forward.1} parent=0 // pred_check
    _
  $region47: #{fcn_forward.1} parent=0 // pred_check_branch
    %50 = sbr.rel (0) target = $region49
  $region48: #{fcn_forward.1} parent=0 // pred_region
    _
  $region49: #{fcn_forward.1} parent=0 // pred_fallthru
    _
  // Predicated region
  $region50: #{fcn_forward.1} parent=0 // pred_check
    _
  $region51: #{fcn_forward.1} parent=0 // pred_check_branch
    %52 = sbr.rel (0) target = $region53
  $region52: #{fcn_forward.1} parent=0 // pred_region
    _
  $region53: #{fcn_forward.1} parent=0 // pred_fallthru
    _
  // Predicated region
  $region54: #{fcn_forward.1} parent=0 // pred_check
    _
  $region55: #{fcn_forward.1} parent=0 // pred_check_branch
    %54 = sbr.rel (0) target = $region57
  $region56: #{fcn_forward.1} parent=0 // pred_region
    _
  $region57: #{fcn_forward.1} parent=0 // pred_fallthru
    _
  // Predicated region
  $region58: #{fcn_forward.1} parent=0 // pred_check
    _
  $region59: #{fcn_forward.1} parent=0 // pred_check_branch
    %56 = sbr.rel (0) target = $region61
  $region60: #{fcn_forward.1} parent=0 // pred_region
    _
  $region61: #{fcn_forward.1} parent=0 // pred_fallthru
    _
  // Predicated region
  $region62: #{fcn_forward.1} parent=0 // pred_check
    _
  $region63: #{fcn_forward.1} parent=0 // pred_check_branch
    %58 = sbr.rel (0) target = $region65
  $region64: #{fcn_forward.1} parent=0 // pred_region
    _
  $region65: #{fcn_forward.1} parent=0 // pred_fallthru
    _
  // Predicated region
  $region66: #{fcn_forward.1} parent=0 // pred_check
    _
  $region67: #{fcn_forward.1} parent=0 // pred_check_branch
    %60 = sbr.rel (0) target = $region69
  $region68: #{fcn_forward.1} parent=0 // pred_region
    _
  $region69: #{fcn_forward.1} parent=0 // pred_fallthru
    _
  // Predicated region
  $region70: #{fcn_forward.1} parent=0 // pred_check
    _
  $region71: #{fcn_forward.1} parent=0 // pred_check_branch
    %62 = sbr.rel (0) target = $region73
  $region72: #{fcn_forward.1} parent=0 // pred_region
    _
  $region73: #{fcn_forward.1} parent=0 // pred_fallthru
    _
  // Predicated region
  $region74: #{fcn_forward.1} parent=0 // pred_check
    _
  $region75: #{fcn_forward.1} parent=0 // pred_check_branch
    %64 = sbr.rel (0) target = $region77
  $region76: #{fcn_forward.1} parent=0 // pred_region
    _
  $region77: #{fcn_forward.1} parent=0 // pred_fallthru
    _
  // Predicated region
  $region78: #{fcn_forward.1} parent=0 // pred_check
    _
  $region79: #{fcn_forward.1} parent=0 // pred_check_branch
    %66 = sbr.rel (0) target = $region81
  $region80: #{fcn_forward.1} parent=0 // pred_region
    _
  $region81: #{fcn_forward.1} parent=0 // pred_fallthru
    _
  // Predicated region
  $region82: #{fcn_forward.1} parent=0 // pred_check
    _
  $region83: #{fcn_forward.1} parent=0 // pred_check_branch
    %68 = sbr.rel (0) target = $region85
  $region84: #{fcn_forward.1} parent=0 // pred_region
    _
  $region85: #{fcn_forward.1} parent=0 // pred_fallthru
    _
  // Predicated region
  $region86: #{fcn_forward.1} parent=0 // pred_check
    _
  $region87: #{fcn_forward.1} parent=0 // pred_check_branch
    %70 = sbr.rel (0) target = $region89
  $region88: #{fcn_forward.1} parent=0 // pred_region
    _
  $region89: #{fcn_forward.1} parent=0 // pred_fallthru
    _
  %v72 = vld [vmem:[%s0] sm:$0xff]
  %v73 = vld [vmem:[%s0 + $0x8] sm:$0xff]
  %v74 = vld [vmem:[%s0 + $0x10] sm:$0xff]
  %v75 = vld [vmem:[%s1] sm:$0xf]
  %v76 = vld [vmem:[%s1 + $0x4] sm:$0xf]
  %v77 = vld [vmem:[%s1 + $0x8] sm:$0xf]
  %v78 = vld [vmem:[%s1 + $0xc] sm:$0xf]
  %v79 = vld [vmem:[%s1 + $0x10] sm:$0xf]
  %v80 = vld [vmem:[%s1 + $0x14] sm:$0xf]
  %v81 = vld [vmem:[%s1 + $0x18] sm:$0xf]
  %v82 = vld [vmem:[%s1 + $0x1c] sm:$0xf]
  %86 = vrot.lane.b32.xlu0 %v72, 127
  %v87 = vpop.permute.xlu0 %86
  %88 = vrot.lane.b32.xlu0 %v73, 127
  %v89 = vpop.permute.xlu0 %88
  %90 = vrot.lane.b32.xlu0 %v74, 127
  %v91 = vpop.permute.xlu0 %90
  %vm92 = vcmask 1039360
  %v93 = vsel %vm92, %v87, %v89
  %v94 = vsel %vm92, %v89, %v91
  %98 = vrot.lane.b32.xlu0 %v72, 126
  %v99 = vpop.permute.xlu0 %98
  %100 = vrot.lane.b32.xlu0 %v73, 126
  %v101 = vpop.permute.xlu0 %100
  %102 = vrot.lane.b32.xlu0 %v74, 126
  %v103 = vpop.permute.xlu0 %102
  %vm104 = vcmask 1031168
  %v105 = vsel %vm104, %v99, %v101
  %v106 = vsel %vm104, %v101, %v103
  %110 = vrot.lane.b32.xlu0 %v72, 125
  %v111 = vpop.permute.xlu0 %110
  %112 = vrot.lane.b32.xlu0 %v73, 125
  %v113 = vpop.permute.xlu0 %112
  %114 = vrot.lane.b32.xlu0 %v74, 125
  %v115 = vpop.permute.xlu0 %114
  %vm116 = vcmask 1022976
  %v117 = vsel %vm116, %v111, %v113
  %v118 = vsel %vm116, %v113, %v115
  %122 = vrot.lane.b32.xlu0 %v72, 124
  %v123 = vpop.permute.xlu0 %122
  %124 = vrot.lane.b32.xlu0 %v73, 124
  %v125 = vpop.permute.xlu0 %124
  %126 = vrot.lane.b32.xlu0 %v74, 124
  %v127 = vpop.permute.xlu0 %126
  %vm128 = vcmask 1014784
  %v129 = vsel %vm128, %v123, %v125
  %v130 = vsel %vm128, %v125, %v127
  %134 = vrot.lane.b32.xlu0 %v72, 123
  %v135 = vpop.permute.xlu0 %134
  %136 = vrot.lane.b32.xlu0 %v73, 123
  %v137 = vpop.permute.xlu0 %136
  %138 = vrot.lane.b32.xlu0 %v74, 123
  %v139 = vpop.permute.xlu0 %138
  %vm140 = vcmask 1006592
  %v141 = vsel %vm140, %v135, %v137
  %v142 = vsel %vm140, %v137, %v139
  %146 = vrot.lane.b32.xlu0 %v72, 122
  %v147 = vpop.permute.xlu0 %146
  %148 = vrot.lane.b32.xlu0 %v73, 122
  %v149 = vpop.permute.xlu0 %148
  %150 = vrot.lane.b32.xlu0 %v74, 122
  %v151 = vpop.permute.xlu0 %150
  %vm152 = vcmask 998400
  %v153 = vsel %vm152, %v147, %v149
  %v154 = vsel %vm152, %v149, %v151
  %158 = vrot.lane.b32.xlu0 %v72, 121
  %v159 = vpop.permute.xlu0 %158
  %160 = vrot.lane.b32.xlu0 %v73, 121
  %v161 = vpop.permute.xlu0 %160
  %162 = vrot.lane.b32.xlu0 %v74, 121
  %v163 = vpop.permute.xlu0 %162
  %vm164 = vcmask 990208
  %v165 = vsel %vm164, %v159, %v161
  %v166 = vsel %vm164, %v161, %v163
  %170 = vrot.lane.b32.xlu0 %v72, 120
  %v171 = vpop.permute.xlu0 %170
  %172 = vrot.lane.b32.xlu0 %v73, 120
  %v173 = vpop.permute.xlu0 %172
  %174 = vrot.lane.b32.xlu0 %v74, 120
  %v175 = vpop.permute.xlu0 %174
  %vm176 = vcmask 982016
  %v177 = vsel %vm176, %v171, %v173
  %v178 = vsel %vm176, %v173, %v175
  %182 = vrot.lane.b32.xlu0 %v72, 119
  %v183 = vpop.permute.xlu0 %182
  %184 = vrot.lane.b32.xlu0 %v73, 119
  %v185 = vpop.permute.xlu0 %184
  %186 = vrot.lane.b32.xlu0 %v74, 119
  %v187 = vpop.permute.xlu0 %186
  %vm188 = vcmask 973824
  %v189 = vsel %vm188, %v183, %v185
  %v190 = vsel %vm188, %v185, %v187
  %194 = vrot.lane.b32.xlu0 %v72, 118
  %v195 = vpop.permute.xlu0 %194
  %196 = vrot.lane.b32.xlu0 %v73, 118
  %v197 = vpop.permute.xlu0 %196
  %198 = vrot.lane.b32.xlu0 %v74, 118
  %v199 = vpop.permute.xlu0 %198
  %vm200 = vcmask 965632
  %v201 = vsel %vm200, %v195, %v197
  %v202 = vsel %vm200, %v197, %v199
  %206 = vrot.lane.b32.xlu0 %v72, 117
  %v207 = vpop.permute.xlu0 %206
  %208 = vrot.lane.b32.xlu0 %v73, 117
  %v209 = vpop.permute.xlu0 %208
  %210 = vrot.lane.b32.xlu0 %v74, 117
  %v211 = vpop.permute.xlu0 %210
  %vm212 = vcmask 957440
  %v213 = vsel %vm212, %v207, %v209
  %v214 = vsel %vm212, %v209, %v211
  %218 = vrot.lane.b32.xlu0 %v72, 116
  %v219 = vpop.permute.xlu0 %218
  %220 = vrot.lane.b32.xlu0 %v73, 116
  %v221 = vpop.permute.xlu0 %220
  %222 = vrot.lane.b32.xlu0 %v74, 116
  %v223 = vpop.permute.xlu0 %222
  %vm224 = vcmask 949248
  %v225 = vsel %vm224, %v219, %v221
  %v226 = vsel %vm224, %v221, %v223
  %v230 = vpack.c.bf16 %v93, %v72
  %v231 = vpack.c.bf16 %v94, %v73
  %v232 = vpack.c.bf16 %v91, %v74
  %v233 = vpack.c.bf16 %v117, %v105
  %v234 = vpack.c.bf16 %v118, %v106
  %v235 = vpack.c.bf16 %v115, %v103
  %v236 = vpack.c.bf16 %v141, %v129
  %v237 = vpack.c.bf16 %v142, %v130
  %v238 = vpack.c.bf16 %v139, %v127
  %v239 = vpack.c.bf16 %v165, %v153
  %v240 = vpack.c.bf16 %v166, %v154
  %v241 = vpack.c.bf16 %v163, %v151
  %v242 = vpack.c.bf16 %v189, %v177
  %v243 = vpack.c.bf16 %v190, %v178
  %v244 = vpack.c.bf16 %v187, %v175
  %v245 = vpack.c.bf16 %v213, %v201
  %v246 = vpack.c.bf16 %v214, %v202
  %v247 = vpack.c.bf16 %v211, %v199
  %v248 = vpack.c.bf16 %v225, %v225
  %v249 = vpack.c.bf16 %v226, %v226
  %v250 = vpack.c.bf16 %v223, %v223
  %v251 = vld [vmem:[%s2] sm:$0xff]
  %v252 = vld [vmem:[%s2 + $0x8] sm:$0xff]
  %v253 = vld [vmem:[%s2 + $0x10] sm:$0xff]
  %v254 = vld [vmem:[%s2 + $0x18] sm:$0xff]
  %v255 = vld [vmem:[%s2 + $0x20] sm:$0xff]
  %v256 = vld [vmem:[%s2 + $0x28] sm:$0xff]
  %v257 = vld [vmem:[%s2 + $0x30] sm:$0xff]
  %v258 = vld [vmem:[%s2 + $0x38] sm:$0xff]
  %260 = vset.pattern.permute.xlu0 0
  %261 = vperm.xlu0 %260, %v251
  %v262 = vpop.permute.xlu0 %261
  %265 = vset.pattern.permute.xlu0 0
  %266 = vperm.xlu0 %265, %v252
  %v267 = vpop.permute.xlu0 %266
  %270 = vset.pattern.permute.xlu0 0
  %271 = vperm.xlu0 %270, %v253
  %v272 = vpop.permute.xlu0 %271
  %275 = vset.pattern.permute.xlu0 0
  %276 = vperm.xlu0 %275, %v254
  %v277 = vpop.permute.xlu0 %276
  %280 = vset.pattern.permute.xlu0 0
  %281 = vperm.xlu0 %280, %v255
  %v282 = vpop.permute.xlu0 %281
  %285 = vset.pattern.permute.xlu0 0
  %286 = vperm.xlu0 %285, %v256
  %v287 = vpop.permute.xlu0 %286
  %290 = vset.pattern.permute.xlu0 0
  %291 = vperm.xlu0 %290, %v257
  %v292 = vpop.permute.xlu0 %291
  %295 = vset.pattern.permute.xlu0 0
  %296 = vperm.xlu0 %295, %v258
  %v297 = vpop.permute.xlu0 %296
  %v307 = vunpack.c.l.b16 %v75
  %v308 = vunpack.c.l.b16 %v76
  %v309 = vunpack.c.l.b16 %v77
  %v310 = vunpack.c.l.b16 %v78
  %v311 = vunpack.c.l.b16 %v79
  %v312 = vunpack.c.l.b16 %v80
  %v313 = vunpack.c.l.b16 %v81
  %v314 = vunpack.c.l.b16 %v82
  %v315 = vpack.c.b16 %v308, %v307
  %v316 = vpack.c.b16 %v310, %v309
  %v317 = vpack.c.b16 %v312, %v311
  %v318 = vpack.c.b16 %v314, %v313
  %vm319 = vcmask 850944
  %v321 = vsel %vm319, %v315, 0
  %v324 = vsel %vm319, %v316, 0
  %v327 = vsel %vm319, %v317, 0
  %v330 = vsel %vm319, %v318, 0
  %vm332 = vcmask 1043456
  %v334 = vsel %vm332, %v248, 0
  %v337 = vsel %vm332, %v249, 0
  %v340 = vsel %vm332, %v250, 0
  %342 = vmatprep.subr.bf16.mxu0 %v231
  %343 = vmatpush1.bf16.msra.mxu0 %v230
  %344 = vmatprep.subr.bf16.mxu0 %v234
  %345 = vmatpush1.bf16.msra.mxu0 %v233
  %346 = vmatprep.subr.bf16.mxu0 %v237
  %347 = vmatpush1.bf16.msra.mxu0 %v236
  %348 = vmatprep.subr.bf16.mxu0 %v240
  %349 = vmatpush1.bf16.msra.mxu0 %v239
  %350 = vmatprep.subr.bf16.mxu0 %v243
  %351 = vmatpush1.bf16.msra.mxu0 %v242
  %352 = vmatprep.subr.bf16.mxu0 %v246
  %353 = vmatpush1.bf16.msra.mxu0 %v245
  %354 = vmatprep.subr.bf16.mxu0 %v337
  %355 = vmatpush1.bf16.msra.mxu0 %v334
  %356 = vmatprep.subr.bf16.mxu0 0
  %357 = vmatpush1.bf16.msra.mxu0 0
  %358 = vmatprep.subr.bf16.mxu0 0
  %359 = vmatpush1.bf16.msra.mxu0 0
  %360 = vmatprep.subr.bf16.mxu0 0
  %361 = vmatpush1.bf16.msra.mxu0 0
  %362 = vmatprep.subr.bf16.mxu0 0
  %363 = vmatpush1.bf16.msra.mxu0 0
  %364 = vmatprep.subr.bf16.mxu0 0
  %365 = vmatpush1.bf16.msra.mxu0 0
  %366 = vmatprep.subr.bf16.mxu0 0
  %367 = vmatpush1.bf16.msra.mxu0 0
  %368 = vmatprep.subr.bf16.mxu0 0
  %369 = vmatpush1.bf16.msra.mxu0 0
  %370 = vmatprep.subr.bf16.mxu0 0
  %371 = vmatpush1.bf16.msra.mxu0 0
  %372 = vmatprep.subr.bf16.mxu0 0
  %373 = vmatpush1.bf16.msra.mxu0 0
  %374 = vmatprep.mubr.bf16.mxu0 0
  %375 = vmatmul.mubr.bf16.gmra.mrb[0].mxu0 %v321
  %v376 = vpop.f32.mrb[0].mxu0
  %v377 = vadd.f32 %v262, %v376
  %v378 = vpop.f32.mrb[0].mxu0
  %v379 = vadd.f32 %v262, %v378
  %v380 = vpop.f32.mrb[0].mxu0
  %v381 = vadd.f32 %v267, %v380
  %v382 = vpop.f32.mrb[0].mxu0
  %v383 = vadd.f32 %v267, %v382
  %384 = vmatprep.mubr.bf16.mxu0 0
  %385 = vmatmul.mubr.bf16.gmra.mrb[0].mxu0 %v324
  %v386 = vpop.f32.mrb[0].mxu0
  %v387 = vadd.f32 %v272, %v386
  %v388 = vpop.f32.mrb[0].mxu0
  %v389 = vadd.f32 %v272, %v388
  %v390 = vpop.f32.mrb[0].mxu0
  %v391 = vadd.f32 %v277, %v390
  %v392 = vpop.f32.mrb[0].mxu0
  %v393 = vadd.f32 %v277, %v392
  %394 = vmatprep.mubr.bf16.mxu0 0
  %395 = vmatmul.mubr.bf16.gmra.mrb[0].mxu0 %v327
  %v396 = vpop.f32.mrb[0].mxu0
  %v397 = vadd.f32 %v282, %v396
  %v398 = vpop.f32.mrb[0].mxu0
  %v399 = vadd.f32 %v282, %v398
  %v400 = vpop.f32.mrb[0].mxu0
  %v401 = vadd.f32 %v287, %v400
  %v402 = vpop.f32.mrb[0].mxu0
  %v403 = vadd.f32 %v287, %v402
  %404 = vmatprep.mubr.bf16.mxu0 0
  %405 = vmatmul.mubr.bf16.gmra.mrb[0].mxu0 %v330
  %v406 = vpop.f32.mrb[0].mxu0
  %v407 = vadd.f32 %v292, %v406
  %v408 = vpop.f32.mrb[0].mxu0
  %v409 = vadd.f32 %v292, %v408
  %v410 = vpop.f32.mrb[0].mxu0
  %v411 = vadd.f32 %v297, %v410
  %v412 = vpop.f32.mrb[0].mxu0
  %v413 = vadd.f32 %v297, %v412
  %414 = vdwg.mxu0
  %415 = vmatprep.subr.bf16.mxu0 0
  %416 = vmatpush1.bf16.msra.mxu0 %v232
  %417 = vmatprep.subr.bf16.mxu0 0
  %418 = vmatpush1.bf16.msra.mxu0 %v235
  %419 = vmatprep.subr.bf16.mxu0 0
  %420 = vmatpush1.bf16.msra.mxu0 %v238
  %421 = vmatprep.subr.bf16.mxu0 0
  %422 = vmatpush1.bf16.msra.mxu0 %v241
  %423 = vmatprep.subr.bf16.mxu0 0
  %424 = vmatpush1.bf16.msra.mxu0 %v244
  %425 = vmatprep.subr.bf16.mxu0 0
  %426 = vmatpush1.bf16.msra.mxu0 %v247
  %427 = vmatprep.subr.bf16.mxu0 0
  %428 = vmatpush1.bf16.msra.mxu0 %v340
  %429 = vmatprep.subr.bf16.mxu0 0
  %430 = vmatpush1.bf16.msra.mxu0 0
  %431 = vmatprep.subr.bf16.mxu0 0
  %432 = vmatpush1.bf16.msra.mxu0 0
  %433 = vmatprep.subr.bf16.mxu0 0
  %434 = vmatpush1.bf16.msra.mxu0 0
  %435 = vmatprep.subr.bf16.mxu0 0
  %436 = vmatpush1.bf16.msra.mxu0 0
  %437 = vmatprep.subr.bf16.mxu0 0
  %438 = vmatpush1.bf16.msra.mxu0 0
  %439 = vmatprep.subr.bf16.mxu0 0
  %440 = vmatpush1.bf16.msra.mxu0 0
  %441 = vmatprep.subr.bf16.mxu0 0
  %442 = vmatpush1.bf16.msra.mxu0 0
  %443 = vmatprep.subr.bf16.mxu0 0
  %444 = vmatpush1.bf16.msra.mxu0 0
  %445 = vmatprep.subr.bf16.mxu0 0
  %446 = vmatpush1.bf16.msra.mxu0 0
  %447 = vmatprep.mubr.bf16.mxu0 0
  %448 = vmatmul.mubr.bf16.gmra.mrb[0].mxu0 %v321
  %v449 = vpop.f32.mrb[0].mxu0
  %v450 = vadd.f32 %v262, %v449
  %v451 = vpop.f32.mrb[0].mxu0
  %v452 = vpop.f32.mrb[0].mxu0
  %v453 = vadd.f32 %v267, %v452
  %v454 = vpop.f32.mrb[0].mxu0
  %455 = vmatprep.mubr.bf16.mxu0 0
  %456 = vmatmul.mubr.bf16.gmra.mrb[0].mxu0 %v324
  %v457 = vpop.f32.mrb[0].mxu0
  %v458 = vadd.f32 %v272, %v457
  %v459 = vpop.f32.mrb[0].mxu0
  %v460 = vpop.f32.mrb[0].mxu0
  %v461 = vadd.f32 %v277, %v460
  %v462 = vpop.f32.mrb[0].mxu0
  %463 = vmatprep.mubr.bf16.mxu0 0
  %464 = vmatmul.mubr.bf16.gmra.mrb[0].mxu0 %v327
  %v465 = vpop.f32.mrb[0].mxu0
  %v466 = vadd.f32 %v282, %v465
  %v467 = vpop.f32.mrb[0].mxu0
  %v468 = vpop.f32.mrb[0].mxu0
  %v469 = vadd.f32 %v287, %v468
  %v470 = vpop.f32.mrb[0].mxu0
  %471 = vmatprep.mubr.bf16.mxu0 0
  %472 = vmatmul.mubr.bf16.gmra.mrb[0].mxu0 %v330
  %v473 = vpop.f32.mrb[0].mxu0
  %v474 = vadd.f32 %v292, %v473
  %v475 = vpop.f32.mrb[0].mxu0
  %v476 = vpop.f32.mrb[0].mxu0
  %v477 = vadd.f32 %v297, %v476
  %v478 = vpop.f32.mrb[0].mxu0
  %479 = vdwg.mxu0
  %v480 = vmax.f32 %v377, 0.0
  %v481 = vmax.f32 %v379, 0.0
  %v482 = vmax.f32 %v450, 0.0
  %v483 = vmax.f32 %v381, 0.0
  %v484 = vmax.f32 %v383, 0.0
  %v485 = vmax.f32 %v453, 0.0
  %v486 = vmax.f32 %v387, 0.0
  %v487 = vmax.f32 %v389, 0.0
  %v488 = vmax.f32 %v458, 0.0
  %v489 = vmax.f32 %v391, 0.0
  %v490 = vmax.f32 %v393, 0.0
  %v491 = vmax.f32 %v461, 0.0
  %v492 = vmax.f32 %v397, 0.0
  %v493 = vmax.f32 %v399, 0.0
  %v494 = vmax.f32 %v466, 0.0
  %v495 = vmax.f32 %v401, 0.0
  %v496 = vmax.f32 %v403, 0.0
  %v497 = vmax.f32 %v469, 0.0
  %v498 = vmax.f32 %v407, 0.0
  %v499 = vmax.f32 %v409, 0.0
  %v500 = vmax.f32 %v474, 0.0
  %v501 = vmax.f32 %v411, 0.0
  %v502 = vmax.f32 %v413, 0.0
  %v503 = vmax.f32 %v477, 0.0
  %v504 = vld [vmem:[%s16] sm:$0xf]
  %v505 = vld [vmem:[%s16 + $0x4] sm:$0xf]
  %v506 = vld [vmem:[%s16 + $0x8] sm:$0xf]
  %v507 = vld [vmem:[%s16 + $0xc] sm:$0xf]
  %v508 = vld [vmem:[%s16 + $0x10] sm:$0xf]
  %v509 = vld [vmem:[%s16 + $0x14] sm:$0xf]
  %v510 = vld [vmem:[%s16 + $0x18] sm:$0xf]
  %v511 = vld [vmem:[%s16 + $0x1c] sm:$0xf]
  %v512 = vld [vmem:[%s16 + $0x20] sm:$0xf]
  %v513 = vld [vmem:[%s16 + $0x24] sm:$0xf]
  %v514 = vld [vmem:[%s16 + $0x28] sm:$0xf]
  %v515 = vld [vmem:[%s16 + $0x2c] sm:$0xf]
  %v516 = vld [vmem:[%s16 + $0x30] sm:$0xf]
  %v517 = vld [vmem:[%s16 + $0x34] sm:$0xf]
  %v518 = vld [vmem:[%s16 + $0x38] sm:$0xf]
  %v519 = vld [vmem:[%s16 + $0x3c] sm:$0xf]
  %v520 = vld [vmem:[%s16 + $0x40] sm:$0xf]
  %v521 = vld [vmem:[%s16 + $0x44] sm:$0xf]
  %v522 = vld [vmem:[%s16 + $0x48] sm:$0xf]
  %v523 = vld [vmem:[%s16 + $0x4c] sm:$0xf]
  %v524 = vld [vmem:[%s16 + $0x50] sm:$0xf]
  %v525 = vld [vmem:[%s16 + $0x54] sm:$0xf]
  %v526 = vld [vmem:[%s16 + $0x58] sm:$0xf]
  %v527 = vld [vmem:[%s16 + $0x5c] sm:$0xf]
  %v528 = vld [vmem:[%s16 + $0x60] sm:$0xf]
  %v529 = vld [vmem:[%s16 + $0x64] sm:$0xf]
  %v530 = vld [vmem:[%s16 + $0x68] sm:$0xf]
  %v531 = vld [vmem:[%s16 + $0x6c] sm:$0xf]
  %v532 = vld [vmem:[%s16 + $0x70] sm:$0xf]
  %v533 = vld [vmem:[%s16 + $0x74] sm:$0xf]
  %v534 = vld [vmem:[%s16 + $0x78] sm:$0xf]
  %v535 = vld [vmem:[%s16 + $0x7c] sm:$0xf]
  %v536 = vld [vmem:[%s16 + $0x80] sm:$0xf]
  %v537 = vld [vmem:[%s16 + $0x84] sm:$0x1]
  %562 = vrot.lane.b32.xlu0 %v480, 127
  %v563 = vpop.permute.xlu0 %562
  %564 = vrot.lane.b32.xlu0 %v481, 127
  %v565 = vpop.permute.xlu0 %564
  %566 = vrot.lane.b32.xlu0 %v482, 127
  %v567 = vpop.permute.xlu0 %566
  %568 = vrot.lane.b32.xlu0 %v483, 127
  %v569 = vpop.permute.xlu0 %568
  %570 = vrot.lane.b32.xlu0 %v484, 127
  %v571 = vpop.permute.xlu0 %570
  %572 = vrot.lane.b32.xlu0 %v485, 127
  %v573 = vpop.permute.xlu0 %572
  %574 = vrot.lane.b32.xlu0 %v486, 127
  %v575 = vpop.permute.xlu0 %574
  %576 = vrot.lane.b32.xlu0 %v487, 127
  %v577 = vpop.permute.xlu0 %576
  %578 = vrot.lane.b32.xlu0 %v488, 127
  %v579 = vpop.permute.xlu0 %578
  %580 = vrot.lane.b32.xlu0 %v489, 127
  %v581 = vpop.permute.xlu0 %580
  %582 = vrot.lane.b32.xlu0 %v490, 127
  %v583 = vpop.permute.xlu0 %582
  %584 = vrot.lane.b32.xlu0 %v491, 127
  %v585 = vpop.permute.xlu0 %584
  %586 = vrot.lane.b32.xlu0 %v492, 127
  %v587 = vpop.permute.xlu0 %586
  %588 = vrot.lane.b32.xlu0 %v493, 127
  %v589 = vpop.permute.xlu0 %588
  %590 = vrot.lane.b32.xlu0 %v494, 127
  %v591 = vpop.permute.xlu0 %590
  %592 = vrot.lane.b32.xlu0 %v495, 127
  %v593 = vpop.permute.xlu0 %592
  %594 = vrot.lane.b32.xlu0 %v496, 127
  %v595 = vpop.permute.xlu0 %594
  %596 = vrot.lane.b32.xlu0 %v497, 127
  %v597 = vpop.permute.xlu0 %596
  %598 = vrot.lane.b32.xlu0 %v498, 127
  %v599 = vpop.permute.xlu0 %598
  %600 = vrot.lane.b32.xlu0 %v499, 127
  %v601 = vpop.permute.xlu0 %600
  %602 = vrot.lane.b32.xlu0 %v500, 127
  %v603 = vpop.permute.xlu0 %602
  %604 = vrot.lane.b32.xlu0 %v501, 127
  %v605 = vpop.permute.xlu0 %604
  %606 = vrot.lane.b32.xlu0 %v502, 127
  %v607 = vpop.permute.xlu0 %606
  %608 = vrot.lane.b32.xlu0 %v503, 127
  %v609 = vpop.permute.xlu0 %608
  %v610 = vsel %vm92, %v563, %v565
  %v611 = vsel %vm92, %v565, %v567
  %v612 = vsel %vm92, %v569, %v571
  %v613 = vsel %vm92, %v571, %v573
  %v614 = vsel %vm92, %v575, %v577
  %v615 = vsel %vm92, %v577, %v579
  %v616 = vsel %vm92, %v581, %v583
  %v617 = vsel %vm92, %v583, %v585
  %v618 = vsel %vm92, %v587, %v589
  %v619 = vsel %vm92, %v589, %v591
  %v620 = vsel %vm92, %v593, %v595
  %v621 = vsel %vm92, %v595, %v597
  %v622 = vsel %vm92, %v599, %v601
  %v623 = vsel %vm92, %v601, %v603
  %v624 = vsel %vm92, %v605, %v607
  %v625 = vsel %vm92, %v607, %v609
  %v650 = vmax.f32 %v480, %v610
  %v651 = vmax.f32 %v481, %v611
  %v652 = vmax.f32 %v482, %v567
  %v653 = vmax.f32 %v483, %v612
  %v654 = vmax.f32 %v484, %v613
  %v655 = vmax.f32 %v485, %v573
  %v656 = vmax.f32 %v486, %v614
  %v657 = vmax.f32 %v487, %v615
  %v658 = vmax.f32 %v488, %v579
  %v659 = vmax.f32 %v489, %v616
  %v660 = vmax.f32 %v490, %v617
  %v661 = vmax.f32 %v491, %v585
  %v662 = vmax.f32 %v492, %v618
  %v663 = vmax.f32 %v493, %v619
  %v664 = vmax.f32 %v494, %v591
  %v665 = vmax.f32 %v495, %v620
  %v666 = vmax.f32 %v496, %v621
  %v667 = vmax.f32 %v497, %v597
  %v668 = vmax.f32 %v498, %v622
  %v669 = vmax.f32 %v499, %v623
  %v670 = vmax.f32 %v500, %v603
  %v671 = vmax.f32 %v501, %v624
  %v672 = vmax.f32 %v502, %v625
  %v673 = vmax.f32 %v503, %v609
  %674 = vrot.lane.b32.xlu0 %v480, 126
  %v675 = vpop.permute.xlu0 %674
  %676 = vrot.lane.b32.xlu0 %v481, 126
  %v677 = vpop.permute.xlu0 %676
  %678 = vrot.lane.b32.xlu0 %v482, 126
  %v679 = vpop.permute.xlu0 %678
  %680 = vrot.lane.b32.xlu0 %v483, 126
  %v681 = vpop.permute.xlu0 %680
  %682 = vrot.lane.b32.xlu0 %v484, 126
  %v683 = vpop.permute.xlu0 %682
  %684 = vrot.lane.b32.xlu0 %v485, 126
  %v685 = vpop.permute.xlu0 %684
  %686 = vrot.lane.b32.xlu0 %v486, 126
  %v687 = vpop.permute.xlu0 %686
  %688 = vrot.lane.b32.xlu0 %v487, 126
  %v689 = vpop.permute.xlu0 %688
  %690 = vrot.lane.b32.xlu0 %v488, 126
  %v691 = vpop.permute.xlu0 %690
  %692 = vrot.lane.b32.xlu0 %v489, 126
  %v693 = vpop.permute.xlu0 %692
  %694 = vrot.lane.b32.xlu0 %v490, 126
  %v695 = vpop.permute.xlu0 %694
  %696 = vrot.lane.b32.xlu0 %v491, 126
  %v697 = vpop.permute.xlu0 %696
  %698 = vrot.lane.b32.xlu0 %v492, 126
  %v699 = vpop.permute.xlu0 %698
  %700 = vrot.lane.b32.xlu0 %v493, 126
  %v701 = vpop.permute.xlu0 %700
  %702 = vrot.lane.b32.xlu0 %v494, 126
  %v703 = vpop.permute.xlu0 %702
  %704 = vrot.lane.b32.xlu0 %v495, 126
  %v705 = vpop.permute.xlu0 %704
  %706 = vrot.lane.b32.xlu0 %v496, 126
  %v707 = vpop.permute.xlu0 %706
  %708 = vrot.lane.b32.xlu0 %v497, 126
  %v709 = vpop.permute.xlu0 %708
  %710 = vrot.lane.b32.xlu0 %v498, 126
  %v711 = vpop.permute.xlu0 %710
  %712 = vrot.lane.b32.xlu0 %v499, 126
  %v713 = vpop.permute.xlu0 %712
  %714 = vrot.lane.b32.xlu0 %v500, 126
  %v715 = vpop.permute.xlu0 %714
  %716 = vrot.lane.b32.xlu0 %v501, 126
  %v717 = vpop.permute.xlu0 %716
  %718 = vrot.lane.b32.xlu0 %v502, 126
  %v719 = vpop.permute.xlu0 %718
  %720 = vrot.lane.b32.xlu0 %v503, 126
  %v721 = vpop.permute.xlu0 %720
  %v722 = vsel %vm104, %v675, %v677
  %v723 = vsel %vm104, %v677, %v679
  %v724 = vsel %vm104, %v681, %v683
  %v725 = vsel %vm104, %v683, %v685
  %v726 = vsel %vm104, %v687, %v689
  %v727 = vsel %vm104, %v689, %v691
  %v728 = vsel %vm104, %v693, %v695
  %v729 = vsel %vm104, %v695, %v697
  %v730 = vsel %vm104, %v699, %v701
  %v731 = vsel %vm104, %v701, %v703
  %v732 = vsel %vm104, %v705, %v707
  %v733 = vsel %vm104, %v707, %v709
  %v734 = vsel %vm104, %v711, %v713
  %v735 = vsel %vm104, %v713, %v715
  %v736 = vsel %vm104, %v717, %v719
  %v737 = vsel %vm104, %v719, %v721
  %v762 = vmax.f32 %v650, %v722
  %v763 = vmax.f32 %v651, %v723
  %v764 = vmax.f32 %v652, %v679
  %v765 = vmax.f32 %v653, %v724
  %v766 = vmax.f32 %v654, %v725
  %v767 = vmax.f32 %v655, %v685
  %v768 = vmax.f32 %v656, %v726
  %v769 = vmax.f32 %v657, %v727
  %v770 = vmax.f32 %v658, %v691
  %v771 = vmax.f32 %v659, %v728
  %v772 = vmax.f32 %v660, %v729
  %v773 = vmax.f32 %v661, %v697
  %v774 = vmax.f32 %v662, %v730
  %v775 = vmax.f32 %v663, %v731
  %v776 = vmax.f32 %v664, %v703
  %v777 = vmax.f32 %v665, %v732
  %v778 = vmax.f32 %v666, %v733
  %v779 = vmax.f32 %v667, %v709
  %v780 = vmax.f32 %v668, %v734
  %v781 = vmax.f32 %v669, %v735
  %v782 = vmax.f32 %v670, %v715
  %v783 = vmax.f32 %v671, %v736
  %v784 = vmax.f32 %v672, %v737
  %v785 = vmax.f32 %v673, %v721
  %786 = vrot.lane.b32.xlu0 %v480, 125
  %v787 = vpop.permute.xlu0 %786
  %788 = vrot.lane.b32.xlu0 %v481, 125
  %v789 = vpop.permute.xlu0 %788
  %790 = vrot.lane.b32.xlu0 %v482, 125
  %v791 = vpop.permute.xlu0 %790
  %792 = vrot.lane.b32.xlu0 %v483, 125
  %v793 = vpop.permute.xlu0 %792
  %794 = vrot.lane.b32.xlu0 %v484, 125
  %v795 = vpop.permute.xlu0 %794
  %796 = vrot.lane.b32.xlu0 %v485, 125
  %v797 = vpop.permute.xlu0 %796
  %798 = vrot.lane.b32.xlu0 %v486, 125
  %v799 = vpop.permute.xlu0 %798
  %800 = vrot.lane.b32.xlu0 %v487, 125
  %v801 = vpop.permute.xlu0 %800
  %802 = vrot.lane.b32.xlu0 %v488, 125
  %v803 = vpop.permute.xlu0 %802
  %804 = vrot.lane.b32.xlu0 %v489, 125
  %v805 = vpop.permute.xlu0 %804
  %806 = vrot.lane.b32.xlu0 %v490, 125
  %v807 = vpop.permute.xlu0 %806
  %808 = vrot.lane.b32.xlu0 %v491, 125
  %v809 = vpop.permute.xlu0 %808
  %810 = vrot.lane.b32.xlu0 %v492, 125
  %v811 = vpop.permute.xlu0 %810
  %812 = vrot.lane.b32.xlu0 %v493, 125
  %v813 = vpop.permute.xlu0 %812
  %814 = vrot.lane.b32.xlu0 %v494, 125
  %v815 = vpop.permute.xlu0 %814
  %816 = vrot.lane.b32.xlu0 %v495, 125
  %v817 = vpop.permute.xlu0 %816
  %818 = vrot.lane.b32.xlu0 %v496, 125
  %v819 = vpop.permute.xlu0 %818
  %820 = vrot.lane.b32.xlu0 %v497, 125
  %v821 = vpop.permute.xlu0 %820
  %822 = vrot.lane.b32.xlu0 %v498, 125
  %v823 = vpop.permute.xlu0 %822
  %824 = vrot.lane.b32.xlu0 %v499, 125
  %v825 = vpop.permute.xlu0 %824
  %826 = vrot.lane.b32.xlu0 %v500, 125
  %v827 = vpop.permute.xlu0 %826
  %828 = vrot.lane.b32.xlu0 %v501, 125
  %v829 = vpop.permute.xlu0 %828
  %830 = vrot.lane.b32.xlu0 %v502, 125
  %v831 = vpop.permute.xlu0 %830
  %832 = vrot.lane.b32.xlu0 %v503, 125
  %v833 = vpop.permute.xlu0 %832
  %v834 = vsel %vm116, %v787, %v789
  %v835 = vsel %vm116, %v789, %v791
  %v836 = vsel %vm116, %v793, %v795
  %v837 = vsel %vm116, %v795, %v797
  %v838 = vsel %vm116, %v799, %v801
  %v839 = vsel %vm116, %v801, %v803
  %v840 = vsel %vm116, %v805, %v807
  %v841 = vsel %vm116, %v807, %v809
  %v842 = vsel %vm116, %v811, %v813
  %v843 = vsel %vm116, %v813, %v815
  %v844 = vsel %vm116, %v817, %v819
  %v845 = vsel %vm116, %v819, %v821
  %v846 = vsel %vm116, %v823, %v825
  %v847 = vsel %vm116, %v825, %v827
  %v848 = vsel %vm116, %v829, %v831
  %v849 = vsel %vm116, %v831, %v833
  %v874 = vmax.f32 %v762, %v834
  %v875 = vmax.f32 %v763, %v835
  %v876 = vmax.f32 %v764, %v791
  %v877 = vmax.f32 %v765, %v836
  %v878 = vmax.f32 %v766, %v837
  %v879 = vmax.f32 %v767, %v797
  %v880 = vmax.f32 %v768, %v838
  %v881 = vmax.f32 %v769, %v839
  %v882 = vmax.f32 %v770, %v803
  %v883 = vmax.f32 %v771, %v840
  %v884 = vmax.f32 %v772, %v841
  %v885 = vmax.f32 %v773, %v809
  %v886 = vmax.f32 %v774, %v842
  %v887 = vmax.f32 %v775, %v843
  %v888 = vmax.f32 %v776, %v815
  %v889 = vmax.f32 %v777, %v844
  %v890 = vmax.f32 %v778, %v845
  %v891 = vmax.f32 %v779, %v821
  %v892 = vmax.f32 %v780, %v846
  %v893 = vmax.f32 %v781, %v847
  %v894 = vmax.f32 %v782, %v827
  %v895 = vmax.f32 %v783, %v848
  %v896 = vmax.f32 %v784, %v849
  %v897 = vmax.f32 %v785, %v833
  %v898 = vpack.c.bf16 %v877, %v874
  %v899 = vpack.c.bf16 %v878, %v875
  %v900 = vpack.c.bf16 %v879, %v876
  %v901 = vpack.c.bf16 %v883, %v880
  %v902 = vpack.c.bf16 %v884, %v881
  %v903 = vpack.c.bf16 %v885, %v882
  %v904 = vpack.c.bf16 %v889, %v886
  %v905 = vpack.c.bf16 %v890, %v887
  %v906 = vpack.c.bf16 %v891, %v888
  %v907 = vpack.c.bf16 %v895, %v892
  %v908 = vpack.c.bf16 %v896, %v893
  %v909 = vpack.c.bf16 %v897, %v894
  %v944 = vunpack.c.l.b16 %v504
  %v945 = vunpack.c.l.b16 %v505
  %v946 = vunpack.c.l.b16 %v506
  %v947 = vunpack.c.l.b16 %v507
  %v948 = vunpack.c.l.b16 %v508
  %v949 = vunpack.c.l.b16 %v509
  %v950 = vunpack.c.l.b16 %v510
  %v951 = vunpack.c.l.b16 %v511
  %v952 = vunpack.c.l.b16 %v512
  %v953 = vunpack.c.l.b16 %v513
  %v954 = vunpack.c.l.b16 %v514
  %v955 = vunpack.c.l.b16 %v515
  %v956 = vunpack.c.l.b16 %v516
  %v957 = vunpack.c.l.b16 %v517
  %v958 = vunpack.c.l.b16 %v518
  %v959 = vunpack.c.l.b16 %v519
  %v960 = vunpack.c.l.b16 %v520
  %v961 = vunpack.c.l.b16 %v521
  %v962 = vunpack.c.l.b16 %v522
  %v963 = vunpack.c.l.b16 %v523
  %v964 = vunpack.c.l.b16 %v524
  %v965 = vunpack.c.l.b16 %v525
  %v966 = vunpack.c.l.b16 %v526
  %v967 = vunpack.c.l.b16 %v527
  %v968 = vunpack.c.l.b16 %v528
  %v969 = vunpack.c.l.b16 %v529
  %v970 = vunpack.c.l.b16 %v530
  %v971 = vunpack.c.l.b16 %v531
  %v972 = vunpack.c.l.b16 %v532
  %v973 = vunpack.c.l.b16 %v533
  %v974 = vunpack.c.l.b16 %v534
  %v975 = vunpack.c.l.b16 %v535
  %v976 = vunpack.c.l.b16 %v536
  %v977 = vunpack.c.l.b16 %v537
  %v978 = vpack.c.b16 %v945, %v944
  %v979 = vpack.c.b16 %v947, %v946
  %v980 = vpack.c.b16 %v949, %v948
  %v981 = vpack.c.b16 %v951, %v950
  %v982 = vpack.c.b16 %v953, %v952
  %v983 = vpack.c.b16 %v955, %v954
  %v984 = vpack.c.b16 %v957, %v956
  %v985 = vpack.c.b16 %v959, %v958
  %v986 = vpack.c.b16 %v961, %v960
  %v987 = vpack.c.b16 %v963, %v962
  %v988 = vpack.c.b16 %v965, %v964
  %v989 = vpack.c.b16 %v967, %v966
  %v990 = vpack.c.b16 %v969, %v968
  %v991 = vpack.c.b16 %v971, %v970
  %v992 = vpack.c.b16 %v973, %v972
  %v993 = vpack.c.b16 %v975, %v974
  %v994 = vpack.c.b16 %v977, %v976
  %vm1011 = vcmask 72704
  %v1013 = vsel %vm1011, %v900, 0
  %v1016 = vsel %vm1011, %v903, 0
  %v1019 = vsel %vm1011, %v906, 0
  %v1022 = vsel %vm1011, %v909, 0
  %vm1024 = vcmask 1044480
  %v1025 = vsel %vm332, 4294967295, 65535
  %v1026 = vsel %vm1024, %v1025, 0
  %v1028 = vand.u32 %v994, %v1026
  %1030 = vmatprep.subr.bf16.mxu0 0
  %1031 = vmatpush1.bf16.msra.mxu0 %v978
  %1032 = vmatprep.subr.bf16.mxu0 0
  %1033 = vmatpush1.bf16.msra.mxu0 %v979
  %1034 = vmatprep.subr.bf16.mxu0 0
  %1035 = vmatpush1.bf16.msra.mxu0 %v980
  %1036 = vmatprep.subr.bf16.mxu0 0
  %1037 = vmatpush1.bf16.msra.mxu0 %v981
  %1038 = vmatprep.subr.bf16.mxu0 0
  %1039 = vmatpush1.bf16.msra.mxu0 %v982
  %1040 = vmatprep.subr.bf16.mxu0 0
  %1041 = vmatpush1.bf16.msra.mxu0 %v983
  %1042 = vmatprep.subr.bf16.mxu0 0
  %1043 = vmatpush1.bf16.msra.mxu0 %v984
  %1044 = vmatprep.subr.bf16.mxu0 0
  %1045 = vmatpush1.bf16.msra.mxu0 %v985
  %1046 = vmatprep.subr.bf16.mxu0 0
  %1047 = vmatpush1.bf16.msra.mxu0 %v986
  %1048 = vmatprep.subr.bf16.mxu0 0
  %1049 = vmatpush1.bf16.msra.mxu0 %v987
  %1050 = vmatprep.subr.bf16.mxu0 0
  %1051 = vmatpush1.bf16.msra.mxu0 %v988
  %1052 = vmatprep.subr.bf16.mxu0 0
  %1053 = vmatpush1.bf16.msra.mxu0 %v989
  %1054 = vmatprep.subr.bf16.mxu0 0
  %1055 = vmatpush1.bf16.msra.mxu0 %v990
  %1056 = vmatprep.subr.bf16.mxu0 0
  %1057 = vmatpush1.bf16.msra.mxu0 %v991
  %1058 = vmatprep.subr.bf16.mxu0 0
  %1059 = vmatpush1.bf16.msra.mxu0 %v992
  %1060 = vmatprep.subr.bf16.mxu0 0
  %1061 = vmatpush1.bf16.msra.mxu0 %v993
  %1062 = vmatprep.mubr.bf16.mxu0 %v899
  %1063 = vmatmul.mubr.bf16.gmra.mrb[0].mxu0 %v898
  %v1064 = vpop.f32.mrb[0].mxu0
  %v1065 = vadd.f32 0.0, %v1064
  %v1066 = vpop.f32.mrb[0].mxu0
  %v1067 = vpop.f32.mrb[0].mxu0
  %v1068 = vadd.f32 0.0, %v1067
  %v1069 = vpop.f32.mrb[0].mxu0
  %1070 = vmatprep.mubr.bf16.mxu0 %v902
  %1071 = vmatmul.mubr.bf16.gmra.mrb[0].mxu0 %v901
  %v1072 = vpop.f32.mrb[0].mxu0
  %v1073 = vadd.f32 0.0, %v1072
  %v1074 = vpop.f32.mrb[0].mxu0
  %v1075 = vpop.f32.mrb[0].mxu0
  %v1076 = vadd.f32 0.0, %v1075
  %v1077 = vpop.f32.mrb[0].mxu0
  %1078 = vmatprep.mubr.bf16.mxu0 %v905
  %1079 = vmatmul.mubr.bf16.gmra.mrb[0].mxu0 %v904
  %v1080 = vpop.f32.mrb[0].mxu0
  %v1081 = vadd.f32 0.0, %v1080
  %v1082 = vpop.f32.mrb[0].mxu0
  %v1083 = vpop.f32.mrb[0].mxu0
  %v1084 = vadd.f32 0.0, %v1083
  %v1085 = vpop.f32.mrb[0].mxu0
  %1086 = vmatprep.mubr.bf16.mxu0 %v908
  %1087 = vmatmul.mubr.bf16.gmra.mrb[0].mxu0 %v907
  %v1088 = vpop.f32.mrb[0].mxu0
  %v1089 = vadd.f32 0.0, %v1088
  %v1090 = vpop.f32.mrb[0].mxu0
  %v1091 = vpop.f32.mrb[0].mxu0
  %v1092 = vadd.f32 0.0, %v1091
  %v1093 = vpop.f32.mrb[0].mxu0
  %1094 = vdwg.mxu0
  %1095 = vmatprep.subr.bf16.mxu0 0
  %1096 = vmatpush1.bf16.msra.mxu0 %v1028
  %1097 = vmatprep.subr.bf16.mxu0 0
  %1098 = vmatpush1.bf16.msra.mxu0 0
  %1099 = vmatprep.subr.bf16.mxu0 0
  %1100 = vmatpush1.bf16.msra.mxu0 0
  %1101 = vmatprep.subr.bf16.mxu0 0
  %1102 = vmatpush1.bf16.msra.mxu0 0
  %1103 = vmatprep.subr.bf16.mxu0 0
  %1104 = vmatpush1.bf16.msra.mxu0 0
  %1105 = vmatprep.subr.bf16.mxu0 0
  %1106 = vmatpush1.bf16.msra.mxu0 0
  %1107 = vmatprep.subr.bf16.mxu0 0
  %1108 = vmatpush1.bf16.msra.mxu0 0
  %1109 = vmatprep.subr.bf16.mxu0 0
  %1110 = vmatpush1.bf16.msra.mxu0 0
  %1111 = vmatprep.subr.bf16.mxu0 0
  %1112 = vmatpush1.bf16.msra.mxu0 0
  %1113 = vmatprep.subr.bf16.mxu0 0
  %1114 = vmatpush1.bf16.msra.mxu0 0
  %1115 = vmatprep.subr.bf16.mxu0 0
  %1116 = vmatpush1.bf16.msra.mxu0 0
  %1117 = vmatprep.subr.bf16.mxu0 0
  %1118 = vmatpush1.bf16.msra.mxu0 0
  %1119 = vmatprep.subr.bf16.mxu0 0
  %1120 = vmatpush1.bf16.msra.mxu0 0
  %1121 = vmatprep.subr.bf16.mxu0 0
  %1122 = vmatpush1.bf16.msra.mxu0 0
  %1123 = vmatprep.subr.bf16.mxu0 0
  %1124 = vmatpush1.bf16.msra.mxu0 0
  %1125 = vmatprep.subr.bf16.mxu0 0
  %1126 = vmatpush1.bf16.msra.mxu0 0
  %1127 = vmatprep.mubr.bf16.mxu0 0
  %1128 = vmatmul.mubr.bf16.gmra.mrb[0].mxu0 %v1013
  %v1129 = vpop.f32.mrb[0].mxu0
  %v1130 = vadd.f32 %v1065, %v1129
  %v1131 = vpop.f32.mrb[0].mxu0
  %v1132 = vpop.f32.mrb[0].mxu0
  %v1133 = vadd.f32 %v1068, %v1132
  %v1134 = vpop.f32.mrb[0].mxu0
  %1135 = vmatprep.mubr.bf16.mxu0 0
  %1136 = vmatmul.mubr.bf16.gmra.mrb[0].mxu0 %v1016
  %v1137 = vpop.f32.mrb[0].mxu0
  %v1138 = vadd.f32 %v1073, %v1137
  %v1139 = vpop.f32.mrb[0].mxu0
  %v1140 = vpop.f32.mrb[0].mxu0
  %v1141 = vadd.f32 %v1076, %v1140
  %v1142 = vpop.f32.mrb[0].mxu0
  %1143 = vmatprep.mubr.bf16.mxu0 0
  %1144 = vmatmul.mubr.bf16.gmra.mrb[0].mxu0 %v1019
  %v1145 = vpop.f32.mrb[0].mxu0
  %v1146 = vadd.f32 %v1081, %v1145
  %v1147 = vpop.f32.mrb[0].mxu0
  %v1148 = vpop.f32.mrb[0].mxu0
  %v1149 = vadd.f32 %v1084, %v1148
  %v1150 = vpop.f32.mrb[0].mxu0
  %1151 = vmatprep.mubr.bf16.mxu0 0
  %1152 = vmatmul.mubr.bf16.gmra.mrb[0].mxu0 %v1022
  %v1153 = vpop.f32.mrb[0].mxu0
  %v1154 = vadd.f32 %v1089, %v1153
  %v1155 = vpop.f32.mrb[0].mxu0
  %v1156 = vpop.f32.mrb[0].mxu0
  %v1157 = vadd.f32 %v1092, %v1156
  %v1158 = vpop.f32.mrb[0].mxu0
  %1159 = vdwg.mxu0
  %v1160 = vld [vmem:[%s3] sm:$0xff]
  %v1161 = vld [vmem:[%s3 + $0x8] sm:$0xf]
  %v1162 = vld [vmem:[%s3 + $0xc] sm:$0xff]
  %v1163 = vld [vmem:[%s3 + $0x14] sm:$0xf]
  %v1164 = vld [vmem:[%s3 + $0x18] sm:$0xff]
  %v1165 = vld [vmem:[%s3 + $0x20] sm:$0xf]
  %v1166 = vld [vmem:[%s3 + $0x24] sm:$0xff]
  %v1167 = vld [vmem:[%s3 + $0x2c] sm:$0xf]
  %v1168 = vld [vmem:[%s3 + $0x30] sm:$0xff]
  %v1169 = vld [vmem:[%s3 + $0x38] sm:$0xf]
  %v1170 = vld [vmem:[%s3 + $0x3c] sm:$0xff]
  %v1171 = vld [vmem:[%s3 + $0x44] sm:$0xf]
  %v1172 = vld [vmem:[%s3 + $0x48] sm:$0xff]
  %v1173 = vld [vmem:[%s3 + $0x50] sm:$0xf]
  %v1174 = vld [vmem:[%s3 + $0x54] sm:$0xff]
  %v1175 = vld [vmem:[%s3 + $0x5c] sm:$0xf]
  %1184 = vrot.lane.b32.xlu0 %v1130, 127
  %v1185 = vpop.permute.xlu0 %1184
  %1186 = vrot.lane.b32.xlu0 %v1133, 127
  %v1187 = vpop.permute.xlu0 %1186
  %1188 = vrot.lane.b32.xlu0 %v1138, 127
  %v1189 = vpop.permute.xlu0 %1188
  %1190 = vrot.lane.b32.xlu0 %v1141, 127
  %v1191 = vpop.permute.xlu0 %1190
  %1192 = vrot.lane.b32.xlu0 %v1146, 127
  %v1193 = vpop.permute.xlu0 %1192
  %1194 = vrot.lane.b32.xlu0 %v1149, 127
  %v1195 = vpop.permute.xlu0 %1194
  %1196 = vrot.lane.b32.xlu0 %v1154, 127
  %v1197 = vpop.permute.xlu0 %1196
  %1198 = vrot.lane.b32.xlu0 %v1157, 127
  %v1199 = vpop.permute.xlu0 %1198
  %1208 = vrot.lane.b32.xlu0 %v1130, 126
  %v1209 = vpop.permute.xlu0 %1208
  %1210 = vrot.lane.b32.xlu0 %v1133, 126
  %v1211 = vpop.permute.xlu0 %1210
  %1212 = vrot.lane.b32.xlu0 %v1138, 126
  %v1213 = vpop.permute.xlu0 %1212
  %1214 = vrot.lane.b32.xlu0 %v1141, 126
  %v1215 = vpop.permute.xlu0 %1214
  %1216 = vrot.lane.b32.xlu0 %v1146, 126
  %v1217 = vpop.permute.xlu0 %1216
  %1218 = vrot.lane.b32.xlu0 %v1149, 126
  %v1219 = vpop.permute.xlu0 %1218
  %1220 = vrot.lane.b32.xlu0 %v1154, 126
  %v1221 = vpop.permute.xlu0 %1220
  %1222 = vrot.lane.b32.xlu0 %v1157, 126
  %v1223 = vpop.permute.xlu0 %1222
  %1232 = vrot.lane.b32.xlu0 %v1130, 125
  %v1233 = vpop.permute.xlu0 %1232
  %1234 = vrot.lane.b32.xlu0 %v1133, 125
  %v1235 = vpop.permute.xlu0 %1234
  %1236 = vrot.lane.b32.xlu0 %v1138, 125
  %v1237 = vpop.permute.xlu0 %1236
  %1238 = vrot.lane.b32.xlu0 %v1141, 125
  %v1239 = vpop.permute.xlu0 %1238
  %1240 = vrot.lane.b32.xlu0 %v1146, 125
  %v1241 = vpop.permute.xlu0 %1240
  %1242 = vrot.lane.b32.xlu0 %v1149, 125
  %v1243 = vpop.permute.xlu0 %1242
  %1244 = vrot.lane.b32.xlu0 %v1154, 125
  %v1245 = vpop.permute.xlu0 %1244
  %1246 = vrot.lane.b32.xlu0 %v1157, 125
  %v1247 = vpop.permute.xlu0 %1246
  %1256 = vrot.lane.b32.xlu0 %v1130, 124
  %v1257 = vpop.permute.xlu0 %1256
  %1258 = vrot.lane.b32.xlu0 %v1133, 124
  %v1259 = vpop.permute.xlu0 %1258
  %1260 = vrot.lane.b32.xlu0 %v1138, 124
  %v1261 = vpop.permute.xlu0 %1260
  %1262 = vrot.lane.b32.xlu0 %v1141, 124
  %v1263 = vpop.permute.xlu0 %1262
  %1264 = vrot.lane.b32.xlu0 %v1146, 124
  %v1265 = vpop.permute.xlu0 %1264
  %1266 = vrot.lane.b32.xlu0 %v1149, 124
  %v1267 = vpop.permute.xlu0 %1266
  %1268 = vrot.lane.b32.xlu0 %v1154, 124
  %v1269 = vpop.permute.xlu0 %1268
  %1270 = vrot.lane.b32.xlu0 %v1157, 124
  %v1271 = vpop.permute.xlu0 %1270
  %v1280 = vpack.c.bf16 %v1133, %v1130
  %v1281 = vpack.c.bf16 %v1141, %v1138
  %v1282 = vpack.c.bf16 %v1149, %v1146
  %v1283 = vpack.c.bf16 %v1157, %v1154
  %v1284 = vpack.c.bf16 %v1187, %v1185
  %v1285 = vpack.c.bf16 %v1191, %v1189
  %v1286 = vpack.c.bf16 %v1195, %v1193
  %v1287 = vpack.c.bf16 %v1199, %v1197
  %v1288 = vpack.c.bf16 %v1211, %v1209
  %v1289 = vpack.c.bf16 %v1215, %v1213
  %v1290 = vpack.c.bf16 %v1219, %v1217
  %v1291 = vpack.c.bf16 %v1223, %v1221
  %v1292 = vpack.c.bf16 %v1235, %v1233
  %v1293 = vpack.c.bf16 %v1239, %v1237
  %v1294 = vpack.c.bf16 %v1243, %v1241
  %v1295 = vpack.c.bf16 %v1247, %v1245
  %v1296 = vpack.c.bf16 %v1259, %v1257
  %v1297 = vpack.c.bf16 %v1263, %v1261
  %v1298 = vpack.c.bf16 %v1267, %v1265
  %v1299 = vpack.c.bf16 %v1271, %v1269
  %v1300 = vld [vmem:[%s4] sm:$0xff]
  %v1301 = vld [vmem:[%s4 + $0x8] sm:$0xff]
  %v1302 = vld [vmem:[%s4 + $0x10] sm:$0xff]
  %v1303 = vld [vmem:[%s4 + $0x18] sm:$0xff]
  %v1304 = vld [vmem:[%s4 + $0x20] sm:$0xff]
  %v1305 = vld [vmem:[%s4 + $0x28] sm:$0xff]
  %v1306 = vld [vmem:[%s4 + $0x30] sm:$0xff]
  %v1307 = vld [vmem:[%s4 + $0x38] sm:$0xff]
  %1309 = vset.pattern.permute.xlu0 0
  %1310 = vperm.xlu0 %1309, %v1300
  %v1311 = vpop.permute.xlu0 %1310
  %1314 = vset.pattern.permute.xlu0 0
  %1315 = vperm.xlu0 %1314, %v1301
  %v1316 = vpop.permute.xlu0 %1315
  %1319 = vset.pattern.permute.xlu0 0
  %1320 = vperm.xlu0 %1319, %v1302
  %v1321 = vpop.permute.xlu0 %1320
  %1324 = vset.pattern.permute.xlu0 0
  %1325 = vperm.xlu0 %1324, %v1303
  %v1326 = vpop.permute.xlu0 %1325
  %1329 = vset.pattern.permute.xlu0 0
  %1330 = vperm.xlu0 %1329, %v1304
  %v1331 = vpop.permute.xlu0 %1330
  %1334 = vset.pattern.permute.xlu0 0
  %1335 = vperm.xlu0 %1334, %v1305
  %v1336 = vpop.permute.xlu0 %1335
  %1339 = vset.pattern.permute.xlu0 0
  %1340 = vperm.xlu0 %1339, %v1306
  %v1341 = vpop.permute.xlu0 %1340
  %1344 = vset.pattern.permute.xlu0 0
  %1345 = vperm.xlu0 %1344, %v1307
  %v1346 = vpop.permute.xlu0 %1345
  %v1364 = vunpack.c.l.b16 %v1160
  %v1365 = vunpack.c.h.b16 %v1160
  %v1366 = vunpack.c.l.b16 %v1161
  %v1367 = vunpack.c.l.b16 %v1162
  %v1368 = vunpack.c.h.b16 %v1162
  %v1369 = vunpack.c.l.b16 %v1163
  %v1370 = vunpack.c.l.b16 %v1164
  %v1371 = vunpack.c.h.b16 %v1164
  %v1372 = vunpack.c.l.b16 %v1165
  %v1373 = vunpack.c.l.b16 %v1166
  %v1374 = vunpack.c.h.b16 %v1166
  %v1375 = vunpack.c.l.b16 %v1167
  %v1376 = vunpack.c.l.b16 %v1168
  %v1377 = vunpack.c.h.b16 %v1168
  %v1378 = vunpack.c.l.b16 %v1169
  %v1379 = vunpack.c.l.b16 %v1170
  %v1380 = vunpack.c.h.b16 %v1170
  %v1381 = vunpack.c.l.b16 %v1171
  %v1382 = vunpack.c.l.b16 %v1172
  %v1383 = vunpack.c.h.b16 %v1172
  %v1384 = vunpack.c.l.b16 %v1173
  %v1385 = vunpack.c.l.b16 %v1174
  %v1386 = vunpack.c.h.b16 %v1174
  %v1387 = vunpack.c.l.b16 %v1175
  %v1388 = vpack.c.b16 %v1367, %v1364
  %v1389 = vpack.c.b16 %v1368, %v1365
  %v1390 = vpack.c.b16 %v1369, %v1366
  %v1391 = vpack.c.b16 %v1373, %v1370
  %v1392 = vpack.c.b16 %v1374, %v1371
  %v1393 = vpack.c.b16 %v1375, %v1372
  %v1394 = vpack.c.b16 %v1379, %v1376
  %v1395 = vpack.c.b16 %v1380, %v1377
  %v1396 = vpack.c.b16 %v1381, %v1378
  %v1397 = vpack.c.b16 %v1385, %v1382
  %v1398 = vpack.c.b16 %v1386, %v1383
  %v1399 = vpack.c.b16 %v1387, %v1384
  %vm1408 = vcmask 523264
  %v1410 = vsel %vm1408, %v1390, 0
  %v1413 = vsel %vm1408, %v1393, 0
  %v1416 = vsel %vm1408, %v1396, 0
  %v1419 = vsel %vm1408, %v1399, 0
  %1421 = vmatprep.subr.bf16.mxu0 0
  %1422 = vmatpush1.bf16.msra.mxu0 %v1280
  %1423 = vmatprep.subr.bf16.mxu0 0
  %1424 = vmatpush1.bf16.msra.mxu0 %v1281
  %1425 = vmatprep.subr.bf16.mxu0 0
  %1426 = vmatpush1.bf16.msra.mxu0 %v1282
  %1427 = vmatprep.subr.bf16.mxu0 0
  %1428 = vmatpush1.bf16.msra.mxu0 %v1283
  %1429 = vmatprep.subr.bf16.mxu0 0
  %1430 = vmatpush1.bf16.msra.mxu0 %v1284
  %1431 = vmatprep.subr.bf16.mxu0 0
  %1432 = vmatpush1.bf16.msra.mxu0 %v1285
  %1433 = vmatprep.subr.bf16.mxu0 0
  %1434 = vmatpush1.bf16.msra.mxu0 %v1286
  %1435 = vmatprep.subr.bf16.mxu0 0
  %1436 = vmatpush1.bf16.msra.mxu0 %v1287
  %1437 = vmatprep.subr.bf16.mxu0 0
  %1438 = vmatpush1.bf16.msra.mxu0 %v1288
  %1439 = vmatprep.subr.bf16.mxu0 0
  %1440 = vmatpush1.bf16.msra.mxu0 %v1289
  %1441 = vmatprep.subr.bf16.mxu0 0
  %1442 = vmatpush1.bf16.msra.mxu0 %v1290
  %1443 = vmatprep.subr.bf16.mxu0 0
  %1444 = vmatpush1.bf16.msra.mxu0 %v1291
  %1445 = vmatprep.subr.bf16.mxu0 0
  %1446 = vmatpush1.bf16.msra.mxu0 %v1292
  %1447 = vmatprep.subr.bf16.mxu0 0
  %1448 = vmatpush1.bf16.msra.mxu0 %v1293
  %1449 = vmatprep.subr.bf16.mxu0 0
  %1450 = vmatpush1.bf16.msra.mxu0 %v1294
  %1451 = vmatprep.subr.bf16.mxu0 0
  %1452 = vmatpush1.bf16.msra.mxu0 %v1295
  %1453 = vmatprep.mubr.bf16.mxu0 %v1389
  %1454 = vmatmul.mubr.bf16.gmra.mrb[0].mxu0 %v1388
  %v1455 = vpop.f32.mrb[0].mxu0
  %v1456 = vadd.f32 %v1311, %v1455
  %v1457 = vpop.f32.mrb[0].mxu0
  %v1458 = vpop.f32.mrb[0].mxu0
  %v1459 = vadd.f32 %v1316, %v1458
  %v1460 = vpop.f32.mrb[0].mxu0
  %1461 = vmatprep.mubr.bf16.mxu0 %v1392
  %1462 = vmatmul.mubr.bf16.gmra.mrb[0].mxu0 %v1391
  %v1463 = vpop.f32.mrb[0].mxu0
  %v1464 = vadd.f32 %v1321, %v1463
  %v1465 = vpop.f32.mrb[0].mxu0
  %v1466 = vpop.f32.mrb[0].mxu0
  %v1467 = vadd.f32 %v1326, %v1466
  %v1468 = vpop.f32.mrb[0].mxu0
  %1469 = vmatprep.mubr.bf16.mxu0 %v1395
  %1470 = vmatmul.mubr.bf16.gmra.mrb[0].mxu0 %v1394
  %v1471 = vpop.f32.mrb[0].mxu0
  %v1472 = vadd.f32 %v1331, %v1471
  %v1473 = vpop.f32.mrb[0].mxu0
  %v1474 = vpop.f32.mrb[0].mxu0
  %v1475 = vadd.f32 %v1336, %v1474
  %v1476 = vpop.f32.mrb[0].mxu0
  %1477 = vmatprep.mubr.bf16.mxu0 %v1398
  %1478 = vmatmul.mubr.bf16.gmra.mrb[0].mxu0 %v1397
  %v1479 = vpop.f32.mrb[0].mxu0
  %v1480 = vadd.f32 %v1341, %v1479
  %v1481 = vpop.f32.mrb[0].mxu0
  %v1482 = vpop.f32.mrb[0].mxu0
  %v1483 = vadd.f32 %v1346, %v1482
  %v1484 = vpop.f32.mrb[0].mxu0
  %1485 = vdwg.mxu0
  %1486 = vmatprep.subr.bf16.mxu0 0
  %1487 = vmatpush1.bf16.msra.mxu0 %v1296
  %1488 = vmatprep.subr.bf16.mxu0 0
  %1489 = vmatpush1.bf16.msra.mxu0 %v1297
  %1490 = vmatprep.subr.bf16.mxu0 0
  %1491 = vmatpush1.bf16.msra.mxu0 %v1298
  %1492 = vmatprep.subr.bf16.mxu0 0
  %1493 = vmatpush1.bf16.msra.mxu0 %v1299
  %1494 = vmatprep.subr.bf16.mxu0 0
  %1495 = vmatpush1.bf16.msra.mxu0 0
  %1496 = vmatprep.subr.bf16.mxu0 0
  %1497 = vmatpush1.bf16.msra.mxu0 0
  %1498 = vmatprep.subr.bf16.mxu0 0
  %1499 = vmatpush1.bf16.msra.mxu0 0
  %1500 = vmatprep.subr.bf16.mxu0 0
  %1501 = vmatpush1.bf16.msra.mxu0 0
  %1502 = vmatprep.subr.bf16.mxu0 0
  %1503 = vmatpush1.bf16.msra.mxu0 0
  %1504 = vmatprep.subr.bf16.mxu0 0
  %1505 = vmatpush1.bf16.msra.mxu0 0
  %1506 = vmatprep.subr.bf16.mxu0 0
  %1507 = vmatpush1.bf16.msra.mxu0 0
  %1508 = vmatprep.subr.bf16.mxu0 0
  %1509 = vmatpush1.bf16.msra.mxu0 0
  %1510 = vmatprep.subr.bf16.mxu0 0
  %1511 = vmatpush1.bf16.msra.mxu0 0
  %1512 = vmatprep.subr.bf16.mxu0 0
  %1513 = vmatpush1.bf16.msra.mxu0 0
  %1514 = vmatprep.subr.bf16.mxu0 0
  %1515 = vmatpush1.bf16.msra.mxu0 0
  %1516 = vmatprep.subr.bf16.mxu0 0
  %1517 = vmatpush1.bf16.msra.mxu0 0
  %1518 = vmatprep.mubr.bf16.mxu0 0
  %1519 = vmatmul.mubr.bf16.gmra.mrb[0].mxu0 %v1410
  %v1520 = vpop.f32.mrb[0].mxu0
  %v1521 = vadd.f32 %v1456, %v1520
  %v1522 = vpop.f32.mrb[0].mxu0
  %v1523 = vpop.f32.mrb[0].mxu0
  %v1524 = vadd.f32 %v1459, %v1523
  %v1525 = vpop.f32.mrb[0].mxu0
  %1526 = vmatprep.mubr.bf16.mxu0 0
  %1527 = vmatmul.mubr.bf16.gmra.mrb[0].mxu0 %v1413
  %v1528 = vpop.f32.mrb[0].mxu0
  %v1529 = vadd.f32 %v1464, %v1528
  %v1530 = vpop.f32.mrb[0].mxu0
  %v1531 = vpop.f32.mrb[0].mxu0
  %v1532 = vadd.f32 %v1467, %v1531
  %v1533 = vpop.f32.mrb[0].mxu0
  %1534 = vmatprep.mubr.bf16.mxu0 0
  %1535 = vmatmul.mubr.bf16.gmra.mrb[0].mxu0 %v1416
  %v1536 = vpop.f32.mrb[0].mxu0
  %v1537 = vadd.f32 %v1472, %v1536
  %v1538 = vpop.f32.mrb[0].mxu0
  %v1539 = vpop.f32.mrb[0].mxu0
  %v1540 = vadd.f32 %v1475, %v1539
  %v1541 = vpop.f32.mrb[0].mxu0
  %1542 = vmatprep.mubr.bf16.mxu0 0
  %1543 = vmatmul.mubr.bf16.gmra.mrb[0].mxu0 %v1419
  %v1544 = vpop.f32.mrb[0].mxu0
  %v1545 = vadd.f32 %v1480, %v1544
  %v1546 = vpop.f32.mrb[0].mxu0
  %v1547 = vpop.f32.mrb[0].mxu0
  %v1548 = vadd.f32 %v1483, %v1547
  %v1549 = vpop.f32.mrb[0].mxu0
  %1550 = vdwg.mxu0
  %v1551 = vmax.f32 %v1521, 0.0
  %v1552 = vmax.f32 %v1524, 0.0
  %v1553 = vmax.f32 %v1529, 0.0
  %v1554 = vmax.f32 %v1532, 0.0
  %v1555 = vmax.f32 %v1537, 0.0
  %v1556 = vmax.f32 %v1540, 0.0
  %v1557 = vmax.f32 %v1545, 0.0
  %v1558 = vmax.f32 %v1548, 0.0
  %v1559 = vld [vmem:[%s17] sm:$0xf]
  %v1560 = vld [vmem:[%s17 + $0x4] sm:$0xf]
  %v1561 = vld [vmem:[%s17 + $0x8] sm:$0xf]
  %v1562 = vld [vmem:[%s17 + $0xc] sm:$0xf]
  %v1563 = vld [vmem:[%s17 + $0x10] sm:$0xf]
  %v1564 = vld [vmem:[%s17 + $0x14] sm:$0xf]
  %v1565 = vld [vmem:[%s17 + $0x18] sm:$0xf]
  %v1566 = vld [vmem:[%s17 + $0x1c] sm:$0x1]
  %1575 = vrot.lane.b32.xlu0 %v1551, 127
  %v1576 = vpop.permute.xlu0 %1575
  %1577 = vrot.lane.b32.xlu0 %v1552, 127
  %v1578 = vpop.permute.xlu0 %1577
  %1579 = vrot.lane.b32.xlu0 %v1553, 127
  %v1580 = vpop.permute.xlu0 %1579
  %1581 = vrot.lane.b32.xlu0 %v1554, 127
  %v1582 = vpop.permute.xlu0 %1581
  %1583 = vrot.lane.b32.xlu0 %v1555, 127
  %v1584 = vpop.permute.xlu0 %1583
  %1585 = vrot.lane.b32.xlu0 %v1556, 127
  %v1586 = vpop.permute.xlu0 %1585
  %1587 = vrot.lane.b32.xlu0 %v1557, 127
  %v1588 = vpop.permute.xlu0 %1587
  %1589 = vrot.lane.b32.xlu0 %v1558, 127
  %v1590 = vpop.permute.xlu0 %1589
  %v1599 = vmax.f32 %v1551, %v1576
  %v1600 = vmax.f32 %v1552, %v1578
  %v1601 = vmax.f32 %v1553, %v1580
  %v1602 = vmax.f32 %v1554, %v1582
  %v1603 = vmax.f32 %v1555, %v1584
  %v1604 = vmax.f32 %v1556, %v1586
  %v1605 = vmax.f32 %v1557, %v1588
  %v1606 = vmax.f32 %v1558, %v1590
  %1607 = vrot.lane.b32.xlu0 %v1551, 126
  %v1608 = vpop.permute.xlu0 %1607
  %1609 = vrot.lane.b32.xlu0 %v1552, 126
  %v1610 = vpop.permute.xlu0 %1609
  %1611 = vrot.lane.b32.xlu0 %v1553, 126
  %v1612 = vpop.permute.xlu0 %1611
  %1613 = vrot.lane.b32.xlu0 %v1554, 126
  %v1614 = vpop.permute.xlu0 %1613
  %1615 = vrot.lane.b32.xlu0 %v1555, 126
  %v1616 = vpop.permute.xlu0 %1615
  %1617 = vrot.lane.b32.xlu0 %v1556, 126
  %v1618 = vpop.permute.xlu0 %1617
  %1619 = vrot.lane.b32.xlu0 %v1557, 126
  %v1620 = vpop.permute.xlu0 %1619
  %1621 = vrot.lane.b32.xlu0 %v1558, 126
  %v1622 = vpop.permute.xlu0 %1621
  %v1631 = vmax.f32 %v1599, %v1608
  %v1632 = vmax.f32 %v1600, %v1610
  %v1633 = vmax.f32 %v1601, %v1612
  %v1634 = vmax.f32 %v1602, %v1614
  %v1635 = vmax.f32 %v1603, %v1616
  %v1636 = vmax.f32 %v1604, %v1618
  %v1637 = vmax.f32 %v1605, %v1620
  %v1638 = vmax.f32 %v1606, %v1622
  %1639 = vrot.lane.b32.xlu0 %v1551, 125
  %v1640 = vpop.permute.xlu0 %1639
  %1641 = vrot.lane.b32.xlu0 %v1552, 125
  %v1642 = vpop.permute.xlu0 %1641
  %1643 = vrot.lane.b32.xlu0 %v1553, 125
  %v1644 = vpop.permute.xlu0 %1643
  %1645 = vrot.lane.b32.xlu0 %v1554, 125
  %v1646 = vpop.permute.xlu0 %1645
  %1647 = vrot.lane.b32.xlu0 %v1555, 125
  %v1648 = vpop.permute.xlu0 %1647
  %1649 = vrot.lane.b32.xlu0 %v1556, 125
  %v1650 = vpop.permute.xlu0 %1649
  %1651 = vrot.lane.b32.xlu0 %v1557, 125
  %v1652 = vpop.permute.xlu0 %1651
  %1653 = vrot.lane.b32.xlu0 %v1558, 125
  %v1654 = vpop.permute.xlu0 %1653
  %v1663 = vmax.f32 %v1631, %v1640
  %v1664 = vmax.f32 %v1632, %v1642
  %v1665 = vmax.f32 %v1633, %v1644
  %v1666 = vmax.f32 %v1634, %v1646
  %v1667 = vmax.f32 %v1635, %v1648
  %v1668 = vmax.f32 %v1636, %v1650
  %v1669 = vmax.f32 %v1637, %v1652
  %v1670 = vmax.f32 %v1638, %v1654
  %v1671 = vpack.c.bf16 %v1664, %v1663
  %v1672 = vpack.c.bf16 %v1666, %v1665
  %v1673 = vpack.c.bf16 %v1668, %v1667
  %v1674 = vpack.c.bf16 %v1670, %v1669
  %v1683 = vunpack.c.l.b16 %v1559
  %v1684 = vunpack.c.l.b16 %v1560
  %v1685 = vunpack.c.l.b16 %v1561
  %v1686 = vunpack.c.l.b16 %v1562
  %v1687 = vunpack.c.l.b16 %v1563
  %v1688 = vunpack.c.l.b16 %v1564
  %v1689 = vunpack.c.l.b16 %v1565
  %v1690 = vunpack.c.l.b16 %v1566
  %v1691 = vpack.c.b16 %v1684, %v1683
  %v1692 = vpack.c.b16 %v1686, %v1685
  %v1693 = vpack.c.b16 %v1688, %v1687
  %v1694 = vpack.c.b16 %v1690, %v1689
  %vm1698 = vcmask 465920
  %v1700 = vsel %vm1698, %v1671, 0
  %v1703 = vsel %vm1698, %v1672, 0
  %v1706 = vsel %vm1698, %v1673, 0
  %v1709 = vsel %vm1698, %v1674, 0
  %v1712 = vand.u32 %v1694, %v1026
  %1714 = vmatprep.subr.bf16.mxu0 0
  %1715 = vmatpush1.bf16.msra.mxu0 %v1691
  %1716 = vmatprep.subr.bf16.mxu0 0
  %1717 = vmatpush1.bf16.msra.mxu0 %v1692
  %1718 = vmatprep.subr.bf16.mxu0 0
  %1719 = vmatpush1.bf16.msra.mxu0 %v1693
  %1720 = vmatprep.subr.bf16.mxu0 0
  %1721 = vmatpush1.bf16.msra.mxu0 %v1712
  %1722 = vmatprep.subr.bf16.mxu0 0
  %1723 = vmatpush1.bf16.msra.mxu0 0
  %1724 = vmatprep.subr.bf16.mxu0 0
  %1725 = vmatpush1.bf16.msra.mxu0 0
  %1726 = vmatprep.subr.bf16.mxu0 0
  %1727 = vmatpush1.bf16.msra.mxu0 0
  %1728 = vmatprep.subr.bf16.mxu0 0
  %1729 = vmatpush1.bf16.msra.mxu0 0
  %1730 = vmatprep.subr.bf16.mxu0 0
  %1731 = vmatpush1.bf16.msra.mxu0 0
  %1732 = vmatprep.subr.bf16.mxu0 0
  %1733 = vmatpush1.bf16.msra.mxu0 0
  %1734 = vmatprep.subr.bf16.mxu0 0
  %1735 = vmatpush1.bf16.msra.mxu0 0
  %1736 = vmatprep.subr.bf16.mxu0 0
  %1737 = vmatpush1.bf16.msra.mxu0 0
  %1738 = vmatprep.subr.bf16.mxu0 0
  %1739 = vmatpush1.bf16.msra.mxu0 0
  %1740 = vmatprep.subr.bf16.mxu0 0
  %1741 = vmatpush1.bf16.msra.mxu0 0
  %1742 = vmatprep.subr.bf16.mxu0 0
  %1743 = vmatpush1.bf16.msra.mxu0 0
  %1744 = vmatprep.subr.bf16.mxu0 0
  %1745 = vmatpush1.bf16.msra.mxu0 0
  %1746 = vmatprep.mubr.bf16.mxu0 0
  %1747 = vmatmul.mubr.bf16.gmra.mrb[0].mxu0 %v1700
  %v1748 = vpop.f32.mrb[0].mxu0
  %v1749 = vadd.f32 0.0, %v1748
  %v1750 = vpop.f32.mrb[0].mxu0
  %v1751 = vpop.f32.mrb[0].mxu0
  %v1752 = vadd.f32 0.0, %v1751
  %v1753 = vpop.f32.mrb[0].mxu0
  %1754 = vmatprep.mubr.bf16.mxu0 0
  %1755 = vmatmul.mubr.bf16.gmra.mrb[0].mxu0 %v1703
  %v1756 = vpop.f32.mrb[0].mxu0
  %v1757 = vadd.f32 0.0, %v1756
  %v1758 = vpop.f32.mrb[0].mxu0
  %v1759 = vpop.f32.mrb[0].mxu0
  %v1760 = vadd.f32 0.0, %v1759
  %v1761 = vpop.f32.mrb[0].mxu0
  %1762 = vmatprep.mubr.bf16.mxu0 0
  %1763 = vmatmul.mubr.bf16.gmra.mrb[0].mxu0 %v1706
  %v1764 = vpop.f32.mrb[0].mxu0
  %v1765 = vadd.f32 0.0, %v1764
  %v1766 = vpop.f32.mrb[0].mxu0
  %v1767 = vpop.f32.mrb[0].mxu0
  %v1768 = vadd.f32 0.0, %v1767
  %v1769 = vpop.f32.mrb[0].mxu0
  %1770 = vmatprep.mubr.bf16.mxu0 0
  %1771 = vmatmul.mubr.bf16.gmra.mrb[0].mxu0 %v1709
  %v1772 = vpop.f32.mrb[0].mxu0
  %v1773 = vadd.f32 0.0, %v1772
  %v1774 = vpop.f32.mrb[0].mxu0
  %v1775 = vpop.f32.mrb[0].mxu0
  %v1776 = vadd.f32 0.0, %v1775
  %v1777 = vpop.f32.mrb[0].mxu0
  %1778 = vdwg.mxu0
  %v1779 = vld [vmem:[%s5] sm:$0xff]
  %v1780 = vld [vmem:[%s5 + $0x8] sm:$0xff]
  %v1781 = vld [vmem:[%s5 + $0x10] sm:$0xff]
  %v1782 = vld [vmem:[%s5 + $0x18] sm:$0xff]
  %v1783 = vld [vmem:[%s5 + $0x20] sm:$0xff]
  %v1784 = vld [vmem:[%s5 + $0x28] sm:$0xff]
  %v1785 = vld [vmem:[%s5 + $0x30] sm:$0xff]
  %v1786 = vld [vmem:[%s5 + $0x38] sm:$0xff]
  %1795 = vrot.lane.b32.xlu0 %v1749, 127
  %v1796 = vpop.permute.xlu0 %1795
  %1797 = vrot.lane.b32.xlu0 %v1752, 127
  %v1798 = vpop.permute.xlu0 %1797
  %1799 = vrot.lane.b32.xlu0 %v1757, 127
  %v1800 = vpop.permute.xlu0 %1799
  %1801 = vrot.lane.b32.xlu0 %v1760, 127
  %v1802 = vpop.permute.xlu0 %1801
  %1803 = vrot.lane.b32.xlu0 %v1765, 127
  %v1804 = vpop.permute.xlu0 %1803
  %1805 = vrot.lane.b32.xlu0 %v1768, 127
  %v1806 = vpop.permute.xlu0 %1805
  %1807 = vrot.lane.b32.xlu0 %v1773, 127
  %v1808 = vpop.permute.xlu0 %1807
  %1809 = vrot.lane.b32.xlu0 %v1776, 127
  %v1810 = vpop.permute.xlu0 %1809
  %1819 = vrot.lane.b32.xlu0 %v1749, 126
  %v1820 = vpop.permute.xlu0 %1819
  %1821 = vrot.lane.b32.xlu0 %v1752, 126
  %v1822 = vpop.permute.xlu0 %1821
  %1823 = vrot.lane.b32.xlu0 %v1757, 126
  %v1824 = vpop.permute.xlu0 %1823
  %1825 = vrot.lane.b32.xlu0 %v1760, 126
  %v1826 = vpop.permute.xlu0 %1825
  %1827 = vrot.lane.b32.xlu0 %v1765, 126
  %v1828 = vpop.permute.xlu0 %1827
  %1829 = vrot.lane.b32.xlu0 %v1768, 126
  %v1830 = vpop.permute.xlu0 %1829
  %1831 = vrot.lane.b32.xlu0 %v1773, 126
  %v1832 = vpop.permute.xlu0 %1831
  %1833 = vrot.lane.b32.xlu0 %v1776, 126
  %v1834 = vpop.permute.xlu0 %1833
  %v1843 = vpack.c.bf16 %v1752, %v1749
  %v1844 = vpack.c.bf16 %v1760, %v1757
  %v1845 = vpack.c.bf16 %v1768, %v1765
  %v1846 = vpack.c.bf16 %v1776, %v1773
  %v1847 = vpack.c.bf16 %v1798, %v1796
  %v1848 = vpack.c.bf16 %v1802, %v1800
  %v1849 = vpack.c.bf16 %v1806, %v1804
  %v1850 = vpack.c.bf16 %v1810, %v1808
  %v1851 = vpack.c.bf16 %v1822, %v1820
  %v1852 = vpack.c.bf16 %v1826, %v1824
  %v1853 = vpack.c.bf16 %v1830, %v1828
  %v1854 = vpack.c.bf16 %v1834, %v1832
  %v1855 = vld [vmem:[%s6] sm:$0xff]
  %v1856 = vld [vmem:[%s6 + $0x8] sm:$0xff]
  %v1857 = vld [vmem:[%s6 + $0x10] sm:$0xff]
  %v1858 = vld [vmem:[%s6 + $0x18] sm:$0xff]
  %v1859 = vld [vmem:[%s6 + $0x20] sm:$0xff]
  %v1860 = vld [vmem:[%s6 + $0x28] sm:$0xff]
  %v1861 = vld [vmem:[%s6 + $0x30] sm:$0xff]
  %v1862 = vld [vmem:[%s6 + $0x38] sm:$0xff]
  %1864 = vset.pattern.permute.xlu0 0
  %1865 = vperm.xlu0 %1864, %v1855
  %v1866 = vpop.permute.xlu0 %1865
  %1869 = vset.pattern.permute.xlu0 0
  %1870 = vperm.xlu0 %1869, %v1856
  %v1871 = vpop.permute.xlu0 %1870
  %1874 = vset.pattern.permute.xlu0 0
  %1875 = vperm.xlu0 %1874, %v1857
  %v1876 = vpop.permute.xlu0 %1875
  %1879 = vset.pattern.permute.xlu0 0
  %1880 = vperm.xlu0 %1879, %v1858
  %v1881 = vpop.permute.xlu0 %1880
  %1884 = vset.pattern.permute.xlu0 0
  %1885 = vperm.xlu0 %1884, %v1859
  %v1886 = vpop.permute.xlu0 %1885
  %1889 = vset.pattern.permute.xlu0 0
  %1890 = vperm.xlu0 %1889, %v1860
  %v1891 = vpop.permute.xlu0 %1890
  %1894 = vset.pattern.permute.xlu0 0
  %1895 = vperm.xlu0 %1894, %v1861
  %v1896 = vpop.permute.xlu0 %1895
  %1899 = vset.pattern.permute.xlu0 0
  %1900 = vperm.xlu0 %1899, %v1862
  %v1901 = vpop.permute.xlu0 %1900
  %v1911 = vunpack.c.l.b16 %v1779
  %v1912 = vunpack.c.h.b16 %v1779
  %v1913 = vunpack.c.l.b16 %v1780
  %v1914 = vunpack.c.h.b16 %v1780
  %v1915 = vunpack.c.l.b16 %v1781
  %v1916 = vunpack.c.h.b16 %v1781
  %v1917 = vunpack.c.l.b16 %v1782
  %v1918 = vunpack.c.h.b16 %v1782
  %v1919 = vunpack.c.l.b16 %v1783
  %v1920 = vunpack.c.h.b16 %v1783
  %v1921 = vunpack.c.l.b16 %v1784
  %v1922 = vunpack.c.h.b16 %v1784
  %v1923 = vunpack.c.l.b16 %v1785
  %v1924 = vunpack.c.h.b16 %v1785
  %v1925 = vunpack.c.l.b16 %v1786
  %v1926 = vunpack.c.h.b16 %v1786
  %v1927 = vpack.c.b16 %v1913, %v1911
  %v1928 = vpack.c.b16 %v1914, %v1912
  %v1929 = vpack.c.b16 %v1917, %v1915
  %v1930 = vpack.c.b16 %v1918, %v1916
  %v1931 = vpack.c.b16 %v1921, %v1919
  %v1932 = vpack.c.b16 %v1922, %v1920
  %v1933 = vpack.c.b16 %v1925, %v1923
  %v1934 = vpack.c.b16 %v1926, %v1924
  %v1940 = vsel %vm1408, %v1928, 0
  %v1943 = vsel %vm1408, %v1930, 0
  %v1946 = vsel %vm1408, %v1932, 0
  %v1949 = vsel %vm1408, %v1934, 0
  %1951 = vmatprep.subr.bf16.mxu0 0
  %1952 = vmatpush1.bf16.msra.mxu0 %v1843
  %1953 = vmatprep.subr.bf16.mxu0 0
  %1954 = vmatpush1.bf16.msra.mxu0 %v1844
  %1955 = vmatprep.subr.bf16.mxu0 0
  %1956 = vmatpush1.bf16.msra.mxu0 %v1845
  %1957 = vmatprep.subr.bf16.mxu0 0
  %1958 = vmatpush1.bf16.msra.mxu0 %v1846
  %1959 = vmatprep.subr.bf16.mxu0 0
  %1960 = vmatpush1.bf16.msra.mxu0 %v1847
  %1961 = vmatprep.subr.bf16.mxu0 0
  %1962 = vmatpush1.bf16.msra.mxu0 %v1848
  %1963 = vmatprep.subr.bf16.mxu0 0
  %1964 = vmatpush1.bf16.msra.mxu0 %v1849
  %1965 = vmatprep.subr.bf16.mxu0 0
  %1966 = vmatpush1.bf16.msra.mxu0 %v1850
  %1967 = vmatprep.subr.bf16.mxu0 0
  %1968 = vmatpush1.bf16.msra.mxu0 %v1851
  %1969 = vmatprep.subr.bf16.mxu0 0
  %1970 = vmatpush1.bf16.msra.mxu0 %v1852
  %1971 = vmatprep.subr.bf16.mxu0 0
  %1972 = vmatpush1.bf16.msra.mxu0 %v1853
  %1973 = vmatprep.subr.bf16.mxu0 0
  %1974 = vmatpush1.bf16.msra.mxu0 %v1854
  %1975 = vmatprep.subr.bf16.mxu0 0
  %1976 = vmatpush1.bf16.msra.mxu0 0
  %1977 = vmatprep.subr.bf16.mxu0 0
  %1978 = vmatpush1.bf16.msra.mxu0 0
  %1979 = vmatprep.subr.bf16.mxu0 0
  %1980 = vmatpush1.bf16.msra.mxu0 0
  %1981 = vmatprep.subr.bf16.mxu0 0
  %1982 = vmatpush1.bf16.msra.mxu0 0
  %1983 = vmatprep.mubr.bf16.mxu0 %v1940
  %1984 = vmatmul.mubr.bf16.gmra.mrb[0].mxu0 %v1927
  %v1985 = vpop.f32.mrb[0].mxu0
  %v1986 = vadd.f32 %v1866, %v1985
  %v1987 = vpop.f32.mrb[0].mxu0
  %v1988 = vpop.f32.mrb[0].mxu0
  %v1989 = vadd.f32 %v1871, %v1988
  %v1990 = vpop.f32.mrb[0].mxu0
  %1991 = vmatprep.mubr.bf16.mxu0 %v1943
  %1992 = vmatmul.mubr.bf16.gmra.mrb[0].mxu0 %v1929
  %v1993 = vpop.f32.mrb[0].mxu0
  %v1994 = vadd.f32 %v1876, %v1993
  %v1995 = vpop.f32.mrb[0].mxu0
  %v1996 = vpop.f32.mrb[0].mxu0
  %v1997 = vadd.f32 %v1881, %v1996
  %v1998 = vpop.f32.mrb[0].mxu0
  %1999 = vmatprep.mubr.bf16.mxu0 %v1946
  %2000 = vmatmul.mubr.bf16.gmra.mrb[0].mxu0 %v1931
  %v2001 = vpop.f32.mrb[0].mxu0
  %v2002 = vadd.f32 %v1886, %v2001
  %v2003 = vpop.f32.mrb[0].mxu0
  %v2004 = vpop.f32.mrb[0].mxu0
  %v2005 = vadd.f32 %v1891, %v2004
  %v2006 = vpop.f32.mrb[0].mxu0
  %2007 = vmatprep.mubr.bf16.mxu0 %v1949
  %2008 = vmatmul.mubr.bf16.gmra.mrb[0].mxu0 %v1933
  %v2009 = vpop.f32.mrb[0].mxu0
  %v2010 = vadd.f32 %v1896, %v2009
  %v2011 = vpop.f32.mrb[0].mxu0
  %v2012 = vpop.f32.mrb[0].mxu0
  %v2013 = vadd.f32 %v1901, %v2012
  %v2014 = vpop.f32.mrb[0].mxu0
  %2015 = vdwg.mxu0
  %v2016 = vmax.f32 %v1986, 0.0
  %v2017 = vmax.f32 %v1989, 0.0
  %v2018 = vmax.f32 %v1994, 0.0
  %v2019 = vmax.f32 %v1997, 0.0
  %v2020 = vmax.f32 %v2002, 0.0
  %v2021 = vmax.f32 %v2005, 0.0
  %v2022 = vmax.f32 %v2010, 0.0
  %v2023 = vmax.f32 %v2013, 0.0
  %v2024 = vld [vmem:[%s18] sm:$0xf]
  %v2025 = vld [vmem:[%s18 + $0x4] sm:$0x3]
  %2034 = vrot.lane.b32.xlu0 %v2016, 127
  %v2035 = vpop.permute.xlu0 %2034
  %2036 = vrot.lane.b32.xlu0 %v2017, 127
  %v2037 = vpop.permute.xlu0 %2036
  %2038 = vrot.lane.b32.xlu0 %v2018, 127
  %v2039 = vpop.permute.xlu0 %2038
  %2040 = vrot.lane.b32.xlu0 %v2019, 127
  %v2041 = vpop.permute.xlu0 %2040
  %2042 = vrot.lane.b32.xlu0 %v2020, 127
  %v2043 = vpop.permute.xlu0 %2042
  %2044 = vrot.lane.b32.xlu0 %v2021, 127
  %v2045 = vpop.permute.xlu0 %2044
  %2046 = vrot.lane.b32.xlu0 %v2022, 127
  %v2047 = vpop.permute.xlu0 %2046
  %2048 = vrot.lane.b32.xlu0 %v2023, 127
  %v2049 = vpop.permute.xlu0 %2048
  %v2058 = vmax.f32 %v2016, %v2035
  %v2059 = vmax.f32 %v2017, %v2037
  %v2060 = vmax.f32 %v2018, %v2039
  %v2061 = vmax.f32 %v2019, %v2041
  %v2062 = vmax.f32 %v2020, %v2043
  %v2063 = vmax.f32 %v2021, %v2045
  %v2064 = vmax.f32 %v2022, %v2047
  %v2065 = vmax.f32 %v2023, %v2049
  %v2066 = vpack.c.bf16 %v2059, %v2058
  %v2067 = vpack.c.bf16 %v2061, %v2060
  %v2068 = vpack.c.bf16 %v2063, %v2062
  %v2069 = vpack.c.bf16 %v2065, %v2064
  %v2072 = vunpack.c.l.b16 %v2024
  %v2073 = vunpack.c.l.b16 %v2025
  %v2074 = vpack.c.b16 %v2073, %v2072
  %vm2075 = vcmask 89088
  %v2077 = vsel %vm2075, %v2066, 0
  %v2080 = vsel %vm2075, %v2067, 0
  %v2083 = vsel %vm2075, %v2068, 0
  %v2086 = vsel %vm2075, %v2069, 0
  %vm2088 = vcmask 1045504
  %v2089 = vsel %vm1024, 4294967295, 65535
  %v2090 = vsel %vm2088, %v2089, 0
  %v2092 = vand.u32 %v2074, %v2090
  %2094 = vmatprep.subr.bf16.mxu0 0
  %2095 = vmatpush1.bf16.msra.mxu0 %v2092
  %2096 = vmatprep.subr.bf16.mxu0 0
  %2097 = vmatpush1.bf16.msra.mxu0 0
  %2098 = vmatprep.subr.bf16.mxu0 0
  %2099 = vmatpush1.bf16.msra.mxu0 0
  %2100 = vmatprep.subr.bf16.mxu0 0
  %2101 = vmatpush1.bf16.msra.mxu0 0
  %2102 = vmatprep.subr.bf16.mxu0 0
  %2103 = vmatpush1.bf16.msra.mxu0 0
  %2104 = vmatprep.subr.bf16.mxu0 0
  %2105 = vmatpush1.bf16.msra.mxu0 0
  %2106 = vmatprep.subr.bf16.mxu0 0
  %2107 = vmatpush1.bf16.msra.mxu0 0
  %2108 = vmatprep.subr.bf16.mxu0 0
  %2109 = vmatpush1.bf16.msra.mxu0 0
  %2110 = vmatprep.subr.bf16.mxu0 0
  %2111 = vmatpush1.bf16.msra.mxu0 0
  %2112 = vmatprep.subr.bf16.mxu0 0
  %2113 = vmatpush1.bf16.msra.mxu0 0
  %2114 = vmatprep.subr.bf16.mxu0 0
  %2115 = vmatpush1.bf16.msra.mxu0 0
  %2116 = vmatprep.subr.bf16.mxu0 0
  %2117 = vmatpush1.bf16.msra.mxu0 0
  %2118 = vmatprep.subr.bf16.mxu0 0
  %2119 = vmatpush1.bf16.msra.mxu0 0
  %2120 = vmatprep.subr.bf16.mxu0 0
  %2121 = vmatpush1.bf16.msra.mxu0 0
  %2122 = vmatprep.subr.bf16.mxu0 0
  %2123 = vmatpush1.bf16.msra.mxu0 0
  %2124 = vmatprep.subr.bf16.mxu0 0
  %2125 = vmatpush1.bf16.msra.mxu0 0
  %2126 = vmatprep.mubr.bf16.mxu0 0
  %2127 = vmatmul.mubr.bf16.gmra.mrb[0].mxu0 %v2077
  %v2128 = vpop.f32.mrb[0].mxu0
  %v2129 = vadd.f32 0.0, %v2128
  %v2130 = vpop.f32.mrb[0].mxu0
  %v2131 = vpop.f32.mrb[0].mxu0
  %v2132 = vadd.f32 0.0, %v2131
  %v2133 = vpop.f32.mrb[0].mxu0
  %2134 = vmatprep.mubr.bf16.mxu0 0
  %2135 = vmatmul.mubr.bf16.gmra.mrb[0].mxu0 %v2080
  %v2136 = vpop.f32.mrb[0].mxu0
  %v2137 = vadd.f32 0.0, %v2136
  %v2138 = vpop.f32.mrb[0].mxu0
  %v2139 = vpop.f32.mrb[0].mxu0
  %v2140 = vadd.f32 0.0, %v2139
  %v2141 = vpop.f32.mrb[0].mxu0
  %2142 = vmatprep.mubr.bf16.mxu0 0
  %2143 = vmatmul.mubr.bf16.gmra.mrb[0].mxu0 %v2083
  %v2144 = vpop.f32.mrb[0].mxu0
  %v2145 = vadd.f32 0.0, %v2144
  %v2146 = vpop.f32.mrb[0].mxu0
  %v2147 = vpop.f32.mrb[0].mxu0
  %v2148 = vadd.f32 0.0, %v2147
  %v2149 = vpop.f32.mrb[0].mxu0
  %2150 = vmatprep.mubr.bf16.mxu0 0
  %2151 = vmatmul.mubr.bf16.gmra.mrb[0].mxu0 %v2086
  %v2152 = vpop.f32.mrb[0].mxu0
  %v2153 = vadd.f32 0.0, %v2152
  %v2154 = vpop.f32.mrb[0].mxu0
  %v2155 = vpop.f32.mrb[0].mxu0
  %v2156 = vadd.f32 0.0, %v2155
  %v2157 = vpop.f32.mrb[0].mxu0
  %2158 = vdwg.mxu0
  %v2159 = vld [vmem:[%s19] sm:$0x3]
  %v2160 = vpack.c.bf16 %v2132, %v2129
  %v2161 = vpack.c.bf16 %v2140, %v2137
  %v2162 = vpack.c.bf16 %v2148, %v2145
  %v2163 = vpack.c.bf16 %v2156, %v2153
  %vm2164 = vcmask 31744
  %v2166 = vsel %vm2164, %v2160, 0
  %v2169 = vsel %vm2164, %v2161, 0
  %v2172 = vsel %vm2164, %v2162, 0
  %v2175 = vsel %vm2164, %v2163, 0
  %vm2177 = vcmask 1041408
  %v2179 = vsel %vm2177, %v2159, 0
  %2181 = vmatprep.subr.bf16.mxu0 0
  %2182 = vmatpush1.bf16.msra.mxu0 %v2179
  %2183 = vmatprep.subr.bf16.mxu0 0
  %2184 = vmatpush1.bf16.msra.mxu0 0
  %2185 = vmatprep.subr.bf16.mxu0 0
  %2186 = vmatpush1.bf16.msra.mxu0 0
  %2187 = vmatprep.subr.bf16.mxu0 0
  %2188 = vmatpush1.bf16.msra.mxu0 0
  %2189 = vmatprep.subr.bf16.mxu0 0
  %2190 = vmatpush1.bf16.msra.mxu0 0
  %2191 = vmatprep.subr.bf16.mxu0 0
  %2192 = vmatpush1.bf16.msra.mxu0 0
  %2193 = vmatprep.subr.bf16.mxu0 0
  %2194 = vmatpush1.bf16.msra.mxu0 0
  %2195 = vmatprep.subr.bf16.mxu0 0
  %2196 = vmatpush1.bf16.msra.mxu0 0
  %2197 = vmatprep.subr.bf16.mxu0 0
  %2198 = vmatpush1.bf16.msra.mxu0 0
  %2199 = vmatprep.subr.bf16.mxu0 0
  %2200 = vmatpush1.bf16.msra.mxu0 0
  %2201 = vmatprep.subr.bf16.mxu0 0
  %2202 = vmatpush1.bf16.msra.mxu0 0
  %2203 = vmatprep.subr.bf16.mxu0 0
  %2204 = vmatpush1.bf16.msra.mxu0 0
  %2205 = vmatprep.subr.bf16.mxu0 0
  %2206 = vmatpush1.bf16.msra.mxu0 0
  %2207 = vmatprep.subr.bf16.mxu0 0
  %2208 = vmatpush1.bf16.msra.mxu0 0
  %2209 = vmatprep.subr.bf16.mxu0 0
  %2210 = vmatpush1.bf16.msra.mxu0 0
  %2211 = vmatprep.subr.bf16.mxu0 0
  %2212 = vmatpush1.bf16.msra.mxu0 0
  %2213 = vmatprep.mubr.bf16.mxu0 0
  %2214 = vmatmul.mubr.bf16.gmra.mrb[0].mxu0 %v2166
  %v2215 = vpop.f32.mrb[0].mxu0
  %v2216 = vadd.f32 %v1749, %v2215
  %v2217 = vpop.f32.mrb[0].mxu0
  %v2218 = vpop.f32.mrb[0].mxu0
  %v2219 = vadd.f32 %v1752, %v2218
  %v2220 = vpop.f32.mrb[0].mxu0
  %2221 = vmatprep.mubr.bf16.mxu0 0
  %2222 = vmatmul.mubr.bf16.gmra.mrb[0].mxu0 %v2169
  %v2223 = vpop.f32.mrb[0].mxu0
  %v2224 = vadd.f32 %v1757, %v2223
  %v2225 = vpop.f32.mrb[0].mxu0
  %v2226 = vpop.f32.mrb[0].mxu0
  %v2227 = vadd.f32 %v1760, %v2226
  %v2228 = vpop.f32.mrb[0].mxu0
  %2229 = vmatprep.mubr.bf16.mxu0 0
  %2230 = vmatmul.mubr.bf16.gmra.mrb[0].mxu0 %v2172
  %v2231 = vpop.f32.mrb[0].mxu0
  %v2232 = vadd.f32 %v1765, %v2231
  %v2233 = vpop.f32.mrb[0].mxu0
  %v2234 = vpop.f32.mrb[0].mxu0
  %v2235 = vadd.f32 %v1768, %v2234
  %v2236 = vpop.f32.mrb[0].mxu0
  %2237 = vmatprep.mubr.bf16.mxu0 0
  %2238 = vmatmul.mubr.bf16.gmra.mrb[0].mxu0 %v2175
  %v2239 = vpop.f32.mrb[0].mxu0
  %v2240 = vadd.f32 %v1773, %v2239
  %v2241 = vpop.f32.mrb[0].mxu0
  %v2242 = vpop.f32.mrb[0].mxu0
  %v2243 = vadd.f32 %v1776, %v2242
  %v2244 = vpop.f32.mrb[0].mxu0
  %2245 = vdwg.mxu0
  %v2246 = vld [vmem:[%s7] sm:$0xff]
  %v2247 = vld [vmem:[%s7 + $0x8] sm:$0xff]
  %v2248 = vld [vmem:[%s7 + $0x10] sm:$0xff]
  %v2249 = vld [vmem:[%s7 + $0x18] sm:$0xff]
  %v2250 = vld [vmem:[%s7 + $0x20] sm:$0xff]
  %v2251 = vld [vmem:[%s7 + $0x28] sm:$0xff]
  %v2252 = vld [vmem:[%s7 + $0x30] sm:$0xff]
  %v2253 = vld [vmem:[%s7 + $0x38] sm:$0xff]
  %v2254 = vld [vmem:[%s10] sm:$0xff]
  %v2255 = vld [vmem:[%s10 + $0x8] sm:$0xff]
  %v2256 = vld [vmem:[%s10 + $0x10] sm:$0xff]
  %v2257 = vld [vmem:[%s10 + $0x18] sm:$0xff]
  %v2258 = vld [vmem:[%s10 + $0x20] sm:$0xff]
  %v2259 = vld [vmem:[%s10 + $0x28] sm:$0xff]
  %v2260 = vld [vmem:[%s10 + $0x30] sm:$0xff]
  %v2261 = vld [vmem:[%s10 + $0x38] sm:$0xff]
  %v2262 = vld [vmem:[%s11] sm:$0xff]
  %v2263 = vld [vmem:[%s11 + $0x8] sm:$0xff]
  %v2264 = vld [vmem:[%s11 + $0x10] sm:$0xff]
  %v2265 = vld [vmem:[%s11 + $0x18] sm:$0xff]
  %v2266 = vld [vmem:[%s11 + $0x20] sm:$0xff]
  %v2267 = vld [vmem:[%s11 + $0x28] sm:$0xff]
  %v2268 = vld [vmem:[%s11 + $0x30] sm:$0xff]
  %v2269 = vld [vmem:[%s11 + $0x38] sm:$0xff]
  %2271 = vset.pattern.permute.xlu0 0
  %2272 = vperm.xlu0 %2271, %v2254
  %v2273 = vpop.permute.xlu0 %2272
  %2276 = vset.pattern.permute.xlu0 0
  %2277 = vperm.xlu0 %2276, %v2255
  %v2278 = vpop.permute.xlu0 %2277
  %2281 = vset.pattern.permute.xlu0 0
  %2282 = vperm.xlu0 %2281, %v2256
  %v2283 = vpop.permute.xlu0 %2282
  %2286 = vset.pattern.permute.xlu0 0
  %2287 = vperm.xlu0 %2286, %v2257
  %v2288 = vpop.permute.xlu0 %2287
  %2291 = vset.pattern.permute.xlu0 0
  %2292 = vperm.xlu0 %2291, %v2258
  %v2293 = vpop.permute.xlu0 %2292
  %2296 = vset.pattern.permute.xlu0 0
  %2297 = vperm.xlu0 %2296, %v2259
  %v2298 = vpop.permute.xlu0 %2297
  %2301 = vset.pattern.permute.xlu0 0
  %2302 = vperm.xlu0 %2301, %v2260
  %v2303 = vpop.permute.xlu0 %2302
  %2306 = vset.pattern.permute.xlu0 0
  %2307 = vperm.xlu0 %2306, %v2261
  %v2308 = vpop.permute.xlu0 %2307
  %v2310 = vmul.f32 %v2216, %v2273
  %v2311 = vmul.f32 %v2219, %v2278
  %v2312 = vmul.f32 %v2224, %v2283
  %v2313 = vmul.f32 %v2227, %v2288
  %v2314 = vmul.f32 %v2232, %v2293
  %v2315 = vmul.f32 %v2235, %v2298
  %v2316 = vmul.f32 %v2240, %v2303
  %v2317 = vmul.f32 %v2243, %v2308
  %2319 = vset.pattern.permute.xlu0 0
  %2320 = vperm.xlu0 %2319, %v2262
  %v2321 = vpop.permute.xlu0 %2320
  %2324 = vset.pattern.permute.xlu0 0
  %2325 = vperm.xlu0 %2324, %v2263
  %v2326 = vpop.permute.xlu0 %2325
  %2329 = vset.pattern.permute.xlu0 0
  %2330 = vperm.xlu0 %2329, %v2264
  %v2331 = vpop.permute.xlu0 %2330
  %2334 = vset.pattern.permute.xlu0 0
  %2335 = vperm.xlu0 %2334, %v2265
  %v2336 = vpop.permute.xlu0 %2335
  %2339 = vset.pattern.permute.xlu0 0
  %2340 = vperm.xlu0 %2339, %v2266
  %v2341 = vpop.permute.xlu0 %2340
  %2344 = vset.pattern.permute.xlu0 0
  %2345 = vperm.xlu0 %2344, %v2267
  %v2346 = vpop.permute.xlu0 %2345
  %2349 = vset.pattern.permute.xlu0 0
  %2350 = vperm.xlu0 %2349, %v2268
  %v2351 = vpop.permute.xlu0 %2350
  %2354 = vset.pattern.permute.xlu0 0
  %2355 = vperm.xlu0 %2354, %v2269
  %v2356 = vpop.permute.xlu0 %2355
  %v2358 = vadd.f32 %v2310, %v2321
  %v2359 = vadd.f32 %v2311, %v2326
  %v2360 = vadd.f32 %v2312, %v2331
  %v2361 = vadd.f32 %v2313, %v2336
  %v2362 = vadd.f32 %v2314, %v2341
  %v2363 = vadd.f32 %v2315, %v2346
  %v2364 = vadd.f32 %v2316, %v2351
  %v2365 = vadd.f32 %v2317, %v2356
  %v2366 = vmax.f32 %v2358, 0.0
  %v2367 = vmax.f32 %v2359, 0.0
  %v2368 = vmax.f32 %v2360, 0.0
  %v2369 = vmax.f32 %v2361, 0.0
  %v2370 = vmax.f32 %v2362, 0.0
  %v2371 = vmax.f32 %v2363, 0.0
  %v2372 = vmax.f32 %v2364, 0.0
  %v2373 = vmax.f32 %v2365, 0.0
  %2382 = vrot.lane.b32.xlu0 %v2366, 1
  %v2383 = vpop.permute.xlu0 %2382
  %2384 = vrot.lane.b32.xlu0 %v2367, 1
  %v2385 = vpop.permute.xlu0 %2384
  %2386 = vrot.lane.b32.xlu0 %v2368, 1
  %v2387 = vpop.permute.xlu0 %2386
  %2388 = vrot.lane.b32.xlu0 %v2369, 1
  %v2389 = vpop.permute.xlu0 %2388
  %2390 = vrot.lane.b32.xlu0 %v2370, 1
  %v2391 = vpop.permute.xlu0 %2390
  %2392 = vrot.lane.b32.xlu0 %v2371, 1
  %v2393 = vpop.permute.xlu0 %2392
  %2394 = vrot.lane.b32.xlu0 %v2372, 1
  %v2395 = vpop.permute.xlu0 %2394
  %2396 = vrot.lane.b32.xlu0 %v2373, 1
  %v2397 = vpop.permute.xlu0 %2396
  %vm2406 = vcmask 121864
  %2407 = vst.msk [vmem:[#allocation2] sm:$0xff] %vm2406, %v2383
  %2408 = vst.msk [vmem:[#allocation2 + $0x18] sm:$0xff] %vm2406, %v2385
  %2409 = vst.msk [vmem:[#allocation2 + $0x30] sm:$0xff] %vm2406, %v2387
  %2410 = vst.msk [vmem:[#allocation2 + $0x48] sm:$0xff] %vm2406, %v2389
  %2411 = vst.msk [vmem:[#allocation2 + $0x60] sm:$0xff] %vm2406, %v2391
  %2412 = vst.msk [vmem:[#allocation2 + $0x78] sm:$0xff] %vm2406, %v2393
  %2413 = vst.msk [vmem:[#allocation2 + $0x90] sm:$0xff] %vm2406, %v2395
  %2414 = vst.msk [vmem:[#allocation2 + $0xa8] sm:$0xff] %vm2406, %v2397
  %v2415 = vlaneseq
  %v2416 = vand.u32 %v2415, 127
  %vm2417 = vcmp.eq.s32.totalorder %v2416, 0
  %vm2418 = vcmp.eq.s32.totalorder %v2416, 6
  %vm2419 = vcmp.eq.s32.totalorder %v2416, 7
  %vm2420 = vmor %vm2417, %vm2419
  %vm2421 = vcmp.eq.s32.totalorder %v2416, 13
  %vm2422 = vmor %vm2418, %vm2421
  %v2423 = vld [vmem:[#allocation2] sm:$0xff]
  %v2424 = vld [vmem:[#allocation2 + $0x18] sm:$0xff]
  %v2425 = vld [vmem:[#allocation2 + $0x30] sm:$0xff]
  %v2426 = vld [vmem:[#allocation2 + $0x48] sm:$0xff]
  %v2427 = vld [vmem:[#allocation2 + $0x60] sm:$0xff]
  %v2428 = vld [vmem:[#allocation2 + $0x78] sm:$0xff]
  %v2429 = vld [vmem:[#allocation2 + $0x90] sm:$0xff]
  %v2430 = vld [vmem:[#allocation2 + $0xa8] sm:$0xff]
  %v2431 = vsel %vm2420, 1, 0
  %vm2432 = vcmp.eq.s32.totalorder %v2431, 1
  %v2433 = vsel %vm2432, 0.0, %v2423
  %v2434 = vsel %vm2432, 0.0, %v2424
  %v2435 = vsel %vm2432, 0.0, %v2425
  %v2436 = vsel %vm2432, 0.0, %v2426
  %v2437 = vsel %vm2432, 0.0, %v2427
  %v2438 = vsel %vm2432, 0.0, %v2428
  %v2439 = vsel %vm2432, 0.0, %v2429
  %v2440 = vsel %vm2432, 0.0, %v2430
  %v2441 = vsel %vm2422, 1, 0
  %vm2442 = vcmp.eq.s32.totalorder %v2441, 1
  %2451 = vrot.lane.b32.xlu0 %v2423, 126
  %v2452 = vpop.permute.xlu0 %2451
  %2453 = vrot.lane.b32.xlu0 %v2424, 126
  %v2454 = vpop.permute.xlu0 %2453
  %2455 = vrot.lane.b32.xlu0 %v2425, 126
  %v2456 = vpop.permute.xlu0 %2455
  %2457 = vrot.lane.b32.xlu0 %v2426, 126
  %v2458 = vpop.permute.xlu0 %2457
  %2459 = vrot.lane.b32.xlu0 %v2427, 126
  %v2460 = vpop.permute.xlu0 %2459
  %2461 = vrot.lane.b32.xlu0 %v2428, 126
  %v2462 = vpop.permute.xlu0 %2461
  %2463 = vrot.lane.b32.xlu0 %v2429, 126
  %v2464 = vpop.permute.xlu0 %2463
  %2465 = vrot.lane.b32.xlu0 %v2430, 126
  %v2466 = vpop.permute.xlu0 %2465
  %v2475 = vsel %vm2442, 0.0, %v2452
  %v2476 = vsel %vm2442, 0.0, %v2454
  %v2477 = vsel %vm2442, 0.0, %v2456
  %v2478 = vsel %vm2442, 0.0, %v2458
  %v2479 = vsel %vm2442, 0.0, %v2460
  %v2480 = vsel %vm2442, 0.0, %v2462
  %v2481 = vsel %vm2442, 0.0, %v2464
  %v2482 = vsel %vm2442, 0.0, %v2466
  %v2483 = vpack.c.bf16 %v2434, %v2433
  %v2484 = vpack.c.bf16 %v2436, %v2435
  %v2485 = vpack.c.bf16 %v2438, %v2437
  %v2486 = vpack.c.bf16 %v2440, %v2439
  %v2487 = vpack.c.bf16 %v2367, %v2366
  %v2488 = vpack.c.bf16 %v2369, %v2368
  %v2489 = vpack.c.bf16 %v2371, %v2370
  %v2490 = vpack.c.bf16 %v2373, %v2372
  %v2491 = vpack.c.bf16 %v2476, %v2475
  %v2492 = vpack.c.bf16 %v2478, %v2477
  %v2493 = vpack.c.bf16 %v2480, %v2479
  %v2494 = vpack.c.bf16 %v2482, %v2481
  %v2503 = vunpack.c.l.b16 %v2246
  %v2504 = vunpack.c.h.b16 %v2246
  %v2505 = vunpack.c.l.b16 %v2247
  %v2506 = vunpack.c.h.b16 %v2247
  %v2507 = vunpack.c.l.b16 %v2248
  %v2508 = vunpack.c.h.b16 %v2248
  %v2509 = vunpack.c.l.b16 %v2249
  %v2510 = vunpack.c.h.b16 %v2249
  %v2511 = vunpack.c.l.b16 %v2250
  %v2512 = vunpack.c.h.b16 %v2250
  %v2513 = vunpack.c.l.b16 %v2251
  %v2514 = vunpack.c.h.b16 %v2251
  %v2515 = vunpack.c.l.b16 %v2252
  %v2516 = vunpack.c.h.b16 %v2252
  %v2517 = vunpack.c.l.b16 %v2253
  %v2518 = vunpack.c.h.b16 %v2253
  %v2519 = vpack.c.b16 %v2505, %v2503
  %v2520 = vpack.c.b16 %v2506, %v2504
  %v2521 = vpack.c.b16 %v2509, %v2507
  %v2522 = vpack.c.b16 %v2510, %v2508
  %v2523 = vpack.c.b16 %v2513, %v2511
  %v2524 = vpack.c.b16 %v2514, %v2512
  %v2525 = vpack.c.b16 %v2517, %v2515
  %v2526 = vpack.c.b16 %v2518, %v2516
  %v2532 = vsel %vm1408, %v2520, 0
  %v2535 = vsel %vm1408, %v2522, 0
  %v2538 = vsel %vm1408, %v2524, 0
  %v2541 = vsel %vm1408, %v2526, 0
  %2543 = vmatprep.subr.bf16.mxu0 0
  %2544 = vmatpush1.bf16.msra.mxu0 %v2483
  %2545 = vmatprep.subr.bf16.mxu0 0
  %2546 = vmatpush1.bf16.msra.mxu0 %v2484
  %2547 = vmatprep.subr.bf16.mxu0 0
  %2548 = vmatpush1.bf16.msra.mxu0 %v2485
  %2549 = vmatprep.subr.bf16.mxu0 0
  %2550 = vmatpush1.bf16.msra.mxu0 %v2486
  %2551 = vmatprep.subr.bf16.mxu0 0
  %2552 = vmatpush1.bf16.msra.mxu0 %v2487
  %2553 = vmatprep.subr.bf16.mxu0 0
  %2554 = vmatpush1.bf16.msra.mxu0 %v2488
  %2555 = vmatprep.subr.bf16.mxu0 0
  %2556 = vmatpush1.bf16.msra.mxu0 %v2489
  %2557 = vmatprep.subr.bf16.mxu0 0
  %2558 = vmatpush1.bf16.msra.mxu0 %v2490
  %2559 = vmatprep.subr.bf16.mxu0 0
  %2560 = vmatpush1.bf16.msra.mxu0 %v2491
  %2561 = vmatprep.subr.bf16.mxu0 0
  %2562 = vmatpush1.bf16.msra.mxu0 %v2492
  %2563 = vmatprep.subr.bf16.mxu0 0
  %2564 = vmatpush1.bf16.msra.mxu0 %v2493
  %2565 = vmatprep.subr.bf16.mxu0 0
  %2566 = vmatpush1.bf16.msra.mxu0 %v2494
  %2567 = vmatprep.subr.bf16.mxu0 0
  %2568 = vmatpush1.bf16.msra.mxu0 0
  %2569 = vmatprep.subr.bf16.mxu0 0
  %2570 = vmatpush1.bf16.msra.mxu0 0
  %2571 = vmatprep.subr.bf16.mxu0 0
  %2572 = vmatpush1.bf16.msra.mxu0 0
  %2573 = vmatprep.subr.bf16.mxu0 0
  %2574 = vmatpush1.bf16.msra.mxu0 0
  %2575 = vmatprep.mubr.bf16.mxu0 %v2532
  %2576 = vmatmul.mubr.bf16.gmra.mrb[0].mxu0 %v2519
  %v2577 = vpop.f32.mrb[0].mxu0
  %v2578 = vadd.f32 0.0, %v2577
  %v2579 = vpop.f32.mrb[0].mxu0
  %v2580 = vpop.f32.mrb[0].mxu0
  %v2581 = vadd.f32 0.0, %v2580
  %v2582 = vpop.f32.mrb[0].mxu0
  %2583 = vmatprep.mubr.bf16.mxu0 %v2535
  %2584 = vmatmul.mubr.bf16.gmra.mrb[0].mxu0 %v2521
  %v2585 = vpop.f32.mrb[0].mxu0
  %v2586 = vadd.f32 0.0, %v2585
  %v2587 = vpop.f32.mrb[0].mxu0
  %v2588 = vpop.f32.mrb[0].mxu0
  %v2589 = vadd.f32 0.0, %v2588
  %v2590 = vpop.f32.mrb[0].mxu0
  %2591 = vmatprep.mubr.bf16.mxu0 %v2538
  %2592 = vmatmul.mubr.bf16.gmra.mrb[0].mxu0 %v2523
  %v2593 = vpop.f32.mrb[0].mxu0
  %v2594 = vadd.f32 0.0, %v2593
  %v2595 = vpop.f32.mrb[0].mxu0
  %v2596 = vpop.f32.mrb[0].mxu0
  %v2597 = vadd.f32 0.0, %v2596
  %v2598 = vpop.f32.mrb[0].mxu0
  %2599 = vmatprep.mubr.bf16.mxu0 %v2541
  %2600 = vmatmul.mubr.bf16.gmra.mrb[0].mxu0 %v2525
  %v2601 = vpop.f32.mrb[0].mxu0
  %v2602 = vadd.f32 0.0, %v2601
  %v2603 = vpop.f32.mrb[0].mxu0
  %v2604 = vpop.f32.mrb[0].mxu0
  %v2605 = vadd.f32 0.0, %v2604
  %v2606 = vpop.f32.mrb[0].mxu0
  %2607 = vdwg.mxu0
  %v2608 = vld [vmem:[%s20] sm:$0xf]
  %v2609 = vld [vmem:[%s20 + $0x4] sm:$0x7]
  %v2610 = vpack.c.bf16 %v2581, %v2578
  %v2611 = vpack.c.bf16 %v2589, %v2586
  %v2612 = vpack.c.bf16 %v2597, %v2594
  %v2613 = vpack.c.bf16 %v2605, %v2602
  %v2616 = vunpack.c.l.b16 %v2608
  %v2617 = vunpack.c.l.b16 %v2609
  %v2618 = vpack.c.b16 %v2617, %v2616
  %vm2619 = vcmask 113664
  %v2621 = vsel %vm2619, %v2610, 0
  %v2624 = vsel %vm2619, %v2611, 0
  %v2627 = vsel %vm2619, %v2612, 0
  %v2630 = vsel %vm2619, %v2613, 0
  %vm2632 = vcmask 1046528
  %v2634 = vsel %vm2632, %v2618, 0
  %2636 = vmatprep.subr.bf16.mxu0 0
  %2637 = vmatpush1.bf16.msra.mxu0 %v2634
  %2638 = vmatprep.subr.bf16.mxu0 0
  %2639 = vmatpush1.bf16.msra.mxu0 0
  %2640 = vmatprep.subr.bf16.mxu0 0
  %2641 = vmatpush1.bf16.msra.mxu0 0
  %2642 = vmatprep.subr.bf16.mxu0 0
  %2643 = vmatpush1.bf16.msra.mxu0 0
  %2644 = vmatprep.subr.bf16.mxu0 0
  %2645 = vmatpush1.bf16.msra.mxu0 0
  %2646 = vmatprep.subr.bf16.mxu0 0
  %2647 = vmatpush1.bf16.msra.mxu0 0
  %2648 = vmatprep.subr.bf16.mxu0 0
  %2649 = vmatpush1.bf16.msra.mxu0 0
  %2650 = vmatprep.subr.bf16.mxu0 0
  %2651 = vmatpush1.bf16.msra.mxu0 0
  %2652 = vmatprep.subr.bf16.mxu0 0
  %2653 = vmatpush1.bf16.msra.mxu0 0
  %2654 = vmatprep.subr.bf16.mxu0 0
  %2655 = vmatpush1.bf16.msra.mxu0 0
  %2656 = vmatprep.subr.bf16.mxu0 0
  %2657 = vmatpush1.bf16.msra.mxu0 0
  %2658 = vmatprep.subr.bf16.mxu0 0
  %2659 = vmatpush1.bf16.msra.mxu0 0
  %2660 = vmatprep.subr.bf16.mxu0 0
  %2661 = vmatpush1.bf16.msra.mxu0 0
  %2662 = vmatprep.subr.bf16.mxu0 0
  %2663 = vmatpush1.bf16.msra.mxu0 0
  %2664 = vmatprep.subr.bf16.mxu0 0
  %2665 = vmatpush1.bf16.msra.mxu0 0
  %2666 = vmatprep.subr.bf16.mxu0 0
  %2667 = vmatpush1.bf16.msra.mxu0 0
  %2668 = vmatprep.mubr.bf16.mxu0 0
  %2669 = vmatmul.mubr.bf16.gmra.mrb[0].mxu0 %v2621
  %v2670 = vpop.f32.mrb[0].mxu0
  %v2671 = vadd.f32 %v1130, %v2670
  %v2672 = vpop.f32.mrb[0].mxu0
  %v2673 = vpop.f32.mrb[0].mxu0
  %v2674 = vadd.f32 %v1133, %v2673
  %v2675 = vpop.f32.mrb[0].mxu0
  %2676 = vmatprep.mubr.bf16.mxu0 0
  %2677 = vmatmul.mubr.bf16.gmra.mrb[0].mxu0 %v2624
  %v2678 = vpop.f32.mrb[0].mxu0
  %v2679 = vadd.f32 %v1138, %v2678
  %v2680 = vpop.f32.mrb[0].mxu0
  %v2681 = vpop.f32.mrb[0].mxu0
  %v2682 = vadd.f32 %v1141, %v2681
  %v2683 = vpop.f32.mrb[0].mxu0
  %2684 = vmatprep.mubr.bf16.mxu0 0
  %2685 = vmatmul.mubr.bf16.gmra.mrb[0].mxu0 %v2627
  %v2686 = vpop.f32.mrb[0].mxu0
  %v2687 = vadd.f32 %v1146, %v2686
  %v2688 = vpop.f32.mrb[0].mxu0
  %v2689 = vpop.f32.mrb[0].mxu0
  %v2690 = vadd.f32 %v1149, %v2689
  %v2691 = vpop.f32.mrb[0].mxu0
  %2692 = vmatprep.mubr.bf16.mxu0 0
  %2693 = vmatmul.mubr.bf16.gmra.mrb[0].mxu0 %v2630
  %v2694 = vpop.f32.mrb[0].mxu0
  %v2695 = vadd.f32 %v1154, %v2694
  %v2696 = vpop.f32.mrb[0].mxu0
  %v2697 = vpop.f32.mrb[0].mxu0
  %v2698 = vadd.f32 %v1157, %v2697
  %v2699 = vpop.f32.mrb[0].mxu0
  %2700 = vdwg.mxu0
  %v2701 = vld [vmem:[%s8] sm:$0xff]
  %v2702 = vld [vmem:[%s12] sm:$0xff]
  %v2703 = vld [vmem:[%s12 + $0x8] sm:$0xff]
  %v2704 = vld [vmem:[%s12 + $0x10] sm:$0xff]
  %v2705 = vld [vmem:[%s12 + $0x18] sm:$0xff]
  %v2706 = vld [vmem:[%s12 + $0x20] sm:$0xff]
  %v2707 = vld [vmem:[%s12 + $0x28] sm:$0xff]
  %v2708 = vld [vmem:[%s12 + $0x30] sm:$0xff]
  %v2709 = vld [vmem:[%s12 + $0x38] sm:$0xff]
  %v2710 = vld [vmem:[%s13] sm:$0xff]
  %v2711 = vld [vmem:[%s13 + $0x8] sm:$0xff]
  %v2712 = vld [vmem:[%s13 + $0x10] sm:$0xff]
  %v2713 = vld [vmem:[%s13 + $0x18] sm:$0xff]
  %v2714 = vld [vmem:[%s13 + $0x20] sm:$0xff]
  %v2715 = vld [vmem:[%s13 + $0x28] sm:$0xff]
  %v2716 = vld [vmem:[%s13 + $0x30] sm:$0xff]
  %v2717 = vld [vmem:[%s13 + $0x38] sm:$0xff]
  %2719 = vset.pattern.permute.xlu0 0
  %2720 = vperm.xlu0 %2719, %v2702
  %v2721 = vpop.permute.xlu0 %2720
  %2724 = vset.pattern.permute.xlu0 0
  %2725 = vperm.xlu0 %2724, %v2703
  %v2726 = vpop.permute.xlu0 %2725
  %2729 = vset.pattern.permute.xlu0 0
  %2730 = vperm.xlu0 %2729, %v2704
  %v2731 = vpop.permute.xlu0 %2730
  %2734 = vset.pattern.permute.xlu0 0
  %2735 = vperm.xlu0 %2734, %v2705
  %v2736 = vpop.permute.xlu0 %2735
  %2739 = vset.pattern.permute.xlu0 0
  %2740 = vperm.xlu0 %2739, %v2706
  %v2741 = vpop.permute.xlu0 %2740
  %2744 = vset.pattern.permute.xlu0 0
  %2745 = vperm.xlu0 %2744, %v2707
  %v2746 = vpop.permute.xlu0 %2745
  %2749 = vset.pattern.permute.xlu0 0
  %2750 = vperm.xlu0 %2749, %v2708
  %v2751 = vpop.permute.xlu0 %2750
  %2754 = vset.pattern.permute.xlu0 0
  %2755 = vperm.xlu0 %2754, %v2709
  %v2756 = vpop.permute.xlu0 %2755
  %v2758 = vmul.f32 %v2671, %v2721
  %v2759 = vmul.f32 %v2674, %v2726
  %v2760 = vmul.f32 %v2679, %v2731
  %v2761 = vmul.f32 %v2682, %v2736
  %v2762 = vmul.f32 %v2687, %v2741
  %v2763 = vmul.f32 %v2690, %v2746
  %v2764 = vmul.f32 %v2695, %v2751
  %v2765 = vmul.f32 %v2698, %v2756
  %2767 = vset.pattern.permute.xlu0 0
  %2768 = vperm.xlu0 %2767, %v2710
  %v2769 = vpop.permute.xlu0 %2768
  %2772 = vset.pattern.permute.xlu0 0
  %2773 = vperm.xlu0 %2772, %v2711
  %v2774 = vpop.permute.xlu0 %2773
  %2777 = vset.pattern.permute.xlu0 0
  %2778 = vperm.xlu0 %2777, %v2712
  %v2779 = vpop.permute.xlu0 %2778
  %2782 = vset.pattern.permute.xlu0 0
  %2783 = vperm.xlu0 %2782, %v2713
  %v2784 = vpop.permute.xlu0 %2783
  %2787 = vset.pattern.permute.xlu0 0
  %2788 = vperm.xlu0 %2787, %v2714
  %v2789 = vpop.permute.xlu0 %2788
  %2792 = vset.pattern.permute.xlu0 0
  %2793 = vperm.xlu0 %2792, %v2715
  %v2794 = vpop.permute.xlu0 %2793
  %2797 = vset.pattern.permute.xlu0 0
  %2798 = vperm.xlu0 %2797, %v2716
  %v2799 = vpop.permute.xlu0 %2798
  %2802 = vset.pattern.permute.xlu0 0
  %2803 = vperm.xlu0 %2802, %v2717
  %v2804 = vpop.permute.xlu0 %2803
  %v2806 = vadd.f32 %v2758, %v2769
  %v2807 = vadd.f32 %v2759, %v2774
  %v2808 = vadd.f32 %v2760, %v2779
  %v2809 = vadd.f32 %v2761, %v2784
  %v2810 = vadd.f32 %v2762, %v2789
  %v2811 = vadd.f32 %v2763, %v2794
  %v2812 = vadd.f32 %v2764, %v2799
  %v2813 = vadd.f32 %v2765, %v2804
  %v2814 = vmax.f32 %v2806, 0.0
  %v2815 = vmax.f32 %v2807, 0.0
  %v2816 = vmax.f32 %v2808, 0.0
  %v2817 = vmax.f32 %v2809, 0.0
  %v2818 = vmax.f32 %v2810, 0.0
  %v2819 = vmax.f32 %v2811, 0.0
  %v2820 = vmax.f32 %v2812, 0.0
  %v2821 = vmax.f32 %v2813, 0.0
  %2830 = vrot.lane.b32.xlu0 %v2814, 1
  %v2831 = vpop.permute.xlu0 %2830
  %2832 = vrot.lane.b32.xlu0 %v2815, 1
  %v2833 = vpop.permute.xlu0 %2832
  %2834 = vrot.lane.b32.xlu0 %v2816, 1
  %v2835 = vpop.permute.xlu0 %2834
  %2836 = vrot.lane.b32.xlu0 %v2817, 1
  %v2837 = vpop.permute.xlu0 %2836
  %2838 = vrot.lane.b32.xlu0 %v2818, 1
  %v2839 = vpop.permute.xlu0 %2838
  %2840 = vrot.lane.b32.xlu0 %v2819, 1
  %v2841 = vpop.permute.xlu0 %2840
  %2842 = vrot.lane.b32.xlu0 %v2820, 1
  %v2843 = vpop.permute.xlu0 %2842
  %2844 = vrot.lane.b32.xlu0 %v2821, 1
  %v2845 = vpop.permute.xlu0 %2844
  %vm2854 = vcmask 531464
  %2855 = vst.msk [vmem:[#allocation2] sm:$0xff] %vm2854, %v2831
  %2856 = vst.msk [vmem:[#allocation2 + $0x18] sm:$0xff] %vm2854, %v2833
  %2857 = vst.msk [vmem:[#allocation2 + $0x30] sm:$0xff] %vm2854, %v2835
  %2858 = vst.msk [vmem:[#allocation2 + $0x48] sm:$0xff] %vm2854, %v2837
  %2859 = vst.msk [vmem:[#allocation2 + $0x60] sm:$0xff] %vm2854, %v2839
  %2860 = vst.msk [vmem:[#allocation2 + $0x78] sm:$0xff] %vm2854, %v2841
  %2861 = vst.msk [vmem:[#allocation2 + $0x90] sm:$0xff] %vm2854, %v2843
  %2862 = vst.msk [vmem:[#allocation2 + $0xa8] sm:$0xff] %vm2854, %v2845
  %vm2863 = vcmp.eq.s32.totalorder %v2416, 31
  %vm2864 = vcmp.eq.s32.totalorder %v2416, 32
  %vm2865 = vmor %vm2417, %vm2864
  %vm2866 = vcmp.eq.s32.totalorder %v2416, 63
  %vm2867 = vmor %vm2863, %vm2866
  %v2868 = vld [vmem:[#allocation2] sm:$0xff]
  %v2869 = vld [vmem:[#allocation2 + $0x18] sm:$0xff]
  %v2870 = vld [vmem:[#allocation2 + $0x30] sm:$0xff]
  %v2871 = vld [vmem:[#allocation2 + $0x48] sm:$0xff]
  %v2872 = vld [vmem:[#allocation2 + $0x60] sm:$0xff]
  %v2873 = vld [vmem:[#allocation2 + $0x78] sm:$0xff]
  %v2874 = vld [vmem:[#allocation2 + $0x90] sm:$0xff]
  %v2875 = vld [vmem:[#allocation2 + $0xa8] sm:$0xff]
  %v2876 = vsel %vm2865, 1, 0
  %vm2877 = vcmp.eq.s32.totalorder %v2876, 1
  %v2878 = vsel %vm2877, 0.0, %v2868
  %v2879 = vsel %vm2877, 0.0, %v2869
  %v2880 = vsel %vm2877, 0.0, %v2870
  %v2881 = vsel %vm2877, 0.0, %v2871
  %v2882 = vsel %vm2877, 0.0, %v2872
  %v2883 = vsel %vm2877, 0.0, %v2873
  %v2884 = vsel %vm2877, 0.0, %v2874
  %v2885 = vsel %vm2877, 0.0, %v2875
  %v2886 = vsel %vm2867, 1, 0
  %vm2887 = vcmp.eq.s32.totalorder %v2886, 1
  %2896 = vrot.lane.b32.xlu0 %v2868, 126
  %v2897 = vpop.permute.xlu0 %2896
  %2898 = vrot.lane.b32.xlu0 %v2869, 126
  %v2899 = vpop.permute.xlu0 %2898
  %2900 = vrot.lane.b32.xlu0 %v2870, 126
  %v2901 = vpop.permute.xlu0 %2900
  %2902 = vrot.lane.b32.xlu0 %v2871, 126
  %v2903 = vpop.permute.xlu0 %2902
  %2904 = vrot.lane.b32.xlu0 %v2872, 126
  %v2905 = vpop.permute.xlu0 %2904
  %2906 = vrot.lane.b32.xlu0 %v2873, 126
  %v2907 = vpop.permute.xlu0 %2906
  %2908 = vrot.lane.b32.xlu0 %v2874, 126
  %v2909 = vpop.permute.xlu0 %2908
  %2910 = vrot.lane.b32.xlu0 %v2875, 126
  %v2911 = vpop.permute.xlu0 %2910
  %v2920 = vsel %vm2887, 0.0, %v2897
  %v2921 = vsel %vm2887, 0.0, %v2899
  %v2922 = vsel %vm2887, 0.0, %v2901
  %v2923 = vsel %vm2887, 0.0, %v2903
  %v2924 = vsel %vm2887, 0.0, %v2905
  %v2925 = vsel %vm2887, 0.0, %v2907
  %v2926 = vsel %vm2887, 0.0, %v2909
  %v2927 = vsel %vm2887, 0.0, %v2911
  %v2928 = vpack.c.bf16 %v2879, %v2878
  %v2929 = vpack.c.bf16 %v2881, %v2880
  %v2930 = vpack.c.bf16 %v2883, %v2882
  %v2931 = vpack.c.bf16 %v2885, %v2884
  %v2932 = vpack.c.bf16 %v2815, %v2814
  %v2933 = vpack.c.bf16 %v2817, %v2816
  %v2934 = vpack.c.bf16 %v2819, %v2818
  %v2935 = vpack.c.bf16 %v2821, %v2820
  %v2936 = vpack.c.bf16 %v2921, %v2920
  %v2937 = vpack.c.bf16 %v2923, %v2922
  %v2938 = vpack.c.bf16 %v2925, %v2924
  %v2939 = vpack.c.bf16 %v2927, %v2926
  %v2941 = vunpack.c.l.b16 %v2701
  %v2942 = vunpack.c.h.b16 %v2701
  %v2943 = vpack.c.b16 %v2941, %v2941
  %v2944 = vpack.c.b16 %v2942, %v2942
  %v2947 = vsel %vm1408, %v2944, 0
  %2949 = vmatprep.subr.bf16.mxu0 0
  %2950 = vmatpush1.bf16.msra.mxu0 %v2928
  %2951 = vmatprep.subr.bf16.mxu0 0
  %2952 = vmatpush1.bf16.msra.mxu0 %v2929
  %2953 = vmatprep.subr.bf16.mxu0 0
  %2954 = vmatpush1.bf16.msra.mxu0 %v2930
  %2955 = vmatprep.subr.bf16.mxu0 0
  %2956 = vmatpush1.bf16.msra.mxu0 %v2931
  %2957 = vmatprep.subr.bf16.mxu0 0
  %2958 = vmatpush1.bf16.msra.mxu0 %v2932
  %2959 = vmatprep.subr.bf16.mxu0 0
  %2960 = vmatpush1.bf16.msra.mxu0 %v2933
  %2961 = vmatprep.subr.bf16.mxu0 0
  %2962 = vmatpush1.bf16.msra.mxu0 %v2934
  %2963 = vmatprep.subr.bf16.mxu0 0
  %2964 = vmatpush1.bf16.msra.mxu0 %v2935
  %2965 = vmatprep.subr.bf16.mxu0 0
  %2966 = vmatpush1.bf16.msra.mxu0 %v2936
  %2967 = vmatprep.subr.bf16.mxu0 0
  %2968 = vmatpush1.bf16.msra.mxu0 %v2937
  %2969 = vmatprep.subr.bf16.mxu0 0
  %2970 = vmatpush1.bf16.msra.mxu0 %v2938
  %2971 = vmatprep.subr.bf16.mxu0 0
  %2972 = vmatpush1.bf16.msra.mxu0 %v2939
  %2973 = vmatprep.subr.bf16.mxu0 0
  %2974 = vmatpush1.bf16.msra.mxu0 0
  %2975 = vmatprep.subr.bf16.mxu0 0
  %2976 = vmatpush1.bf16.msra.mxu0 0
  %2977 = vmatprep.subr.bf16.mxu0 0
  %2978 = vmatpush1.bf16.msra.mxu0 0
  %2979 = vmatprep.subr.bf16.mxu0 0
  %2980 = vmatpush1.bf16.msra.mxu0 0
  %2981 = vmatprep.mubr.bf16.mxu0 %v2947
  %2982 = vmatmul.mubr.bf16.gmra.mrb[0].mxu0 %v2943
  %v2983 = vpop.f32.mrb[0].mxu0
  %v2984 = vadd.f32 0.0, %v2983
  %v2985 = vpop.f32.mrb[0].mxu0
  %v2986 = vpop.f32.mrb[0].mxu0
  %v2987 = vpop.f32.mrb[0].mxu0
  %2988 = vdwg.mxu0
  %v2989 = vld [vmem:[%s21] sm:$0xff]
  %v2990 = vld [vmem:[%s21 + $0x8] sm:$0xf]
  %v2991 = vld [vmem:[%s21 + $0xc] sm:$0xff]
  %v2992 = vld [vmem:[%s21 + $0x14] sm:$0xf]
  %v2993 = vld [vmem:[%s21 + $0x18] sm:$0xff]
  %v2994 = vld [vmem:[%s21 + $0x20] sm:$0xf]
  %v2995 = vld [vmem:[%s21 + $0x24] sm:$0xff]
  %v2996 = vld [vmem:[%s21 + $0x2c] sm:$0xf]
  %v2997 = vld [vmem:[%s21 + $0x30] sm:$0xff]
  %v2998 = vld [vmem:[%s21 + $0x38] sm:$0xf]
  %v2999 = vld [vmem:[%s21 + $0x3c] sm:$0xff]
  %v3000 = vld [vmem:[%s21 + $0x44] sm:$0xf]
  %v3001 = vld [vmem:[%s21 + $0x48] sm:$0xff]
  %v3002 = vld [vmem:[%s21 + $0x50] sm:$0xf]
  %v3003 = vld [vmem:[%s21 + $0x54] sm:$0xff]
  %v3004 = vld [vmem:[%s21 + $0x5c] sm:$0xf]
  %v3005 = vpack.c.bf16 %v2984, %v2984
  %v3022 = vunpack.c.l.b16 %v2989
  %v3023 = vunpack.c.h.b16 %v2989
  %v3024 = vunpack.c.l.b16 %v2990
  %v3025 = vunpack.c.l.b16 %v2991
  %v3026 = vunpack.c.h.b16 %v2991
  %v3027 = vunpack.c.l.b16 %v2992
  %v3028 = vunpack.c.l.b16 %v2993
  %v3029 = vunpack.c.h.b16 %v2993
  %v3030 = vunpack.c.l.b16 %v2994
  %v3031 = vunpack.c.l.b16 %v2995
  %v3032 = vunpack.c.h.b16 %v2995
  %v3033 = vunpack.c.l.b16 %v2996
  %v3034 = vunpack.c.l.b16 %v2997
  %v3035 = vunpack.c.h.b16 %v2997
  %v3036 = vunpack.c.l.b16 %v2998
  %v3037 = vunpack.c.l.b16 %v2999
  %v3038 = vunpack.c.h.b16 %v2999
  %v3039 = vunpack.c.l.b16 %v3000
  %v3040 = vunpack.c.l.b16 %v3001
  %v3041 = vunpack.c.h.b16 %v3001
  %v3042 = vunpack.c.l.b16 %v3002
  %v3043 = vunpack.c.l.b16 %v3003
  %v3044 = vunpack.c.h.b16 %v3003
  %v3045 = vunpack.c.l.b16 %v3004
  %v3046 = vpack.c.b16 %v3025, %v3022
  %v3047 = vpack.c.b16 %v3026, %v3023
  %v3048 = vpack.c.b16 %v3027, %v3024
  %v3049 = vpack.c.b16 %v3031, %v3028
  %v3050 = vpack.c.b16 %v3032, %v3029
  %v3051 = vpack.c.b16 %v3033, %v3030
  %v3052 = vpack.c.b16 %v3037, %v3034
  %v3053 = vpack.c.b16 %v3038, %v3035
  %v3054 = vpack.c.b16 %v3039, %v3036
  %v3055 = vpack.c.b16 %v3043, %v3040
  %v3056 = vpack.c.b16 %v3044, %v3041
  %v3057 = vpack.c.b16 %v3045, %v3042
  %v3071 = vsel %vm1408, %v3005, 0
  %3073 = vmatprep.subr.bf16.mxu0 %v3047
  %3074 = vmatpush1.bf16.msra.mxu0 %v3046
  %3075 = vmatprep.subr.bf16.mxu0 %v3050
  %3076 = vmatpush1.bf16.msra.mxu0 %v3049
  %3077 = vmatprep.subr.bf16.mxu0 %v3053
  %3078 = vmatpush1.bf16.msra.mxu0 %v3052
  %3079 = vmatprep.subr.bf16.mxu0 %v3056
  %3080 = vmatpush1.bf16.msra.mxu0 %v3055
  %3081 = vmatprep.subr.bf16.mxu0 0
  %3082 = vmatpush1.bf16.msra.mxu0 0
  %3083 = vmatprep.subr.bf16.mxu0 0
  %3084 = vmatpush1.bf16.msra.mxu0 0
  %3085 = vmatprep.subr.bf16.mxu0 0
  %3086 = vmatpush1.bf16.msra.mxu0 0
  %3087 = vmatprep.subr.bf16.mxu0 0
  %3088 = vmatpush1.bf16.msra.mxu0 0
  %3089 = vmatprep.subr.bf16.mxu0 0
  %3090 = vmatpush1.bf16.msra.mxu0 0
  %3091 = vmatprep.subr.bf16.mxu0 0
  %3092 = vmatpush1.bf16.msra.mxu0 0
  %3093 = vmatprep.subr.bf16.mxu0 0
  %3094 = vmatpush1.bf16.msra.mxu0 0
  %3095 = vmatprep.subr.bf16.mxu0 0
  %3096 = vmatpush1.bf16.msra.mxu0 0
  %3097 = vmatprep.subr.bf16.mxu0 0
  %3098 = vmatpush1.bf16.msra.mxu0 0
  %3099 = vmatprep.subr.bf16.mxu0 0
  %3100 = vmatpush1.bf16.msra.mxu0 0
  %3101 = vmatprep.subr.bf16.mxu0 0
  %3102 = vmatpush1.bf16.msra.mxu0 0
  %3103 = vmatprep.subr.bf16.mxu0 0
  %3104 = vmatpush1.bf16.msra.mxu0 0
  %3105 = vmatprep.mubr.bf16.mxu0 0
  %3106 = vmatmul.mubr.bf16.gmra.mrb[0].mxu0 %v3071
  %v3107 = vpop.f32.mrb[0].mxu0
  %v3108 = vadd.f32 %v72, %v3107
  %v3109 = vpop.f32.mrb[0].mxu0
  %v3110 = vadd.f32 %v73, %v3109
  %v3111 = vpop.f32.mrb[0].mxu0
  %v3112 = vpop.f32.mrb[0].mxu0
  %3113 = vdwg.mxu0
  %3114 = vmatprep.subr.bf16.mxu0 0
  %3115 = vmatpush1.bf16.msra.mxu0 %v3048
  %3116 = vmatprep.subr.bf16.mxu0 0
  %3117 = vmatpush1.bf16.msra.mxu0 %v3051
  %3118 = vmatprep.subr.bf16.mxu0 0
  %3119 = vmatpush1.bf16.msra.mxu0 %v3054
  %3120 = vmatprep.subr.bf16.mxu0 0
  %3121 = vmatpush1.bf16.msra.mxu0 %v3057
  %3122 = vmatprep.subr.bf16.mxu0 0
  %3123 = vmatpush1.bf16.msra.mxu0 0
  %3124 = vmatprep.subr.bf16.mxu0 0
  %3125 = vmatpush1.bf16.msra.mxu0 0
  %3126 = vmatprep.subr.bf16.mxu0 0
  %3127 = vmatpush1.bf16.msra.mxu0 0
  %3128 = vmatprep.subr.bf16.mxu0 0
  %3129 = vmatpush1.bf16.msra.mxu0 0
  %3130 = vmatprep.subr.bf16.mxu0 0
  %3131 = vmatpush1.bf16.msra.mxu0 0
  %3132 = vmatprep.subr.bf16.mxu0 0
  %3133 = vmatpush1.bf16.msra.mxu0 0
  %3134 = vmatprep.subr.bf16.mxu0 0
  %3135 = vmatpush1.bf16.msra.mxu0 0
  %3136 = vmatprep.subr.bf16.mxu0 0
  %3137 = vmatpush1.bf16.msra.mxu0 0
  %3138 = vmatprep.subr.bf16.mxu0 0
  %3139 = vmatpush1.bf16.msra.mxu0 0
  %3140 = vmatprep.subr.bf16.mxu0 0
  %3141 = vmatpush1.bf16.msra.mxu0 0
  %3142 = vmatprep.subr.bf16.mxu0 0
  %3143 = vmatpush1.bf16.msra.mxu0 0
  %3144 = vmatprep.subr.bf16.mxu0 0
  %3145 = vmatpush1.bf16.msra.mxu0 0
  %3146 = vmatprep.mubr.bf16.mxu0 0
  %3147 = vmatmul.mubr.bf16.gmra.mrb[0].mxu0 %v3071
  %v3148 = vpop.f32.mrb[0].mxu0
  %v3149 = vadd.f32 %v74, %v3148
  %v3150 = vpop.f32.mrb[0].mxu0
  %v3151 = vpop.f32.mrb[0].mxu0
  %v3152 = vpop.f32.mrb[0].mxu0
  %3153 = vdwg.mxu0
  %v3154 = vld [vmem:[%s9] sm:$0xf]
  %v3155 = vld [vmem:[%s14] sm:$0xff]
  %v3156 = vld [vmem:[%s15] sm:$0xff]
  %3158 = vset.pattern.permute.xlu0 0
  %3159 = vperm.xlu0 %3158, %v3155
  %v3160 = vpop.permute.xlu0 %3159
  %v3162 = vmul.f32 %v3108, %v3160
  %v3163 = vmul.f32 %v3110, %v3160
  %v3164 = vmul.f32 %v3149, %v3160
  %3166 = vset.pattern.permute.xlu0 0
  %3167 = vperm.xlu0 %3166, %v3156
  %v3168 = vpop.permute.xlu0 %3167
  %v3170 = vadd.f32 %v3162, %v3168
  %v3171 = vadd.f32 %v3163, %v3168
  %v3172 = vadd.f32 %v3164, %v3168
  %v3173 = vmax.f32 %v3170, 0.0
  %v3174 = vmax.f32 %v3171, 0.0
  %v3175 = vmax.f32 %v3172, 0.0
  %3179 = vrot.lane.b32.xlu0 %v3173, 1
  %v3180 = vpop.permute.xlu0 %3179
  %3181 = vrot.lane.b32.xlu0 %v3174, 1
  %v3182 = vpop.permute.xlu0 %3181
  %3183 = vrot.lane.b32.xlu0 %v3175, 1
  %v3184 = vpop.permute.xlu0 %3183
  %vm3185 = vcmask 7168
  %v3186 = vsel %vm3185, %v3180, %v3182
  %v3187 = vsel %vm3185, %v3182, %v3184
  %vm3191 = vcmask 1047560
  %3192 = vst.msk [vmem:[#allocation2] sm:$0xff] %vm3191, %v3180
  %3193 = vst [vmem:[#allocation2 + $0x8] sm:$0xff] %v3186
  %vm3194 = vcmask 203776
  %3195 = vst.msk [vmem:[#allocation2 + $0x10] sm:$0xff] %vm3194, %v3187
  %v3196 = vadd.s32 %v2416, 128
  %v3197 = vadd.s32 %v2416, 256
  %vm3198 = vcmp.eq.s32.totalorder %v3196, 0
  %vm3199 = vcmp.eq.s32.totalorder %v3197, 0
  %vm3200 = vcmp.eq.s32.totalorder %v2416, 139
  %vm3201 = vcmp.eq.s32.totalorder %v3196, 139
  %vm3202 = vcmp.eq.s32.totalorder %v3197, 139
  %vm3203 = vcmp.eq.s32.totalorder %v2416, 140
  %vm3204 = vcmp.eq.s32.totalorder %v3196, 140
  %vm3205 = vcmp.eq.s32.totalorder %v3197, 140
  %vm3206 = vmor %vm2417, %vm3203
  %vm3207 = vmor %vm3198, %vm3204
  %vm3208 = vmor %vm3199, %vm3205
  %vm3209 = vcmp.eq.s32.totalorder %v2416, 279
  %vm3210 = vcmp.eq.s32.totalorder %v3196, 279
  %vm3211 = vcmp.eq.s32.totalorder %v3197, 279
  %vm3212 = vmor %vm3200, %vm3209
  %vm3213 = vmor %vm3201, %vm3210
  %vm3214 = vmor %vm3202, %vm3211
  %v3215 = vld [vmem:[#allocation2] sm:$0xff]
  %v3216 = vld [vmem:[#allocation2 + $0x8] sm:$0xff]
  %v3217 = vld [vmem:[#allocation2 + $0x10] sm:$0xff]
  %v3218 = vsel %vm3206, 1, 0
  %v3219 = vsel %vm3207, 1, 0
  %v3220 = vsel %vm3208, 1, 0
  %vm3221 = vcmp.eq.s32.totalorder %v3218, 1
  %vm3222 = vcmp.eq.s32.totalorder %v3219, 1
  %vm3223 = vcmp.eq.s32.totalorder %v3220, 1
  %v3224 = vsel %vm3221, 0.0, %v3215
  %v3225 = vsel %vm3222, 0.0, %v3216
  %v3226 = vsel %vm3223, 0.0, %v3217
  %v3227 = vsel %vm3212, 1, 0
  %v3228 = vsel %vm3213, 1, 0
  %v3229 = vsel %vm3214, 1, 0
  %vm3230 = vcmp.eq.s32.totalorder %v3227, 1
  %vm3231 = vcmp.eq.s32.totalorder %v3228, 1
  %vm3232 = vcmp.eq.s32.totalorder %v3229, 1
  %3236 = vrot.lane.b32.xlu0 %v3215, 126
  %v3237 = vpop.permute.xlu0 %3236
  %3238 = vrot.lane.b32.xlu0 %v3216, 126
  %v3239 = vpop.permute.xlu0 %3238
  %3240 = vrot.lane.b32.xlu0 %v3217, 126
  %v3241 = vpop.permute.xlu0 %3240
  %v3242 = vsel %vm104, %v3237, %v3239
  %v3243 = vsel %vm104, %v3239, %v3241
  %v3247 = vsel %vm3230, 0.0, %v3242
  %v3248 = vsel %vm3231, 0.0, %v3243
  %v3249 = vsel %vm3232, 0.0, %v3241
  %v3250 = vpack.c.bf16 %v3173, %v3224
  %v3251 = vpack.c.bf16 %v3174, %v3225
  %v3252 = vpack.c.bf16 %v3175, %v3226
  %v3253 = vpack.c.bf16 %v3247, %v3247
  %v3254 = vpack.c.bf16 %v3248, %v3248
  %v3255 = vpack.c.bf16 %v3249, %v3249
  %vm3256 = vcmask 195584
  %v3258 = vsel %vm3256, %v3154, 0
  %v3261 = vsel %vm332, %v3253, 0
  %v3264 = vsel %vm332, %v3254, 0
  %v3267 = vsel %vm332, %v3255, 0
  %3269 = vmatprep.subr.bf16.mxu0 %v3251
  %3270 = vmatpush1.bf16.msra.mxu0 %v3250
  %3271 = vmatprep.subr.bf16.mxu0 %v3264
  %3272 = vmatpush1.bf16.msra.mxu0 %v3261
  %3273 = vmatprep.subr.bf16.mxu0 0
  %3274 = vmatpush1.bf16.msra.mxu0 0
  %3275 = vmatprep.subr.bf16.mxu0 0
  %3276 = vmatpush1.bf16.msra.mxu0 0
  %3277 = vmatprep.subr.bf16.mxu0 0
  %3278 = vmatpush1.bf16.msra.mxu0 0
  %3279 = vmatprep.subr.bf16.mxu0 0
  %3280 = vmatpush1.bf16.msra.mxu0 0
  %3281 = vmatprep.subr.bf16.mxu0 0
  %3282 = vmatpush1.bf16.msra.mxu0 0
  %3283 = vmatprep.subr.bf16.mxu0 0
  %3284 = vmatpush1.bf16.msra.mxu0 0
  %3285 = vmatprep.subr.bf16.mxu0 0
  %3286 = vmatpush1.bf16.msra.mxu0 0
  %3287 = vmatprep.subr.bf16.mxu0 0
  %3288 = vmatpush1.bf16.msra.mxu0 0
  %3289 = vmatprep.subr.bf16.mxu0 0
  %3290 = vmatpush1.bf16.msra.mxu0 0
  %3291 = vmatprep.subr.bf16.mxu0 0
  %3292 = vmatpush1.bf16.msra.mxu0 0
  %3293 = vmatprep.subr.bf16.mxu0 0
  %3294 = vmatpush1.bf16.msra.mxu0 0
  %3295 = vmatprep.subr.bf16.mxu0 0
  %3296 = vmatpush1.bf16.msra.mxu0 0
  %3297 = vmatprep.subr.bf16.mxu0 0
  %3298 = vmatpush1.bf16.msra.mxu0 0
  %3299 = vmatprep.subr.bf16.mxu0 0
  %3300 = vmatpush1.bf16.msra.mxu0 0
  %3301 = vmatprep.mubr.bf16.mxu0 0
  %3302 = vmatmul.mubr.bf16.gmra.mrb[0].mxu0 %v3258
  %v3303 = vpop.f32.mrb[0].mxu0
  %v3304 = vadd.f32 0.0, %v3303
  %v3305 = vpop.f32.mrb[0].mxu0
  %v3306 = vadd.f32 0.0, %v3305
  %v3307 = vpop.f32.mrb[0].mxu0
  %v3308 = vpop.f32.mrb[0].mxu0
  %3309 = vdwg.mxu0
  %3310 = vmatprep.subr.bf16.mxu0 0
  %3311 = vmatpush1.bf16.msra.mxu0 %v3252
  %3312 = vmatprep.subr.bf16.mxu0 0
  %3313 = vmatpush1.bf16.msra.mxu0 %v3267
  %3314 = vmatprep.subr.bf16.mxu0 0
  %3315 = vmatpush1.bf16.msra.mxu0 0
  %3316 = vmatprep.subr.bf16.mxu0 0
  %3317 = vmatpush1.bf16.msra.mxu0 0
  %3318 = vmatprep.subr.bf16.mxu0 0
  %3319 = vmatpush1.bf16.msra.mxu0 0
  %3320 = vmatprep.subr.bf16.mxu0 0
  %3321 = vmatpush1.bf16.msra.mxu0 0
  %3322 = vmatprep.subr.bf16.mxu0 0
  %3323 = vmatpush1.bf16.msra.mxu0 0
  %3324 = vmatprep.subr.bf16.mxu0 0
  %3325 = vmatpush1.bf16.msra.mxu0 0
  %3326 = vmatprep.subr.bf16.mxu0 0
  %3327 = vmatpush1.bf16.msra.mxu0 0
  %3328 = vmatprep.subr.bf16.mxu0 0
  %3329 = vmatpush1.bf16.msra.mxu0 0
  %3330 = vmatprep.subr.bf16.mxu0 0
  %3331 = vmatpush1.bf16.msra.mxu0 0
  %3332 = vmatprep.subr.bf16.mxu0 0
  %3333 = vmatpush1.bf16.msra.mxu0 0
  %3334 = vmatprep.subr.bf16.mxu0 0
  %3335 = vmatpush1.bf16.msra.mxu0 0
  %3336 = vmatprep.subr.bf16.mxu0 0
  %3337 = vmatpush1.bf16.msra.mxu0 0
  %3338 = vmatprep.subr.bf16.mxu0 0
  %3339 = vmatpush1.bf16.msra.mxu0 0
  %3340 = vmatprep.subr.bf16.mxu0 0
  %3341 = vmatpush1.bf16.msra.mxu0 0
  %3342 = vmatprep.mubr.bf16.mxu0 0
  %3343 = vmatmul.mubr.bf16.gmra.mrb[0].mxu0 %v3258
  %v3344 = vpop.f32.mrb[0].mxu0
  %v3345 = vadd.f32 0.0, %v3344
  %v3346 = vpop.f32.mrb[0].mxu0
  %v3347 = vpop.f32.mrb[0].mxu0
  %v3348 = vpop.f32.mrb[0].mxu0
  %3349 = vdwg.mxu0
  %v3350 = vxor.u32 %v3304, 2147483648
  %v3351 = vxor.u32 %v3306, 2147483648
  %v3352 = vxor.u32 %v3345, 2147483648
  %v3353 = vmul.f32 %v3350, 1.442695
  %v3354 = vpow.pop %v3353
  %v3355 = vmul.f32 %v3351, 1.442695
  %v3356 = vpow.pop %v3355
  %v3357 = vmul.f32 %v3352, 1.442695
  %v3358 = vpow.pop %v3357
  %v3359 = vadd.f32 %v3354, 1.0
  %v3360 = vadd.f32 %v3356, 1.0
  %v3361 = vadd.f32 %v3358, 1.0
  %v3362 = vrcp.pop %v3359
  %v3363 = vmul.f32 1.0, %v3362
  %v3364 = vrcp.pop %v3360
  %v3365 = vmul.f32 1.0, %v3364
  %v3366 = vrcp.pop %v3361
  %v3367 = vmul.f32 1.0, %v3366
  %v3371 = vcombine.low %v3363, %v3365
  %v3373 = vunpack.c.l.s4 1966171168
  %v3374 = vunpack.c.0.s8 %v3373
  %v3375 = vlaneseq
  %v3376 = vshrl.u32 %v3375, 7
  %v3377 = vsub.s32 %v3374, %v3376
  %v3378 = vrot.slane %v3371, %v3377
  %v3380 = vunpack.c.l.s4 1966171168
  %v3381 = vunpack.c.0.s8 %v3380
  %v3382 = vlaneseq
  %v3383 = vshrl.u32 %v3382, 7
  %v3384 = vsub.s32 %v3381, %v3383
  %v3385 = vrot.slane %v3367, %v3384
  %v3386 = vcombine.low %v3378, %v3385
  %v3388 = vunpack.c.l.s4 1966171168
  %v3389 = vunpack.c.0.s8 %v3388
  %v3390 = vlaneseq
  %v3391 = vshrl.u32 %v3390, 7
  %v3392 = vsub.s32 %v3389, %v3391
  %v3393 = vrot.slane %v3386, %v3392
  %v3395 = vlaneseq
  %vm3396 = vcmp.ge.s32.totalorder %v3395, 0
  %vm3397 = vcmp.lt.s32.totalorder %v3395, 280
  %vm3398 = vmand %vm3396, %vm3397
  %3399 = vst.msk [vmem:[%s22] sm:$0x7] %vm3398, %v3393
  // Predicated region
  $region90: #{fcn_forward.1} parent=0 // pred_check
    _
  $region91: #{fcn_forward.1} parent=0 // pred_check_branch
    %3401 = sbr.rel (0) target = $region93
  $region92: #{fcn_forward.1} parent=0 // pred_region
    _
  $region93: #{fcn_forward.1} parent=0 // pred_fallthru
    _
  // Predicated region
  $region94: #{fcn_forward.1} parent=0 // pred_check
    _
  $region95: #{fcn_forward.1} parent=0 // pred_check_branch
    %3403 = sbr.rel (0) target = $region97
  $region96: #{fcn_forward.1} parent=0 // pred_region
    _
  $region97: #{fcn_forward.1} parent=0 // pred_fallthru
    _

</llo_original>
